<compile_context>
chip_gen: v6e
topology: v6e:2x2x1
jax: 0.10.0
libtpu: 0.0.40
codegen_flags: <defaults>
</compile_context>

<pallas_src>
import functools

import jax
import jax.numpy as jnp
from jax.experimental import pallas as pl
from jax.experimental.pallas import tpu as pltpu


def _round_up(x, m):
    return (x + m - 1) // m * m


def _relu6(v):
    return jnp.minimum(jnp.maximum(v, 0.0), 6.0)


# ----------------------------------------------------------------------------
# Fused Pallas kernel: the whole network for one tile of batch rows.
# ----------------------------------------------------------------------------
def fused_mlp_kernel(x_ref, wc_ref, bc_ref, w1_ref, b1_ref, w2_ref, b2_ref,
                     w3_ref, b3_ref, w4_ref, b4_ref, w5_ref, b5_ref, o_ref):
    def layer(h, w_ref, b_ref, act, out_dtype=jnp.bfloat16):
        # bf16 operands -> MXU with f32 accumulation; bias/ReLU6 epilogue in
        # f32 (VPU-safe on v5e); result handed to the next MXU op as bf16.
        y = jnp.dot(h, w_ref[...], preferred_element_type=jnp.float32)
        y = y + b_ref[...]
        if act:
            y = _relu6(y)
        return y.astype(out_dtype)

    h = x_ref[...]                       # (TB, kc_pad) bf16 im2col rows
    h = layer(h, wc_ref, bc_ref, True)   # Conv1d as block-diag matmul + ReLU6
    h = layer(h, w1_ref, b1_ref, True)   # fc1 + folded BN + ReLU6
    h = layer(h, w2_ref, b2_ref, True)   # fc2 + folded BN + ReLU6
    h = layer(h, w3_ref, b3_ref, True)   # fc3 + folded BN + ReLU6
    h = layer(h, w4_ref, b4_ref, True)   # fc4 + ReLU6
    o_ref[...] = layer(h, w5_ref, b5_ref, False,        # classifier, padded
                       out_dtype=jnp.float32)           # to 128 lanes, f32 out


# ----------------------------------------------------------------------------
# Batch tiling: big tiles (amortize per-step overhead), >=2 steps for v7x
# megacore when the batch allows it, minimal padded rows.
# ----------------------------------------------------------------------------
def _pick_batch_tiling(B):
    if B <= 16:
        n_tiles = 1                       # tiny batch: launch-overhead bound
    else:
        n_tiles = max(2, pl.cdiv(B, 512))  # cap tiles at 512 rows, >=2 steps
    tb = _round_up(pl.cdiv(B, n_tiles), 8)  # 8-row sublane granule
    b_pad = _round_up(B, tb)
    return tb, b_pad


# ----------------------------------------------------------------------------
# Forward wrapper: im2col glue + single fused pallas_call
# ----------------------------------------------------------------------------
def simple_cnn_forward(x, kp, *, num_classes):
    B, c_in, L = x.shape
    kern, stride, pad, c_out = 3, 2, 1, 32
    l_out = (L + 2 * pad - kern) // stride + 1
    flat = c_out * l_out

    # im2col glue: rows = batch, columns ordered (l, c_in, k) to match the
    # block-diagonal conv weight (output is already the flattened features).
    xp = jnp.pad(x, ((0, 0), (0, 0), (pad, pad)))
    idx = jnp.arange(l_out)[:, None] * stride + jnp.arange(kern)[None, :]
    patches = xp[:, :, idx]                                   # (B, Cin, L_out, K)
    kc = l_out * c_in * kern
    patches = jnp.transpose(patches, (0, 2, 1, 3)).reshape(B, kc)

    # Lane-dense streamed input: pad the feature dim to a multiple of 128 and
    # ship it as bf16 (weights are bf16 already; accumulation is f32).
    kc_pad = _round_up(kc, 128)
    if kc_pad != kc:
        patches = jnp.pad(patches, ((0, 0), (0, kc_pad - kc)))
    patches = patches.astype(jnp.bfloat16)

    tb, b_pad = _pick_batch_tiling(B)
    if b_pad != B:
        patches = jnp.pad(patches, ((0, b_pad - B), (0, 0)))

    n_pad = kp["w5"].shape[1]

    def const_spec(w):  # full-array block, same block index every grid step
        return pl.BlockSpec(w.shape, lambda i: (0,) * w.ndim)

    # Advisory cost estimate so XLA schedules the im2col gather / output slice
    # sensibly around the custom call.
    layer_dims = [(kc_pad, flat), (flat, 1024), (1024, 512), (512, 256),
                  (256, 128), (128, n_pad)]
    flops = 2 * b_pad * sum(k * n for k, n in layer_dims)
    weight_bytes = sum(int(v.size) * v.dtype.itemsize for v in kp.values())
    bytes_accessed = int(patches.size) * 2 + weight_bytes + b_pad * n_pad * 4
    cost = pl.CostEstimate(flops=int(flops), transcendentals=0,
                           bytes_accessed=int(bytes_accessed))

    out = pl.pallas_call(
        fused_mlp_kernel,
        out_shape=jax.ShapeDtypeStruct((b_pad, n_pad), jnp.float32),
        grid=(b_pad // tb,),
        in_specs=[
            pl.BlockSpec((tb, kc_pad), lambda i: (i, 0)),
            const_spec(kp["wc"]), const_spec(kp["bc"]),
            const_spec(kp["w1"]), const_spec(kp["b1"]),
            const_spec(kp["w2"]), const_spec(kp["b2"]),
            const_spec(kp["w3"]), const_spec(kp["b3"]),
            const_spec(kp["w4"]), const_spec(kp["b4"]),
            const_spec(kp["w5"]), const_spec(kp["b5"]),
        ],
        out_specs=pl.BlockSpec((tb, n_pad), lambda i: (i, 0)),
        compiler_params=pltpu.CompilerParams(
            dimension_semantics=("parallel",)),
        cost_estimate=cost,
    )(patches, kp["wc"], kp["bc"], kp["w1"], kp["b1"], kp["w2"], kp["b2"],
      kp["w3"], kp["b3"], kp["w4"], kp["b4"], kp["w5"], kp["b5"])

    return out[:B, :num_classes]


# ----------------------------------------------------------------------------
# Parameters (PyTorch-style init) + offline kernel plumbing
# ----------------------------------------------------------------------------
def _uniform(key, shape, fan_in):
    bound = 1.0 / jnp.sqrt(jnp.asarray(fan_in, jnp.float32))
    return jax.random.uniform(key, shape, jnp.float32, -bound, bound)


def _bn_affine(key, n, eps=1e-5):
    """Eval-mode BatchNorm1d (running stats) as a per-feature scale/shift."""
    k1, k2, k3 = jax.random.split(key, 3)
    gamma = 1.0 + 0.1 * jax.random.normal(k1, (n,), jnp.float32)
    beta = 0.1 * jax.random.normal(k2, (n,), jnp.float32)
    running_mean = 0.1 * jax.random.normal(k3, (n,), jnp.float32)
    running_var = jnp.ones((n,), jnp.float32)
    scale = gamma / jnp.sqrt(running_var + eps)
    shift = beta - running_mean * scale
    return scale, shift


def init_raw_params(key, in_channels, length, num_classes):
    """PyTorch-layout parameters (also used by the pure-JAX f32 reference)."""
    k = jax.random.split(key, 16)
    kern, stride, pad, c_out = 3, 2, 1, 32
    l_out = (length + 2 * pad - kern) // stride + 1
    flat = c_out * l_out

    p = {}
    p["conv_w"] = _uniform(k[0], (c_out, in_channels, kern), in_channels * kern)
    p["conv_b"] = _uniform(k[1], (c_out,), in_channels * kern)
    dims = [(flat, 1024), (1024, 512), (512, 256)]
    for i, (din, dout) in enumerate(dims, start=1):
        p[f"w{i}"] = _uniform(k[2 * i], (din, dout), din)
        p[f"b{i}"] = _uniform(k[2 * i + 1], (dout,), din)
        p[f"s{i}"], p[f"t{i}"] = _bn_affine(k[7 + i], dout)
    p["w4"] = _uniform(k[11], (256, 128), 256)
    p["b4"] = _uniform(k[12], (128,), 256)
    p["w5"] = _uniform(k[13], (128, num_classes), 128)
    p["b5"] = _uniform(k[14], (num_classes,), 128)
    return p


def prepare_kernel_params(raw, in_channels, length, num_classes):
    """Offline plumbing: conv -> block-diagonal matmul (rows padded to a lane-
    dense multiple of 128), Flatten -> fc1 row permutation, eval-mode BN folded
    into weight/bias, classifier padded to a lane-dense 128-wide output,
    weights cast to bf16 (biases stay f32)."""
    kern, stride, pad, c_out = 3, 2, 1, 32
    l_out = (length + 2 * pad - kern) // stride + 1

    # Conv1d as one dense matmul whose output is already the (l, c)-ordered
    # flattened feature vector: Wbig[l*CK+ck, l*32+c] = Wc[ck, c].
    # NOTE: this kron weight is O(L_out^2) and ~(1 - 1/L_out) zeros; fine at
    # L=16 (64 KB bf16) but for long sequences fold L_out into the M dim
    # (patches reshaped to (tb*l_out, Cin*K)) instead of growing K.
    kc = l_out * in_channels * kern
    kc_pad = _round_up(kc, 128)
    wc = raw["conv_w"].reshape(c_out, in_channels * kern).T        # (Cin*K, 32)
    w_conv = jnp.kron(jnp.eye(l_out, dtype=jnp.float32), wc)       # (kc, L*32)
    if kc_pad != kc:                                               # lane-dense K
        w_conv = jnp.pad(w_conv, ((0, kc_pad - kc), (0, 0)))
    b_conv = jnp.tile(raw["conv_b"], l_out)                        # (L*32,)

    # fc1 rows: from PyTorch NCL-flatten (c, l) order to our (l, c) order.
    perm = (jnp.arange(c_out)[None, :] * l_out
            + jnp.arange(l_out)[:, None]).reshape(-1)
    w1 = raw["w1"][perm, :]

    def fold(w, b, s, t):  # eval-mode BN folded into the preceding linear
        return w * s[None, :], b * s + t

    w1, b1 = fold(w1, raw["b1"], raw["s1"], raw["t1"])
    w2, b2 = fold(raw["w2"], raw["b2"], raw["s2"], raw["t2"])
    w3, b3 = fold(raw["w3"], raw["b3"], raw["s3"], raw["t3"])
    w4, b4 = raw["w4"], raw["b4"]

    # Lane-dense classifier: pad N from num_classes up to (a multiple of) 128.
    n_pad = _round_up(max(num_classes, 128), 128)
    w5 = jnp.zeros((raw["w5"].shape[0], n_pad), jnp.float32)
    w5 = w5.at[:, :num_classes].set(raw["w5"])
    b5 = jnp.zeros((n_pad,), jnp.float32).at[:num_classes].set(raw["b5"])

    def w_(w):
        return w.astype(jnp.bfloat16)

    def b_(b):
        return b.reshape(1, -1).astype(jnp.float32)

    return {
        "wc": w_(w_conv), "bc": b_(b_conv),
        "w1": w_(w1), "b1": b_(b1),
        "w2": w_(w2), "b2": b_(b2),
        "w3": w_(w3), "b3": b_(b3),
        "w4": w_(w4), "b4": b_(b4),
        "w5": w_(w5), "b5": b_(b5),
    }


# ----------------------------------------------------------------------------
# Pure-JAX f32 reference with PyTorch semantics (for numerical verification)
# ----------------------------------------------------------------------------
def reference_forward(x, raw):
    B, c_in, L = x.shape
    kern, stride, pad, c_out = 3, 2, 1, 32
    l_out = (L + 2 * pad - kern) // stride + 1
    xp = jnp.pad(x, ((0, 0), (0, 0), (pad, pad)))
    idx = jnp.arange(l_out)[:, None] * stride + jnp.arange(kern)[None, :]
    patches = xp[:, :, idx]                                    # (B, Cin, L_out, K)
    y = jnp.einsum("bclk,ock->bol", patches, raw["conv_w"])
    y = _relu6(y + raw["conv_b"][None, :, None])               # (B, 32, L_out)
    feat = y.reshape(B, c_out * l_out)                         # NCL flatten (c, l)

    def bn(h, s, t):
        return h * s[None, :] + t[None, :]

    h = _relu6(bn(feat @ raw["w1"] + raw["b1"], raw["s1"], raw["t1"]))
    h = _relu6(bn(h @ raw["w2"] + raw["b2"], raw["s2"], raw["t2"]))
    h = _relu6(bn(h @ raw["w3"] + raw["b3"], raw["s3"], raw["t3"]))
    h = _relu6(h @ raw["w4"] + raw["b4"])
    return h @ raw["w5"] + raw["b5"]


# TODO(synk): training-mode BatchNorm1d (batch statistics) and Dropout are
# Identity / unused in this configuration (bn=False, dropout=False, eval BN)
# and are not implemented.

if __name__ == "__main__":
    B, C_IN, LENGTH, NUM_CLASSES = 2, 4, 16, 10

    key = jax.random.PRNGKey(0)
    kx, kp = jax.random.split(key)
    x = jax.random.normal(kx, (B, C_IN, LENGTH), jnp.float32)

    raw = init_raw_params(kp, C_IN, LENGTH, NUM_CLASSES)
    kparams = prepare_kernel_params(raw, C_IN, LENGTH, NUM_CLASSES)

    fwd = jax.jit(functools.partial(simple_cnn_forward, num_classes=NUM_CLASSES))
    logits = fwd(x, kparams)
    jax.block_until_ready(logits)

    assert logits.shape == (B, NUM_CLASSES), logits.shape
    assert logits.dtype == jnp.float32

    # Verify the bf16-matmul kernel against the f32 PyTorch-semantics reference.
    ref = reference_forward(x, raw)
    err = float(jnp.max(jnp.abs(logits - ref)))
    tol = 5e-2 * (1.0 + float(jnp.max(jnp.abs(ref))))
    assert err <= tol, (err, tol)

    print("KERNEL_OK")
</pallas_src>

<mosaic_0001>
module attributes {stable_mosaic.version = 11 : i64} {
  func.func @fused_mlp_kernel(%arg0: i32, %arg1: memref<8x128xbf16, #tpu.memory_space<vmem>>, %arg2: memref<128x256xbf16, #tpu.memory_space<vmem>>, %arg3: memref<1x256xf32, #tpu.memory_space<vmem>>, %arg4: memref<256x1024xbf16, #tpu.memory_space<vmem>>, %arg5: memref<1x1024xf32, #tpu.memory_space<vmem>>, %arg6: memref<1024x512xbf16, #tpu.memory_space<vmem>>, %arg7: memref<1x512xf32, #tpu.memory_space<vmem>>, %arg8: memref<512x256xbf16, #tpu.memory_space<vmem>>, %arg9: memref<1x256xf32, #tpu.memory_space<vmem>>, %arg10: memref<256x128xbf16, #tpu.memory_space<vmem>>, %arg11: memref<1x128xf32, #tpu.memory_space<vmem>>, %arg12: memref<128x128xbf16, #tpu.memory_space<vmem>>, %arg13: memref<1x128xf32, #tpu.memory_space<vmem>>, %arg14: memref<8x128xf32, #tpu.memory_space<vmem>>) attributes {dimension_semantics = [#tpu.dimension_semantics<parallel>], iteration_bounds = array<i64: 1>, scalar_prefetch = 0 : i64, scratch_operands = 0 : i64, tpu.core_type = #tpu.core_type<tc>, window_params = [{transform_indices = @transform_0, window_bounds = array<i64: 8, 128>}, {pipeline_mode = #tpu.pipeline_mode<synchronous>, transform_indices = @transform_1, window_bounds = array<i64: 128, 256>}, {pipeline_mode = #tpu.pipeline_mode<synchronous>, transform_indices = @transform_2, window_bounds = array<i64: 1, 256>}, {pipeline_mode = #tpu.pipeline_mode<synchronous>, transform_indices = @transform_3, window_bounds = array<i64: 256, 1024>}, {pipeline_mode = #tpu.pipeline_mode<synchronous>, transform_indices = @transform_4, window_bounds = array<i64: 1, 1024>}, {pipeline_mode = #tpu.pipeline_mode<synchronous>, transform_indices = @transform_5, window_bounds = array<i64: 1024, 512>}, {pipeline_mode = #tpu.pipeline_mode<synchronous>, transform_indices = @transform_6, window_bounds = array<i64: 1, 512>}, {pipeline_mode = #tpu.pipeline_mode<synchronous>, transform_indices = @transform_7, window_bounds = array<i64: 512, 256>}, {pipeline_mode = #tpu.pipeline_mode<synchronous>, transform_indices = @transform_8, window_bounds = array<i64: 1, 256>}, {pipeline_mode = #tpu.pipeline_mode<synchronous>, transform_indices = @transform_9, window_bounds = array<i64: 256, 128>}, {pipeline_mode = #tpu.pipeline_mode<synchronous>, transform_indices = @transform_10, window_bounds = array<i64: 1, 128>}, {pipeline_mode = #tpu.pipeline_mode<synchronous>, transform_indices = @transform_11, window_bounds = array<i64: 128, 128>}, {pipeline_mode = #tpu.pipeline_mode<synchronous>, transform_indices = @transform_12, window_bounds = array<i64: 1, 128>}, {transform_indices = @transform_13, window_bounds = array<i64: 8, 128>}]} {
    %c0 = arith.constant 0 : index
    %c0_0 = arith.constant 0 : index
    %0 = vector.load %arg1[%c0, %c0_0] : memref<8x128xbf16, #tpu.memory_space<vmem>>, vector<8x128xbf16>
    %c0_1 = arith.constant 0 : index
    %c0_2 = arith.constant 0 : index
    %1 = vector.load %arg2[%c0_1, %c0_2] : memref<128x256xbf16, #tpu.memory_space<vmem>>, vector<128x256xbf16>
    %cst = arith.constant dense<0.000000e+00> : vector<8x256xf32>
    %2 = tpu.matmul %0, %1, %cst {dimension_numbers = #tpu.dot_dimension_numbers<[1], [0], [0], [1], [0, 0, 1, 1], [], []>} : vector<8x128xbf16>, vector<128x256xbf16>, vector<8x256xf32> -> vector<8x256xf32>
    %c0_3 = arith.constant 0 : index
    %c0_4 = arith.constant 0 : index
    %3 = vector.load %arg3[%c0_3, %c0_4] : memref<1x256xf32, #tpu.memory_space<vmem>>, vector<1x256xf32>
    %4 = vector.broadcast %3 : vector<1x256xf32> to vector<8x256xf32>
    %5 = arith.addf %2, %4 : vector<8x256xf32>
    %cst_5 = arith.constant 0.000000e+00 : f32
    %6 = vector.broadcast %cst_5 : f32 to vector<8x256xf32>
    %7 = arith.maximumf %5, %6 : vector<8x256xf32>
    %cst_6 = arith.constant 6.000000e+00 : f32
    %8 = vector.broadcast %cst_6 : f32 to vector<8x256xf32>
    %9 = arith.minimumf %7, %8 : vector<8x256xf32>
    %10 = arith.truncf %9 : vector<8x256xf32> to vector<8x256xbf16>
    %c0_7 = arith.constant 0 : index
    %c0_8 = arith.constant 0 : index
    %11 = vector.load %arg4[%c0_7, %c0_8] : memref<256x1024xbf16, #tpu.memory_space<vmem>>, vector<256x1024xbf16>
    %cst_9 = arith.constant dense<0.000000e+00> : vector<8x1024xf32>
    %12 = tpu.matmul %10, %11, %cst_9 {dimension_numbers = #tpu.dot_dimension_numbers<[1], [0], [0], [1], [0, 0, 1, 1], [], []>} : vector<8x256xbf16>, vector<256x1024xbf16>, vector<8x1024xf32> -> vector<8x1024xf32>
    %c0_10 = arith.constant 0 : index
    %c0_11 = arith.constant 0 : index
    %13 = vector.load %arg5[%c0_10, %c0_11] : memref<1x1024xf32, #tpu.memory_space<vmem>>, vector<1x1024xf32>
    %14 = vector.broadcast %13 : vector<1x1024xf32> to vector<8x1024xf32>
    %15 = arith.addf %12, %14 : vector<8x1024xf32>
    %cst_12 = arith.constant 0.000000e+00 : f32
    %16 = vector.broadcast %cst_12 : f32 to vector<8x1024xf32>
    %17 = arith.maximumf %15, %16 : vector<8x1024xf32>
    %cst_13 = arith.constant 6.000000e+00 : f32
    %18 = vector.broadcast %cst_13 : f32 to vector<8x1024xf32>
    %19 = arith.minimumf %17, %18 : vector<8x1024xf32>
    %20 = arith.truncf %19 : vector<8x1024xf32> to vector<8x1024xbf16>
    %c0_14 = arith.constant 0 : index
    %c0_15 = arith.constant 0 : index
    %21 = vector.load %arg6[%c0_14, %c0_15] : memref<1024x512xbf16, #tpu.memory_space<vmem>>, vector<1024x512xbf16>
    %cst_16 = arith.constant dense<0.000000e+00> : vector<8x512xf32>
    %22 = tpu.matmul %20, %21, %cst_16 {dimension_numbers = #tpu.dot_dimension_numbers<[1], [0], [0], [1], [0, 0, 1, 1], [], []>} : vector<8x1024xbf16>, vector<1024x512xbf16>, vector<8x512xf32> -> vector<8x512xf32>
    %c0_17 = arith.constant 0 : index
    %c0_18 = arith.constant 0 : index
    %23 = vector.load %arg7[%c0_17, %c0_18] : memref<1x512xf32, #tpu.memory_space<vmem>>, vector<1x512xf32>
    %24 = vector.broadcast %23 : vector<1x512xf32> to vector<8x512xf32>
    %25 = arith.addf %22, %24 : vector<8x512xf32>
    %cst_19 = arith.constant 0.000000e+00 : f32
    %26 = vector.broadcast %cst_19 : f32 to vector<8x512xf32>
    %27 = arith.maximumf %25, %26 : vector<8x512xf32>
    %cst_20 = arith.constant 6.000000e+00 : f32
    %28 = vector.broadcast %cst_20 : f32 to vector<8x512xf32>
    %29 = arith.minimumf %27, %28 : vector<8x512xf32>
    %30 = arith.truncf %29 : vector<8x512xf32> to vector<8x512xbf16>
    %c0_21 = arith.constant 0 : index
    %c0_22 = arith.constant 0 : index
    %31 = vector.load %arg8[%c0_21, %c0_22] : memref<512x256xbf16, #tpu.memory_space<vmem>>, vector<512x256xbf16>
    %cst_23 = arith.constant dense<0.000000e+00> : vector<8x256xf32>
    %32 = tpu.matmul %30, %31, %cst_23 {dimension_numbers = #tpu.dot_dimension_numbers<[1], [0], [0], [1], [0, 0, 1, 1], [], []>} : vector<8x512xbf16>, vector<512x256xbf16>, vector<8x256xf32> -> vector<8x256xf32>
    %c0_24 = arith.constant 0 : index
    %c0_25 = arith.constant 0 : index
    %33 = vector.load %arg9[%c0_24, %c0_25] : memref<1x256xf32, #tpu.memory_space<vmem>>, vector<1x256xf32>
    %34 = vector.broadcast %33 : vector<1x256xf32> to vector<8x256xf32>
    %35 = arith.addf %32, %34 : vector<8x256xf32>
    %cst_26 = arith.constant 0.000000e+00 : f32
    %36 = vector.broadcast %cst_26 : f32 to vector<8x256xf32>
    %37 = arith.maximumf %35, %36 : vector<8x256xf32>
    %cst_27 = arith.constant 6.000000e+00 : f32
    %38 = vector.broadcast %cst_27 : f32 to vector<8x256xf32>
    %39 = arith.minimumf %37, %38 : vector<8x256xf32>
    %40 = arith.truncf %39 : vector<8x256xf32> to vector<8x256xbf16>
    %c0_28 = arith.constant 0 : index
    %c0_29 = arith.constant 0 : index
    %41 = vector.load %arg10[%c0_28, %c0_29] : memref<256x128xbf16, #tpu.memory_space<vmem>>, vector<256x128xbf16>
    %cst_30 = arith.constant dense<0.000000e+00> : vector<8x128xf32>
    %42 = tpu.matmul %40, %41, %cst_30 {dimension_numbers = #tpu.dot_dimension_numbers<[1], [0], [0], [1], [0, 0, 1, 1], [], []>} : vector<8x256xbf16>, vector<256x128xbf16>, vector<8x128xf32> -> vector<8x128xf32>
    %c0_31 = arith.constant 0 : index
    %c0_32 = arith.constant 0 : index
    %43 = vector.load %arg11[%c0_31, %c0_32] : memref<1x128xf32, #tpu.memory_space<vmem>>, vector<1x128xf32>
    %44 = vector.broadcast %43 : vector<1x128xf32> to vector<8x128xf32>
    %45 = arith.addf %42, %44 : vector<8x128xf32>
    %cst_33 = arith.constant 0.000000e+00 : f32
    %46 = vector.broadcast %cst_33 : f32 to vector<8x128xf32>
    %47 = arith.maximumf %45, %46 : vector<8x128xf32>
    %cst_34 = arith.constant 6.000000e+00 : f32
    %48 = vector.broadcast %cst_34 : f32 to vector<8x128xf32>
    %49 = arith.minimumf %47, %48 : vector<8x128xf32>
    %50 = arith.truncf %49 : vector<8x128xf32> to vector<8x128xbf16>
    %c0_35 = arith.constant 0 : index
    %c0_36 = arith.constant 0 : index
    %51 = vector.load %arg12[%c0_35, %c0_36] : memref<128x128xbf16, #tpu.memory_space<vmem>>, vector<128x128xbf16>
    %cst_37 = arith.constant dense<0.000000e+00> : vector<8x128xf32>
    %52 = tpu.matmul %50, %51, %cst_37 {dimension_numbers = #tpu.dot_dimension_numbers<[1], [0], [0], [1], [0, 0, 1, 1], [], []>} : vector<8x128xbf16>, vector<128x128xbf16>, vector<8x128xf32> -> vector<8x128xf32>
    %c0_38 = arith.constant 0 : index
    %c0_39 = arith.constant 0 : index
    %53 = vector.load %arg13[%c0_38, %c0_39] : memref<1x128xf32, #tpu.memory_space<vmem>>, vector<1x128xf32>
    %54 = vector.broadcast %53 : vector<1x128xf32> to vector<8x128xf32>
    %55 = arith.addf %52, %54 : vector<8x128xf32>
    %c0_40 = arith.constant 0 : index
    %c0_41 = arith.constant 0 : index
    %56 = vector.load %arg14[%c0_40, %c0_41] : memref<8x128xf32, #tpu.memory_space<vmem>>, vector<8x128xf32>
    tpu.vector_store %arg14[%c0_40, %c0_41], %55 {strides = array<i32>} : memref<8x128xf32, #tpu.memory_space<vmem>>, vector<8x128xf32>,
    return
  }
  func.func @transform_0(%arg0: i32) -> (i32, i32) {
    %c0_i32 = arith.constant 0 : i32
    %c0_i32_0 = arith.constant 0 : i32
    return %arg0, %c0_i32 : i32, i32
  }
  func.func @transform_1(%arg0: i32) -> (i32, i32) {
    %c0_i32 = arith.constant 0 : i32
    %c0_i32_0 = arith.constant 0 : i32
    %c0_i32_1 = arith.constant 0 : i32
    return %c0_i32, %c0_i32_0 : i32, i32
  }
  func.func @transform_2(%arg0: i32) -> (i32, i32) {
    %c0_i32 = arith.constant 0 : i32
    %c0_i32_0 = arith.constant 0 : i32
    %c0_i32_1 = arith.constant 0 : i32
    return %c0_i32, %c0_i32_0 : i32, i32
  }
  func.func @transform_3(%arg0: i32) -> (i32, i32) {
    %c0_i32 = arith.constant 0 : i32
    %c0_i32_0 = arith.constant 0 : i32
    %c0_i32_1 = arith.constant 0 : i32
    return %c0_i32, %c0_i32_0 : i32, i32
  }
  func.func @transform_4(%arg0: i32) -> (i32, i32) {
    %c0_i32 = arith.constant 0 : i32
    %c0_i32_0 = arith.constant 0 : i32
    %c0_i32_1 = arith.constant 0 : i32
    return %c0_i32, %c0_i32_0 : i32, i32
  }
  func.func @transform_5(%arg0: i32) -> (i32, i32) {
    %c0_i32 = arith.constant 0 : i32
    %c0_i32_0 = arith.constant 0 : i32
    %c0_i32_1 = arith.constant 0 : i32
    return %c0_i32, %c0_i32_0 : i32, i32
  }
  func.func @transform_6(%arg0: i32) -> (i32, i32) {
    %c0_i32 = arith.constant 0 : i32
    %c0_i32_0 = arith.constant 0 : i32
    %c0_i32_1 = arith.constant 0 : i32
    return %c0_i32, %c0_i32_0 : i32, i32
  }
  func.func @transform_7(%arg0: i32) -> (i32, i32) {
    %c0_i32 = arith.constant 0 : i32
    %c0_i32_0 = arith.constant 0 : i32
    %c0_i32_1 = arith.constant 0 : i32
    return %c0_i32, %c0_i32_0 : i32, i32
  }
  func.func @transform_8(%arg0: i32) -> (i32, i32) {
    %c0_i32 = arith.constant 0 : i32
    %c0_i32_0 = arith.constant 0 : i32
    %c0_i32_1 = arith.constant 0 : i32
    return %c0_i32, %c0_i32_0 : i32, i32
  }
  func.func @transform_9(%arg0: i32) -> (i32, i32) {
    %c0_i32 = arith.constant 0 : i32
    %c0_i32_0 = arith.constant 0 : i32
    %c0_i32_1 = arith.constant 0 : i32
    return %c0_i32, %c0_i32_0 : i32, i32
  }
  func.func @transform_10(%arg0: i32) -> (i32, i32) {
    %c0_i32 = arith.constant 0 : i32
    %c0_i32_0 = arith.constant 0 : i32
    %c0_i32_1 = arith.constant 0 : i32
    return %c0_i32, %c0_i32_0 : i32, i32
  }
  func.func @transform_11(%arg0: i32) -> (i32, i32) {
    %c0_i32 = arith.constant 0 : i32
    %c0_i32_0 = arith.constant 0 : i32
    %c0_i32_1 = arith.constant 0 : i32
    return %c0_i32, %c0_i32_0 : i32, i32
  }
  func.func @transform_12(%arg0: i32) -> (i32, i32) {
    %c0_i32 = arith.constant 0 : i32
    %c0_i32_0 = arith.constant 0 : i32
    %c0_i32_1 = arith.constant 0 : i32
    return %c0_i32, %c0_i32_0 : i32, i32
  }
  func.func @transform_13(%arg0: i32) -> (i32, i32) {
    %c0_i32 = arith.constant 0 : i32
    %c0_i32_0 = arith.constant 0 : i32
    return %arg0, %c0_i32 : i32, i32
  }
}

</mosaic_0001>

<llo_original>
// kernel: simple_cnn_forward.1
$region0: #{simple_cnn_forward.1}
  #allocation0 [shape = 'u32[]', space=smem, size = 0x4, offset = 0x4, fixed_abs, tag = 'smem constant byte address 0x4 - core index']
  #allocation1 [shape = 'u32[144,128]{1,0:T(1,128)}', space=vmem, size = 0x12000, scoped, tag = 'internal scratch']
  %s0 = inlined_call_operand.vmem [shape: bf16[8,128], index: 0, kind: input, shape index: {}]
  %s1 = inlined_call_operand.vmem [shape: bf16[128,256], index: 1, kind: input, shape index: {}]
  %s2 = inlined_call_operand.vmem [shape: f32[1,256], index: 2, kind: input, shape index: {}]
  %s3 = inlined_call_operand.hbm [shape: bf16[256,1024], index: 3, kind: input, shape index: {}]
  %s4 = inlined_call_operand.vmem [shape: f32[1,1024], index: 4, kind: input, shape index: {}]
  %s5 = inlined_call_operand.hbm [shape: bf16[1024,512], index: 5, kind: input, shape index: {}]
  %s6 = inlined_call_operand.hbm [shape: f32[1,512], index: 6, kind: input, shape index: {}]
  %s7 = inlined_call_operand.hbm [shape: bf16[512,256], index: 7, kind: input, shape index: {}]
  %s8 = inlined_call_operand.vmem [shape: f32[1,256], index: 8, kind: input, shape index: {}]
  %s9 = inlined_call_operand.vmem [shape: bf16[256,128], index: 9, kind: input, shape index: {}]
  %s10 = inlined_call_operand.vmem [shape: f32[1,128], index: 10, kind: input, shape index: {}]
  %s11 = inlined_call_operand.vmem [shape: bf16[128,128], index: 11, kind: input, shape index: {}]
  %s12 = inlined_call_operand.vmem [shape: f32[1,128], index: 12, kind: input, shape index: {}]
  %s13 = inlined_call_operand.vmem [shape: f32[8,128], index: 13, kind: output, shape index: {}]
  %s14 = sld [smem:[#allocation0]]
  $region78: #{simple_cnn_forward.1} parent=0
    _
  %s16 = ssub.s32 1, %s14
  %s17 = scalar_select 0, %s16, %s14
  $region1: #{simple_cnn_forward.1} parent=0
    #allocation2 [shape = 'u8[524288]{0}', space=vmem, size = 0x80000, scoped, tag = 'input window, operand 3, single buffered']
    #allocation3 [shape = 's32[1]{0}', space=sflag, size = 0x4, scoped, tag = 'scoped memory for simple_cnn_forward.1']
    #allocation4 [shape = 'u8[1048576]{0}', space=vmem, size = 0x100000, scoped, tag = 'input window, operand 5, single buffered']
    #allocation5 [shape = 's32[1]{0}', space=sflag, size = 0x4, scoped, tag = 'scoped memory for simple_cnn_forward.1']
    #allocation6 [shape = 'u8[2048]{0}', space=vmem, size = 0x800, scoped, tag = 'input window, operand 6, single buffered']
    #allocation7 [shape = 'u8[262144]{0}', space=vmem, size = 0x40000, scoped, tag = 'input window, operand 7, single buffered']
    #allocation8 [shape = 's32[1]{0}', space=sflag, size = 0x4, scoped, tag = 'scoped memory for simple_cnn_forward.1']
    %18 = vsyncpa [#allocation3], 0
    %19 = vsyncpa [#allocation5], 0
    %20 = vsyncpa [#allocation8], 0
    // Predicated region
    $region2: #{simple_cnn_forward.1} parent=1 // pred_check
      _
    $region3: #{simple_cnn_forward.1} parent=1 // pred_check_branch
      %22 = sbr.rel (0) target = $region5
    $region4: #{simple_cnn_forward.1} parent=1 // pred_region
      _
    $region5: #{simple_cnn_forward.1} parent=1 // pred_fallthru
      _
    // Predicated region
    $region6: #{simple_cnn_forward.1} parent=1 // pred_check
      _
    $region7: #{simple_cnn_forward.1} parent=1 // pred_check_branch
      %24 = sbr.rel (0) target = $region9
    $region8: #{simple_cnn_forward.1} parent=1 // pred_region
      _
    $region9: #{simple_cnn_forward.1} parent=1 // pred_fallthru
      _
    // Predicated region
    $region10: #{simple_cnn_forward.1} parent=1 // pred_check
      _
    $region11: #{simple_cnn_forward.1} parent=1 // pred_check_branch
      %26 = sbr.rel (0) target = $region13
    $region12: #{simple_cnn_forward.1} parent=1 // pred_region
      _
    $region13: #{simple_cnn_forward.1} parent=1 // pred_fallthru
      _
    // Predicated region
    $region14: #{simple_cnn_forward.1} parent=1 // pred_check
      _
    $region15: #{simple_cnn_forward.1} parent=1 // pred_check_branch
      %28 = sbr.rel (0) target = $region17
    $region16: #{simple_cnn_forward.1} parent=1 // pred_region
      %s30 = ssub.s32 16384, 16384
      %31 = vsyncadd [#allocation3], %s30
      %s32 = sshll.u32 [#allocation2], 4
      %s33 = int_to_ptr.vmem [resolvable:$true] %s32
      %38 = dma.hbm_to_vmem [thread:$0]  %s3, 16384, %s33, [#allocation3], 512, 512, 32
    $region17: #{simple_cnn_forward.1} parent=1 // pred_fallthru
      _
    // Predicated region
    $region18: #{simple_cnn_forward.1} parent=1 // pred_check
      _
    $region19: #{simple_cnn_forward.1} parent=1 // pred_check_branch
      %40 = sbr.rel (0) target = $region21
    $region20: #{simple_cnn_forward.1} parent=1 // pred_region
      _
    $region21: #{simple_cnn_forward.1} parent=1 // pred_fallthru
      _
    // Predicated region
    $region22: #{simple_cnn_forward.1} parent=1 // pred_check
      _
    $region23: #{simple_cnn_forward.1} parent=1 // pred_check_branch
      %42 = sbr.rel (0) target = $region25
    $region24: #{simple_cnn_forward.1} parent=1 // pred_region
      %s44 = ssub.s32 32768, 32768
      %45 = vsyncadd [#allocation5], %s44
      %s46 = sshll.u32 [#allocation4], 4
      %s47 = int_to_ptr.vmem [resolvable:$true] %s46
      %52 = dma.hbm_to_vmem [thread:$0]  %s5, 32768, %s47, [#allocation5], 256, 256, 16
    $region25: #{simple_cnn_forward.1} parent=1 // pred_fallthru
      _
    // Predicated region
    $region26: #{simple_cnn_forward.1} parent=1 // pred_check
      _
    $region27: #{simple_cnn_forward.1} parent=1 // pred_check_branch
      %54 = sbr.rel (0) target = $region29
    $region28: #{simple_cnn_forward.1} parent=1 // pred_region
      %s56 = ssub.s32 64, 64
      %57 = vsyncadd [#allocation5], %s56
      %s59 = sshll.u32 [#allocation6], 4
      %s60 = int_to_ptr.vmem [resolvable:$true] %s59
      %62 = dma.hbm_to_vmem [thread:$0]  %s6, 64, %s60, [#allocation5]
    $region29: #{simple_cnn_forward.1} parent=1 // pred_fallthru
      _
    // Predicated region
    $region30: #{simple_cnn_forward.1} parent=1 // pred_check
      _
    $region31: #{simple_cnn_forward.1} parent=1 // pred_check_branch
      %64 = sbr.rel (0) target = $region33
    $region32: #{simple_cnn_forward.1} parent=1 // pred_region
      %s66 = ssub.s32 8192, 8192
      %67 = vsyncadd [#allocation8], %s66
      %s68 = sshll.u32 [#allocation7], 4
      %s69 = int_to_ptr.vmem [resolvable:$true] %s68
      %74 = dma.hbm_to_vmem [thread:$0]  %s7, 8192, %s69, [#allocation8], 128, 128, 8
    $region33: #{simple_cnn_forward.1} parent=1 // pred_fallthru
      _
    // Predicated region
    $region34: #{simple_cnn_forward.1} parent=1 // pred_check
      _
    $region35: #{simple_cnn_forward.1} parent=1 // pred_check_branch
      %76 = sbr.rel (0) target = $region37
    $region36: #{simple_cnn_forward.1} parent=1 // pred_region
      _
    $region37: #{simple_cnn_forward.1} parent=1 // pred_fallthru
      _
    // Predicated region
    $region38: #{simple_cnn_forward.1} parent=1 // pred_check
      _
    $region39: #{simple_cnn_forward.1} parent=1 // pred_check_branch
      %78 = sbr.rel (0) target = $region41
    $region40: #{simple_cnn_forward.1} parent=1 // pred_region
      _
    $region41: #{simple_cnn_forward.1} parent=1 // pred_fallthru
      _
    // Predicated region
    $region42: #{simple_cnn_forward.1} parent=1 // pred_check
      _
    $region43: #{simple_cnn_forward.1} parent=1 // pred_check_branch
      %80 = sbr.rel (0) target = $region45
    $region44: #{simple_cnn_forward.1} parent=1 // pred_region
      _
    $region45: #{simple_cnn_forward.1} parent=1 // pred_fallthru
      _
    // Predicated region
    $region46: #{simple_cnn_forward.1} parent=1 // pred_check
      _
    $region47: #{simple_cnn_forward.1} parent=1 // pred_check_branch
      %82 = sbr.rel (0) target = $region49
    $region48: #{simple_cnn_forward.1} parent=1 // pred_region
      _
    $region49: #{simple_cnn_forward.1} parent=1 // pred_fallthru
      _
    // Predicated region
    $region50: #{simple_cnn_forward.1} parent=1 // pred_check
      _
    $region51: #{simple_cnn_forward.1} parent=1 // pred_check_branch
      %84 = sbr.rel (0) target = $region53
    $region52: #{simple_cnn_forward.1} parent=1 // pred_region
      _
    $region53: #{simple_cnn_forward.1} parent=1 // pred_fallthru
      _
    // Predicated region
    $region54: #{simple_cnn_forward.1} parent=1 // pred_check
      _
    $region55: #{simple_cnn_forward.1} parent=1 // pred_check_branch
      %86 = sbr.rel (0) target = $region57
    $region56: #{simple_cnn_forward.1} parent=1 // pred_region
      %87 = dma.done [#allocation3], 16384
    $region57: #{simple_cnn_forward.1} parent=1 // pred_fallthru
      _
    // Predicated region
    $region58: #{simple_cnn_forward.1} parent=1 // pred_check
      _
    $region59: #{simple_cnn_forward.1} parent=1 // pred_check_branch
      %89 = sbr.rel (0) target = $region61
    $region60: #{simple_cnn_forward.1} parent=1 // pred_region
      %90 = dma.done [#allocation5], 32768
    $region61: #{simple_cnn_forward.1} parent=1 // pred_fallthru
      _
    // Predicated region
    $region62: #{simple_cnn_forward.1} parent=1 // pred_check
      _
    $region63: #{simple_cnn_forward.1} parent=1 // pred_check_branch
      %92 = sbr.rel (0) target = $region65
    $region64: #{simple_cnn_forward.1} parent=1 // pred_region
      %93 = dma.done [#allocation5], 64
    $region65: #{simple_cnn_forward.1} parent=1 // pred_fallthru
      _
    // Predicated region
    $region66: #{simple_cnn_forward.1} parent=1 // pred_check
      _
    $region67: #{simple_cnn_forward.1} parent=1 // pred_check_branch
      %95 = sbr.rel (0) target = $region69
    $region68: #{simple_cnn_forward.1} parent=1 // pred_region
      %96 = dma.done [#allocation8], 8192
    $region69: #{simple_cnn_forward.1} parent=1 // pred_fallthru
      _
    %v98 = vld [vmem:[%s0] sm:$0xf]
    %v99 = vld [vmem:[%s1] sm:$0xff]
    %v100 = vld [vmem:[%s1 + $0x8] sm:$0xff]
    %v101 = vld [vmem:[%s1 + $0x10] sm:$0xff]
    %v102 = vld [vmem:[%s1 + $0x18] sm:$0xff]
    %v103 = vld [vmem:[%s1 + $0x20] sm:$0xff]
    %v104 = vld [vmem:[%s1 + $0x28] sm:$0xff]
    %v105 = vld [vmem:[%s1 + $0x30] sm:$0xff]
    %v106 = vld [vmem:[%s1 + $0x38] sm:$0xff]
    %v107 = vld [vmem:[%s1 + $0x40] sm:$0xff]
    %v108 = vld [vmem:[%s1 + $0x48] sm:$0xff]
    %v109 = vld [vmem:[%s1 + $0x50] sm:$0xff]
    %v110 = vld [vmem:[%s1 + $0x58] sm:$0xff]
    %v111 = vld [vmem:[%s1 + $0x60] sm:$0xff]
    %v112 = vld [vmem:[%s1 + $0x68] sm:$0xff]
    %v113 = vld [vmem:[%s1 + $0x70] sm:$0xff]
    %v114 = vld [vmem:[%s1 + $0x78] sm:$0xff]
    %v115 = vld [vmem:[%s2] sm:$0x3]
    %v117 = vlaneseq
    %v118 = vshrl.u32 %v117, 7
    %v119 = vsub.s32 0, %v118
    %v120 = vrot.slane %v115, %v119
    %v121 = vlaneseq
    %v122 = vshrl.u32 %v121, 7
    %v123 = vsub.s32 1, %v122
    %v124 = vrot.slane %v115, %v123
    %v143 = vunpack.c.l.b16 %v99
    %v144 = vunpack.c.h.b16 %v99
    %v145 = vunpack.c.l.b16 %v100
    %v146 = vunpack.c.h.b16 %v100
    %v147 = vunpack.c.l.b16 %v101
    %v148 = vunpack.c.h.b16 %v101
    %v149 = vunpack.c.l.b16 %v102
    %v150 = vunpack.c.h.b16 %v102
    %v151 = vunpack.c.l.b16 %v103
    %v152 = vunpack.c.h.b16 %v103
    %v153 = vunpack.c.l.b16 %v104
    %v154 = vunpack.c.h.b16 %v104
    %v155 = vunpack.c.l.b16 %v105
    %v156 = vunpack.c.h.b16 %v105
    %v157 = vunpack.c.l.b16 %v106
    %v158 = vunpack.c.h.b16 %v106
    %v159 = vunpack.c.l.b16 %v107
    %v160 = vunpack.c.h.b16 %v107
    %v161 = vunpack.c.l.b16 %v108
    %v162 = vunpack.c.h.b16 %v108
    %v163 = vunpack.c.l.b16 %v109
    %v164 = vunpack.c.h.b16 %v109
    %v165 = vunpack.c.l.b16 %v110
    %v166 = vunpack.c.h.b16 %v110
    %v167 = vunpack.c.l.b16 %v111
    %v168 = vunpack.c.h.b16 %v111
    %v169 = vunpack.c.l.b16 %v112
    %v170 = vunpack.c.h.b16 %v112
    %v171 = vunpack.c.l.b16 %v113
    %v172 = vunpack.c.h.b16 %v113
    %v173 = vunpack.c.l.b16 %v114
    %v174 = vunpack.c.h.b16 %v114
    %v175 = vpack.c.b16 %v145, %v143
    %v176 = vpack.c.b16 %v146, %v144
    %v177 = vpack.c.b16 %v149, %v147
    %v178 = vpack.c.b16 %v150, %v148
    %v179 = vpack.c.b16 %v153, %v151
    %v180 = vpack.c.b16 %v154, %v152
    %v181 = vpack.c.b16 %v157, %v155
    %v182 = vpack.c.b16 %v158, %v156
    %v183 = vpack.c.b16 %v161, %v159
    %v184 = vpack.c.b16 %v162, %v160
    %v185 = vpack.c.b16 %v165, %v163
    %v186 = vpack.c.b16 %v166, %v164
    %v187 = vpack.c.b16 %v169, %v167
    %v188 = vpack.c.b16 %v170, %v168
    %v189 = vpack.c.b16 %v173, %v171
    %v190 = vpack.c.b16 %v174, %v172
    %207 = vmatprep.subr.bf16.mxu0 %v190
    %208 = vmatpush1.bf16.msra.mxu0 %v189
    %209 = vmatprep.subr.bf16.mxu0 %v188
    %210 = vmatpush1.bf16.msra.mxu0 %v187
    %211 = vmatprep.subr.bf16.mxu0 %v186
    %212 = vmatpush1.bf16.msra.mxu0 %v185
    %213 = vmatprep.subr.bf16.mxu0 %v184
    %214 = vmatpush1.bf16.msra.mxu0 %v183
    %215 = vmatprep.subr.bf16.mxu0 %v182
    %216 = vmatpush1.bf16.msra.mxu0 %v181
    %217 = vmatprep.subr.bf16.mxu0 %v180
    %218 = vmatpush1.bf16.msra.mxu0 %v179
    %219 = vmatprep.subr.bf16.mxu0 %v178
    %220 = vmatpush1.bf16.msra.mxu0 %v177
    %221 = vmatprep.subr.bf16.mxu0 %v176
    %222 = vmatpush1.bf16.msra.mxu0 %v175
    %223 = vmatprep.subr.bf16.mxu0 0
    %224 = vmatpush2.bf16.msra.mxu0 0
    %225 = vmatprep.subr.bf16.mxu0 0
    %226 = vmatpush2.bf16.msra.mxu0 0
    %227 = vmatprep.subr.bf16.mxu0 0
    %228 = vmatpush2.bf16.msra.mxu0 0
    %229 = vmatprep.subr.bf16.mxu0 0
    %230 = vmatpush2.bf16.msra.mxu0 0
    %231 = vmatprep.subr.bf16.mxu0 0
    %232 = vmatpush2.bf16.msra.mxu0 0
    %233 = vmatprep.subr.bf16.mxu0 0
    %234 = vmatpush2.bf16.msra.mxu0 0
    %235 = vmatprep.subr.bf16.mxu0 0
    %236 = vmatpush2.bf16.msra.mxu0 0
    %237 = vmatprep.subr.bf16.mxu0 0
    %238 = vmatpush2.bf16.msra.mxu0 0
    %239 = vmatprep.mubr.bf16.mxu0 0
    %240 = vmatmul.mubr.bf16.gmra.mxu0 %v98
    %v241 = vpop.f32.mrf.mxu0
    %v242 = vadd.f32 %v120, %v241
    %v243 = vpop.f32.mrf.mxu0
    %v244 = vadd.f32 %v124, %v243
    %v245 = vpop.f32.mrf.mxu0
    %v246 = vpop.f32.mrf.mxu0
    %247 = vdwg.mxu0
    %v248 = vmax.f32 %v242, 0.0
    %v249 = vmax.f32 %v244, 0.0
    %v250 = vmin.f32 %v248, 6.0
    %v251 = vmin.f32 %v249, 6.0
    %v252 = vpack.c.bf16 %v250, %v250
    %v253 = vpack.c.bf16 %v251, %v251
    %v254 = vld [vmem:[#allocation2] sm:$0xff]
    %v255 = vld [vmem:[#allocation2 + $0x8] sm:$0xff]
    %v256 = vld [vmem:[#allocation2 + $0x10] sm:$0xff]
    %v257 = vld [vmem:[#allocation2 + $0x18] sm:$0xff]
    %v258 = vld [vmem:[#allocation2 + $0x20] sm:$0xff]
    %v259 = vld [vmem:[#allocation2 + $0x28] sm:$0xff]
    %v260 = vld [vmem:[#allocation2 + $0x30] sm:$0xff]
    %v261 = vld [vmem:[#allocation2 + $0x38] sm:$0xff]
    %v262 = vld [vmem:[#allocation2 + $0x40] sm:$0xff]
    %v263 = vld [vmem:[#allocation2 + $0x48] sm:$0xff]
    %v264 = vld [vmem:[#allocation2 + $0x50] sm:$0xff]
    %v265 = vld [vmem:[#allocation2 + $0x58] sm:$0xff]
    %v266 = vld [vmem:[#allocation2 + $0x60] sm:$0xff]
    %v267 = vld [vmem:[#allocation2 + $0x68] sm:$0xff]
    %v268 = vld [vmem:[#allocation2 + $0x70] sm:$0xff]
    %v269 = vld [vmem:[#allocation2 + $0x78] sm:$0xff]
    %v270 = vld [vmem:[#allocation2 + $0x80] sm:$0xff]
    %v271 = vld [vmem:[#allocation2 + $0x88] sm:$0xff]
    %v272 = vld [vmem:[#allocation2 + $0x90] sm:$0xff]
    %v273 = vld [vmem:[#allocation2 + $0x98] sm:$0xff]
    %v274 = vld [vmem:[#allocation2 + $0xa0] sm:$0xff]
    %v275 = vld [vmem:[#allocation2 + $0xa8] sm:$0xff]
    %v276 = vld [vmem:[#allocation2 + $0xb0] sm:$0xff]
    %v277 = vld [vmem:[#allocation2 + $0xb8] sm:$0xff]
    %v278 = vld [vmem:[#allocation2 + $0xc0] sm:$0xff]
    %v279 = vld [vmem:[#allocation2 + $0xc8] sm:$0xff]
    %v280 = vld [vmem:[#allocation2 + $0xd0] sm:$0xff]
    %v281 = vld [vmem:[#allocation2 + $0xd8] sm:$0xff]
    %v282 = vld [vmem:[#allocation2 + $0xe0] sm:$0xff]
    %v283 = vld [vmem:[#allocation2 + $0xe8] sm:$0xff]
    %v284 = vld [vmem:[#allocation2 + $0xf0] sm:$0xff]
    %v285 = vld [vmem:[#allocation2 + $0xf8] sm:$0xff]
    %v286 = vld [vmem:[#allocation2 + $0x100] sm:$0xff]
    %v287 = vld [vmem:[#allocation2 + $0x108] sm:$0xff]
    %v288 = vld [vmem:[#allocation2 + $0x110] sm:$0xff]
    %v289 = vld [vmem:[#allocation2 + $0x118] sm:$0xff]
    %v290 = vld [vmem:[#allocation2 + $0x120] sm:$0xff]
    %v291 = vld [vmem:[#allocation2 + $0x128] sm:$0xff]
    %v292 = vld [vmem:[#allocation2 + $0x130] sm:$0xff]
    %v293 = vld [vmem:[#allocation2 + $0x138] sm:$0xff]
    %v294 = vld [vmem:[#allocation2 + $0x140] sm:$0xff]
    %v295 = vld [vmem:[#allocation2 + $0x148] sm:$0xff]
    %v296 = vld [vmem:[#allocation2 + $0x150] sm:$0xff]
    %v297 = vld [vmem:[#allocation2 + $0x158] sm:$0xff]
    %v298 = vld [vmem:[#allocation2 + $0x160] sm:$0xff]
    %v299 = vld [vmem:[#allocation2 + $0x168] sm:$0xff]
    %v300 = vld [vmem:[#allocation2 + $0x170] sm:$0xff]
    %v301 = vld [vmem:[#allocation2 + $0x178] sm:$0xff]
    %v302 = vld [vmem:[#allocation2 + $0x180] sm:$0xff]
    %v303 = vld [vmem:[#allocation2 + $0x188] sm:$0xff]
    %v304 = vld [vmem:[#allocation2 + $0x190] sm:$0xff]
    %v305 = vld [vmem:[#allocation2 + $0x198] sm:$0xff]
    %v306 = vld [vmem:[#allocation2 + $0x1a0] sm:$0xff]
    %v307 = vld [vmem:[#allocation2 + $0x1a8] sm:$0xff]
    %v308 = vld [vmem:[#allocation2 + $0x1b0] sm:$0xff]
    %v309 = vld [vmem:[#allocation2 + $0x1b8] sm:$0xff]
    %v310 = vld [vmem:[#allocation2 + $0x1c0] sm:$0xff]
    %v311 = vld [vmem:[#allocation2 + $0x1c8] sm:$0xff]
    %v312 = vld [vmem:[#allocation2 + $0x1d0] sm:$0xff]
    %v313 = vld [vmem:[#allocation2 + $0x1d8] sm:$0xff]
    %v314 = vld [vmem:[#allocation2 + $0x1e0] sm:$0xff]
    %v315 = vld [vmem:[#allocation2 + $0x1e8] sm:$0xff]
    %v316 = vld [vmem:[#allocation2 + $0x1f0] sm:$0xff]
    %v317 = vld [vmem:[#allocation2 + $0x1f8] sm:$0xff]
    %v318 = vld [vmem:[#allocation2 + $0x200] sm:$0xff]
    %v319 = vld [vmem:[#allocation2 + $0x208] sm:$0xff]
    %v320 = vld [vmem:[#allocation2 + $0x210] sm:$0xff]
    %v321 = vld [vmem:[#allocation2 + $0x218] sm:$0xff]
    %v322 = vld [vmem:[#allocation2 + $0x220] sm:$0xff]
    %v323 = vld [vmem:[#allocation2 + $0x228] sm:$0xff]
    %v324 = vld [vmem:[#allocation2 + $0x230] sm:$0xff]
    %v325 = vld [vmem:[#allocation2 + $0x238] sm:$0xff]
    %v326 = vld [vmem:[#allocation2 + $0x240] sm:$0xff]
    %v327 = vld [vmem:[#allocation2 + $0x248] sm:$0xff]
    %v328 = vld [vmem:[#allocation2 + $0x250] sm:$0xff]
    %v329 = vld [vmem:[#allocation2 + $0x258] sm:$0xff]
    %v330 = vld [vmem:[#allocation2 + $0x260] sm:$0xff]
    %v331 = vld [vmem:[#allocation2 + $0x268] sm:$0xff]
    %v332 = vld [vmem:[#allocation2 + $0x270] sm:$0xff]
    %v333 = vld [vmem:[#allocation2 + $0x278] sm:$0xff]
    %v334 = vld [vmem:[#allocation2 + $0x280] sm:$0xff]
    %v335 = vld [vmem:[#allocation2 + $0x288] sm:$0xff]
    %v336 = vld [vmem:[#allocation2 + $0x290] sm:$0xff]
    %v337 = vld [vmem:[#allocation2 + $0x298] sm:$0xff]
    %v338 = vld [vmem:[#allocation2 + $0x2a0] sm:$0xff]
    %v339 = vld [vmem:[#allocation2 + $0x2a8] sm:$0xff]
    %v340 = vld [vmem:[#allocation2 + $0x2b0] sm:$0xff]
    %v341 = vld [vmem:[#allocation2 + $0x2b8] sm:$0xff]
    %v342 = vld [vmem:[#allocation2 + $0x2c0] sm:$0xff]
    %v343 = vld [vmem:[#allocation2 + $0x2c8] sm:$0xff]
    %v344 = vld [vmem:[#allocation2 + $0x2d0] sm:$0xff]
    %v345 = vld [vmem:[#allocation2 + $0x2d8] sm:$0xff]
    %v346 = vld [vmem:[#allocation2 + $0x2e0] sm:$0xff]
    %v347 = vld [vmem:[#allocation2 + $0x2e8] sm:$0xff]
    %v348 = vld [vmem:[#allocation2 + $0x2f0] sm:$0xff]
    %v349 = vld [vmem:[#allocation2 + $0x2f8] sm:$0xff]
    %v350 = vld [vmem:[#allocation2 + $0x300] sm:$0xff]
    %v351 = vld [vmem:[#allocation2 + $0x308] sm:$0xff]
    %v352 = vld [vmem:[#allocation2 + $0x310] sm:$0xff]
    %v353 = vld [vmem:[#allocation2 + $0x318] sm:$0xff]
    %v354 = vld [vmem:[#allocation2 + $0x320] sm:$0xff]
    %v355 = vld [vmem:[#allocation2 + $0x328] sm:$0xff]
    %v356 = vld [vmem:[#allocation2 + $0x330] sm:$0xff]
    %v357 = vld [vmem:[#allocation2 + $0x338] sm:$0xff]
    %v358 = vld [vmem:[#allocation2 + $0x340] sm:$0xff]
    %v359 = vld [vmem:[#allocation2 + $0x348] sm:$0xff]
    %v360 = vld [vmem:[#allocation2 + $0x350] sm:$0xff]
    %v361 = vld [vmem:[#allocation2 + $0x358] sm:$0xff]
    %v362 = vld [vmem:[#allocation2 + $0x360] sm:$0xff]
    %v363 = vld [vmem:[#allocation2 + $0x368] sm:$0xff]
    %v364 = vld [vmem:[#allocation2 + $0x370] sm:$0xff]
    %v365 = vld [vmem:[#allocation2 + $0x378] sm:$0xff]
    %v366 = vld [vmem:[#allocation2 + $0x380] sm:$0xff]
    %v367 = vld [vmem:[#allocation2 + $0x388] sm:$0xff]
    %v368 = vld [vmem:[#allocation2 + $0x390] sm:$0xff]
    %v369 = vld [vmem:[#allocation2 + $0x398] sm:$0xff]
    %v370 = vld [vmem:[#allocation2 + $0x3a0] sm:$0xff]
    %v371 = vld [vmem:[#allocation2 + $0x3a8] sm:$0xff]
    %v372 = vld [vmem:[#allocation2 + $0x3b0] sm:$0xff]
    %v373 = vld [vmem:[#allocation2 + $0x3b8] sm:$0xff]
    %v374 = vld [vmem:[#allocation2 + $0x3c0] sm:$0xff]
    %v375 = vld [vmem:[#allocation2 + $0x3c8] sm:$0xff]
    %v376 = vld [vmem:[#allocation2 + $0x3d0] sm:$0xff]
    %v377 = vld [vmem:[#allocation2 + $0x3d8] sm:$0xff]
    %v378 = vld [vmem:[#allocation2 + $0x3e0] sm:$0xff]
    %v379 = vld [vmem:[#allocation2 + $0x3e8] sm:$0xff]
    %v380 = vld [vmem:[#allocation2 + $0x3f0] sm:$0xff]
    %v381 = vld [vmem:[#allocation2 + $0x3f8] sm:$0xff]
    %v382 = vld [vmem:[%s4] sm:$0xff]
    %v384 = vlaneseq
    %v385 = vshrl.u32 %v384, 7
    %v386 = vsub.s32 0, %v385
    %v387 = vrot.slane %v382, %v386
    %v388 = vlaneseq
    %v389 = vshrl.u32 %v388, 7
    %v390 = vsub.s32 1, %v389
    %v391 = vrot.slane %v382, %v390
    %v392 = vlaneseq
    %v393 = vshrl.u32 %v392, 7
    %v394 = vsub.s32 2, %v393
    %v395 = vrot.slane %v382, %v394
    %v396 = vlaneseq
    %v397 = vshrl.u32 %v396, 7
    %v398 = vsub.s32 3, %v397
    %v399 = vrot.slane %v382, %v398
    %v400 = vlaneseq
    %v401 = vshrl.u32 %v400, 7
    %v402 = vsub.s32 4, %v401
    %v403 = vrot.slane %v382, %v402
    %v404 = vlaneseq
    %v405 = vshrl.u32 %v404, 7
    %v406 = vsub.s32 5, %v405
    %v407 = vrot.slane %v382, %v406
    %v408 = vlaneseq
    %v409 = vshrl.u32 %v408, 7
    %v410 = vsub.s32 6, %v409
    %v411 = vrot.slane %v382, %v410
    %v412 = vlaneseq
    %v413 = vshrl.u32 %v412, 7
    %v414 = vsub.s32 7, %v413
    %v415 = vrot.slane %v382, %v414
    %v552 = vunpack.c.l.b16 %v254
    %v553 = vunpack.c.h.b16 %v254
    %v554 = vunpack.c.l.b16 %v255
    %v555 = vunpack.c.h.b16 %v255
    %v556 = vunpack.c.l.b16 %v256
    %v557 = vunpack.c.h.b16 %v256
    %v558 = vunpack.c.l.b16 %v257
    %v559 = vunpack.c.h.b16 %v257
    %v560 = vunpack.c.l.b16 %v258
    %v561 = vunpack.c.h.b16 %v258
    %v562 = vunpack.c.l.b16 %v259
    %v563 = vunpack.c.h.b16 %v259
    %v564 = vunpack.c.l.b16 %v260
    %v565 = vunpack.c.h.b16 %v260
    %v566 = vunpack.c.l.b16 %v261
    %v567 = vunpack.c.h.b16 %v261
    %v568 = vunpack.c.l.b16 %v262
    %v569 = vunpack.c.h.b16 %v262
    %v570 = vunpack.c.l.b16 %v263
    %v571 = vunpack.c.h.b16 %v263
    %v572 = vunpack.c.l.b16 %v264
    %v573 = vunpack.c.h.b16 %v264
    %v574 = vunpack.c.l.b16 %v265
    %v575 = vunpack.c.h.b16 %v265
    %v576 = vunpack.c.l.b16 %v266
    %v577 = vunpack.c.h.b16 %v266
    %v578 = vunpack.c.l.b16 %v267
    %v579 = vunpack.c.h.b16 %v267
    %v580 = vunpack.c.l.b16 %v268
    %v581 = vunpack.c.h.b16 %v268
    %v582 = vunpack.c.l.b16 %v269
    %v583 = vunpack.c.h.b16 %v269
    %v584 = vunpack.c.l.b16 %v270
    %v585 = vunpack.c.h.b16 %v270
    %v586 = vunpack.c.l.b16 %v271
    %v587 = vunpack.c.h.b16 %v271
    %v588 = vunpack.c.l.b16 %v272
    %v589 = vunpack.c.h.b16 %v272
    %v590 = vunpack.c.l.b16 %v273
    %v591 = vunpack.c.h.b16 %v273
    %v592 = vunpack.c.l.b16 %v274
    %v593 = vunpack.c.h.b16 %v274
    %v594 = vunpack.c.l.b16 %v275
    %v595 = vunpack.c.h.b16 %v275
    %v596 = vunpack.c.l.b16 %v276
    %v597 = vunpack.c.h.b16 %v276
    %v598 = vunpack.c.l.b16 %v277
    %v599 = vunpack.c.h.b16 %v277
    %v600 = vunpack.c.l.b16 %v278
    %v601 = vunpack.c.h.b16 %v278
    %v602 = vunpack.c.l.b16 %v279
    %v603 = vunpack.c.h.b16 %v279
    %v604 = vunpack.c.l.b16 %v280
    %v605 = vunpack.c.h.b16 %v280
    %v606 = vunpack.c.l.b16 %v281
    %v607 = vunpack.c.h.b16 %v281
    %v608 = vunpack.c.l.b16 %v282
    %v609 = vunpack.c.h.b16 %v282
    %v610 = vunpack.c.l.b16 %v283
    %v611 = vunpack.c.h.b16 %v283
    %v612 = vunpack.c.l.b16 %v284
    %v613 = vunpack.c.h.b16 %v284
    %v614 = vunpack.c.l.b16 %v285
    %v615 = vunpack.c.h.b16 %v285
    %v616 = vunpack.c.l.b16 %v286
    %v617 = vunpack.c.h.b16 %v286
    %v618 = vunpack.c.l.b16 %v287
    %v619 = vunpack.c.h.b16 %v287
    %v620 = vunpack.c.l.b16 %v288
    %v621 = vunpack.c.h.b16 %v288
    %v622 = vunpack.c.l.b16 %v289
    %v623 = vunpack.c.h.b16 %v289
    %v624 = vunpack.c.l.b16 %v290
    %v625 = vunpack.c.h.b16 %v290
    %v626 = vunpack.c.l.b16 %v291
    %v627 = vunpack.c.h.b16 %v291
    %v628 = vunpack.c.l.b16 %v292
    %v629 = vunpack.c.h.b16 %v292
    %v630 = vunpack.c.l.b16 %v293
    %v631 = vunpack.c.h.b16 %v293
    %v632 = vunpack.c.l.b16 %v294
    %v633 = vunpack.c.h.b16 %v294
    %v634 = vunpack.c.l.b16 %v295
    %v635 = vunpack.c.h.b16 %v295
    %v636 = vunpack.c.l.b16 %v296
    %v637 = vunpack.c.h.b16 %v296
    %v638 = vunpack.c.l.b16 %v297
    %v639 = vunpack.c.h.b16 %v297
    %v640 = vunpack.c.l.b16 %v298
    %v641 = vunpack.c.h.b16 %v298
    %v642 = vunpack.c.l.b16 %v299
    %v643 = vunpack.c.h.b16 %v299
    %v644 = vunpack.c.l.b16 %v300
    %v645 = vunpack.c.h.b16 %v300
    %v646 = vunpack.c.l.b16 %v301
    %v647 = vunpack.c.h.b16 %v301
    %v648 = vunpack.c.l.b16 %v302
    %v649 = vunpack.c.h.b16 %v302
    %v650 = vunpack.c.l.b16 %v303
    %v651 = vunpack.c.h.b16 %v303
    %v652 = vunpack.c.l.b16 %v304
    %v653 = vunpack.c.h.b16 %v304
    %v654 = vunpack.c.l.b16 %v305
    %v655 = vunpack.c.h.b16 %v305
    %v656 = vunpack.c.l.b16 %v306
    %v657 = vunpack.c.h.b16 %v306
    %v658 = vunpack.c.l.b16 %v307
    %v659 = vunpack.c.h.b16 %v307
    %v660 = vunpack.c.l.b16 %v308
    %v661 = vunpack.c.h.b16 %v308
    %v662 = vunpack.c.l.b16 %v309
    %v663 = vunpack.c.h.b16 %v309
    %v664 = vunpack.c.l.b16 %v310
    %v665 = vunpack.c.h.b16 %v310
    %v666 = vunpack.c.l.b16 %v311
    %v667 = vunpack.c.h.b16 %v311
    %v668 = vunpack.c.l.b16 %v312
    %v669 = vunpack.c.h.b16 %v312
    %v670 = vunpack.c.l.b16 %v313
    %v671 = vunpack.c.h.b16 %v313
    %v672 = vunpack.c.l.b16 %v314
    %v673 = vunpack.c.h.b16 %v314
    %v674 = vunpack.c.l.b16 %v315
    %v675 = vunpack.c.h.b16 %v315
    %v676 = vunpack.c.l.b16 %v316
    %v677 = vunpack.c.h.b16 %v316
    %v678 = vunpack.c.l.b16 %v317
    %v679 = vunpack.c.h.b16 %v317
    %v680 = vunpack.c.l.b16 %v318
    %v681 = vunpack.c.h.b16 %v318
    %v682 = vunpack.c.l.b16 %v319
    %v683 = vunpack.c.h.b16 %v319
    %v684 = vunpack.c.l.b16 %v320
    %v685 = vunpack.c.h.b16 %v320
    %v686 = vunpack.c.l.b16 %v321
    %v687 = vunpack.c.h.b16 %v321
    %v688 = vunpack.c.l.b16 %v322
    %v689 = vunpack.c.h.b16 %v322
    %v690 = vunpack.c.l.b16 %v323
    %v691 = vunpack.c.h.b16 %v323
    %v692 = vunpack.c.l.b16 %v324
    %v693 = vunpack.c.h.b16 %v324
    %v694 = vunpack.c.l.b16 %v325
    %v695 = vunpack.c.h.b16 %v325
    %v696 = vunpack.c.l.b16 %v326
    %v697 = vunpack.c.h.b16 %v326
    %v698 = vunpack.c.l.b16 %v327
    %v699 = vunpack.c.h.b16 %v327
    %v700 = vunpack.c.l.b16 %v328
    %v701 = vunpack.c.h.b16 %v328
    %v702 = vunpack.c.l.b16 %v329
    %v703 = vunpack.c.h.b16 %v329
    %v704 = vunpack.c.l.b16 %v330
    %v705 = vunpack.c.h.b16 %v330
    %v706 = vunpack.c.l.b16 %v331
    %v707 = vunpack.c.h.b16 %v331
    %v708 = vunpack.c.l.b16 %v332
    %v709 = vunpack.c.h.b16 %v332
    %v710 = vunpack.c.l.b16 %v333
    %v711 = vunpack.c.h.b16 %v333
    %v712 = vunpack.c.l.b16 %v334
    %v713 = vunpack.c.h.b16 %v334
    %v714 = vunpack.c.l.b16 %v335
    %v715 = vunpack.c.h.b16 %v335
    %v716 = vunpack.c.l.b16 %v336
    %v717 = vunpack.c.h.b16 %v336
    %v718 = vunpack.c.l.b16 %v337
    %v719 = vunpack.c.h.b16 %v337
    %v720 = vunpack.c.l.b16 %v338
    %v721 = vunpack.c.h.b16 %v338
    %v722 = vunpack.c.l.b16 %v339
    %v723 = vunpack.c.h.b16 %v339
    %v724 = vunpack.c.l.b16 %v340
    %v725 = vunpack.c.h.b16 %v340
    %v726 = vunpack.c.l.b16 %v341
    %v727 = vunpack.c.h.b16 %v341
    %v728 = vunpack.c.l.b16 %v342
    %v729 = vunpack.c.h.b16 %v342
    %v730 = vunpack.c.l.b16 %v343
    %v731 = vunpack.c.h.b16 %v343
    %v732 = vunpack.c.l.b16 %v344
    %v733 = vunpack.c.h.b16 %v344
    %v734 = vunpack.c.l.b16 %v345
    %v735 = vunpack.c.h.b16 %v345
    %v736 = vunpack.c.l.b16 %v346
    %v737 = vunpack.c.h.b16 %v346
    %v738 = vunpack.c.l.b16 %v347
    %v739 = vunpack.c.h.b16 %v347
    %v740 = vunpack.c.l.b16 %v348
    %v741 = vunpack.c.h.b16 %v348
    %v742 = vunpack.c.l.b16 %v349
    %v743 = vunpack.c.h.b16 %v349
    %v744 = vunpack.c.l.b16 %v350
    %v745 = vunpack.c.h.b16 %v350
    %v746 = vunpack.c.l.b16 %v351
    %v747 = vunpack.c.h.b16 %v351
    %v748 = vunpack.c.l.b16 %v352
    %v749 = vunpack.c.h.b16 %v352
    %v750 = vunpack.c.l.b16 %v353
    %v751 = vunpack.c.h.b16 %v353
    %v752 = vunpack.c.l.b16 %v354
    %v753 = vunpack.c.h.b16 %v354
    %v754 = vunpack.c.l.b16 %v355
    %v755 = vunpack.c.h.b16 %v355
    %v756 = vunpack.c.l.b16 %v356
    %v757 = vunpack.c.h.b16 %v356
    %v758 = vunpack.c.l.b16 %v357
    %v759 = vunpack.c.h.b16 %v357
    %v760 = vunpack.c.l.b16 %v358
    %v761 = vunpack.c.h.b16 %v358
    %v762 = vunpack.c.l.b16 %v359
    %v763 = vunpack.c.h.b16 %v359
    %v764 = vunpack.c.l.b16 %v360
    %v765 = vunpack.c.h.b16 %v360
    %v766 = vunpack.c.l.b16 %v361
    %v767 = vunpack.c.h.b16 %v361
    %v768 = vunpack.c.l.b16 %v362
    %v769 = vunpack.c.h.b16 %v362
    %v770 = vunpack.c.l.b16 %v363
    %v771 = vunpack.c.h.b16 %v363
    %v772 = vunpack.c.l.b16 %v364
    %v773 = vunpack.c.h.b16 %v364
    %v774 = vunpack.c.l.b16 %v365
    %v775 = vunpack.c.h.b16 %v365
    %v776 = vunpack.c.l.b16 %v366
    %v777 = vunpack.c.h.b16 %v366
    %v778 = vunpack.c.l.b16 %v367
    %v779 = vunpack.c.h.b16 %v367
    %v780 = vunpack.c.l.b16 %v368
    %v781 = vunpack.c.h.b16 %v368
    %v782 = vunpack.c.l.b16 %v369
    %v783 = vunpack.c.h.b16 %v369
    %v784 = vunpack.c.l.b16 %v370
    %v785 = vunpack.c.h.b16 %v370
    %v786 = vunpack.c.l.b16 %v371
    %v787 = vunpack.c.h.b16 %v371
    %v788 = vunpack.c.l.b16 %v372
    %v789 = vunpack.c.h.b16 %v372
    %v790 = vunpack.c.l.b16 %v373
    %v791 = vunpack.c.h.b16 %v373
    %v792 = vunpack.c.l.b16 %v374
    %v793 = vunpack.c.h.b16 %v374
    %v794 = vunpack.c.l.b16 %v375
    %v795 = vunpack.c.h.b16 %v375
    %v796 = vunpack.c.l.b16 %v376
    %v797 = vunpack.c.h.b16 %v376
    %v798 = vunpack.c.l.b16 %v377
    %v799 = vunpack.c.h.b16 %v377
    %v800 = vunpack.c.l.b16 %v378
    %v801 = vunpack.c.h.b16 %v378
    %v802 = vunpack.c.l.b16 %v379
    %v803 = vunpack.c.h.b16 %v379
    %v804 = vunpack.c.l.b16 %v380
    %v805 = vunpack.c.h.b16 %v380
    %v806 = vunpack.c.l.b16 %v381
    %v807 = vunpack.c.h.b16 %v381
    %v808 = vpack.c.b16 %v560, %v552
    %v809 = vpack.c.b16 %v561, %v553
    %v810 = vpack.c.b16 %v562, %v554
    %v811 = vpack.c.b16 %v563, %v555
    %v812 = vpack.c.b16 %v564, %v556
    %v813 = vpack.c.b16 %v565, %v557
    %v814 = vpack.c.b16 %v566, %v558
    %v815 = vpack.c.b16 %v567, %v559
    %v816 = vpack.c.b16 %v576, %v568
    %v817 = vpack.c.b16 %v577, %v569
    %v818 = vpack.c.b16 %v578, %v570
    %v819 = vpack.c.b16 %v579, %v571
    %v820 = vpack.c.b16 %v580, %v572
    %v821 = vpack.c.b16 %v581, %v573
    %v822 = vpack.c.b16 %v582, %v574
    %v823 = vpack.c.b16 %v583, %v575
    %v824 = vpack.c.b16 %v592, %v584
    %v825 = vpack.c.b16 %v593, %v585
    %v826 = vpack.c.b16 %v594, %v586
    %v827 = vpack.c.b16 %v595, %v587
    %v828 = vpack.c.b16 %v596, %v588
    %v829 = vpack.c.b16 %v597, %v589
    %v830 = vpack.c.b16 %v598, %v590
    %v831 = vpack.c.b16 %v599, %v591
    %v832 = vpack.c.b16 %v608, %v600
    %v833 = vpack.c.b16 %v609, %v601
    %v834 = vpack.c.b16 %v610, %v602
    %v835 = vpack.c.b16 %v611, %v603
    %v836 = vpack.c.b16 %v612, %v604
    %v837 = vpack.c.b16 %v613, %v605
    %v838 = vpack.c.b16 %v614, %v606
    %v839 = vpack.c.b16 %v615, %v607
    %v840 = vpack.c.b16 %v624, %v616
    %v841 = vpack.c.b16 %v625, %v617
    %v842 = vpack.c.b16 %v626, %v618
    %v843 = vpack.c.b16 %v627, %v619
    %v844 = vpack.c.b16 %v628, %v620
    %v845 = vpack.c.b16 %v629, %v621
    %v846 = vpack.c.b16 %v630, %v622
    %v847 = vpack.c.b16 %v631, %v623
    %v848 = vpack.c.b16 %v640, %v632
    %v849 = vpack.c.b16 %v641, %v633
    %v850 = vpack.c.b16 %v642, %v634
    %v851 = vpack.c.b16 %v643, %v635
    %v852 = vpack.c.b16 %v644, %v636
    %v853 = vpack.c.b16 %v645, %v637
    %v854 = vpack.c.b16 %v646, %v638
    %v855 = vpack.c.b16 %v647, %v639
    %v856 = vpack.c.b16 %v656, %v648
    %v857 = vpack.c.b16 %v657, %v649
    %v858 = vpack.c.b16 %v658, %v650
    %v859 = vpack.c.b16 %v659, %v651
    %v860 = vpack.c.b16 %v660, %v652
    %v861 = vpack.c.b16 %v661, %v653
    %v862 = vpack.c.b16 %v662, %v654
    %v863 = vpack.c.b16 %v663, %v655
    %v864 = vpack.c.b16 %v672, %v664
    %v865 = vpack.c.b16 %v673, %v665
    %v866 = vpack.c.b16 %v674, %v666
    %v867 = vpack.c.b16 %v675, %v667
    %v868 = vpack.c.b16 %v676, %v668
    %v869 = vpack.c.b16 %v677, %v669
    %v870 = vpack.c.b16 %v678, %v670
    %v871 = vpack.c.b16 %v679, %v671
    %v872 = vpack.c.b16 %v688, %v680
    %v873 = vpack.c.b16 %v689, %v681
    %v874 = vpack.c.b16 %v690, %v682
    %v875 = vpack.c.b16 %v691, %v683
    %v876 = vpack.c.b16 %v692, %v684
    %v877 = vpack.c.b16 %v693, %v685
    %v878 = vpack.c.b16 %v694, %v686
    %v879 = vpack.c.b16 %v695, %v687
    %v880 = vpack.c.b16 %v704, %v696
    %v881 = vpack.c.b16 %v705, %v697
    %v882 = vpack.c.b16 %v706, %v698
    %v883 = vpack.c.b16 %v707, %v699
    %v884 = vpack.c.b16 %v708, %v700
    %v885 = vpack.c.b16 %v709, %v701
    %v886 = vpack.c.b16 %v710, %v702
    %v887 = vpack.c.b16 %v711, %v703
    %v888 = vpack.c.b16 %v720, %v712
    %v889 = vpack.c.b16 %v721, %v713
    %v890 = vpack.c.b16 %v722, %v714
    %v891 = vpack.c.b16 %v723, %v715
    %v892 = vpack.c.b16 %v724, %v716
    %v893 = vpack.c.b16 %v725, %v717
    %v894 = vpack.c.b16 %v726, %v718
    %v895 = vpack.c.b16 %v727, %v719
    %v896 = vpack.c.b16 %v736, %v728
    %v897 = vpack.c.b16 %v737, %v729
    %v898 = vpack.c.b16 %v738, %v730
    %v899 = vpack.c.b16 %v739, %v731
    %v900 = vpack.c.b16 %v740, %v732
    %v901 = vpack.c.b16 %v741, %v733
    %v902 = vpack.c.b16 %v742, %v734
    %v903 = vpack.c.b16 %v743, %v735
    %v904 = vpack.c.b16 %v752, %v744
    %v905 = vpack.c.b16 %v753, %v745
    %v906 = vpack.c.b16 %v754, %v746
    %v907 = vpack.c.b16 %v755, %v747
    %v908 = vpack.c.b16 %v756, %v748
    %v909 = vpack.c.b16 %v757, %v749
    %v910 = vpack.c.b16 %v758, %v750
    %v911 = vpack.c.b16 %v759, %v751
    %v912 = vpack.c.b16 %v768, %v760
    %v913 = vpack.c.b16 %v769, %v761
    %v914 = vpack.c.b16 %v770, %v762
    %v915 = vpack.c.b16 %v771, %v763
    %v916 = vpack.c.b16 %v772, %v764
    %v917 = vpack.c.b16 %v773, %v765
    %v918 = vpack.c.b16 %v774, %v766
    %v919 = vpack.c.b16 %v775, %v767
    %v920 = vpack.c.b16 %v784, %v776
    %v921 = vpack.c.b16 %v785, %v777
    %v922 = vpack.c.b16 %v786, %v778
    %v923 = vpack.c.b16 %v787, %v779
    %v924 = vpack.c.b16 %v788, %v780
    %v925 = vpack.c.b16 %v789, %v781
    %v926 = vpack.c.b16 %v790, %v782
    %v927 = vpack.c.b16 %v791, %v783
    %v928 = vpack.c.b16 %v800, %v792
    %v929 = vpack.c.b16 %v801, %v793
    %v930 = vpack.c.b16 %v802, %v794
    %v931 = vpack.c.b16 %v803, %v795
    %v932 = vpack.c.b16 %v804, %v796
    %v933 = vpack.c.b16 %v805, %v797
    %v934 = vpack.c.b16 %v806, %v798
    %v935 = vpack.c.b16 %v807, %v799
    %1064 = vmatprep.subr.bf16.mxu0 %v865
    %1065 = vmatpush1.bf16.msra.mxu0 %v864
    %1066 = vmatprep.subr.bf16.mxu0 %v857
    %1067 = vmatpush1.bf16.msra.mxu0 %v856
    %1068 = vmatprep.subr.bf16.mxu0 %v849
    %1069 = vmatpush1.bf16.msra.mxu0 %v848
    %1070 = vmatprep.subr.bf16.mxu0 %v841
    %1071 = vmatpush1.bf16.msra.mxu0 %v840
    %1072 = vmatprep.subr.bf16.mxu0 %v833
    %1073 = vmatpush1.bf16.msra.mxu0 %v832
    %1074 = vmatprep.subr.bf16.mxu0 %v825
    %1075 = vmatpush1.bf16.msra.mxu0 %v824
    %1076 = vmatprep.subr.bf16.mxu0 %v817
    %1077 = vmatpush1.bf16.msra.mxu0 %v816
    %1078 = vmatprep.subr.bf16.mxu0 %v809
    %1079 = vmatpush1.bf16.msra.mxu0 %v808
    %1080 = vmatprep.subr.bf16.mxu0 %v929
    %1081 = vmatpush2.bf16.msra.mxu0 %v928
    %1082 = vmatprep.subr.bf16.mxu0 %v921
    %1083 = vmatpush2.bf16.msra.mxu0 %v920
    %1084 = vmatprep.subr.bf16.mxu0 %v913
    %1085 = vmatpush2.bf16.msra.mxu0 %v912
    %1086 = vmatprep.subr.bf16.mxu0 %v905
    %1087 = vmatpush2.bf16.msra.mxu0 %v904
    %1088 = vmatprep.subr.bf16.mxu0 %v897
    %1089 = vmatpush2.bf16.msra.mxu0 %v896
    %1090 = vmatprep.subr.bf16.mxu0 %v889
    %1091 = vmatpush2.bf16.msra.mxu0 %v888
    %1092 = vmatprep.subr.bf16.mxu0 %v881
    %1093 = vmatpush2.bf16.msra.mxu0 %v880
    %1094 = vmatprep.subr.bf16.mxu0 %v873
    %1095 = vmatpush2.bf16.msra.mxu0 %v872
    %1096 = vmatprep.mubr.bf16.mxu0 %v253
    %1097 = vmatmul.mubr.bf16.gmra.mxu0 %v252
    %v1098 = vpop.f32.mrf.mxu0
    %v1099 = vadd.f32 %v387, %v1098
    %v1100 = vpop.f32.mrf.mxu0
    %v1101 = vadd.f32 %v391, %v1100
    %v1102 = vpop.f32.mrf.mxu0
    %v1103 = vpop.f32.mrf.mxu0
    %1104 = vdwg.mxu0
    %1105 = vmatprep.subr.bf16.mxu0 %v867
    %1106 = vmatpush1.bf16.msra.mxu0 %v866
    %1107 = vmatprep.subr.bf16.mxu0 %v859
    %1108 = vmatpush1.bf16.msra.mxu0 %v858
    %1109 = vmatprep.subr.bf16.mxu0 %v851
    %1110 = vmatpush1.bf16.msra.mxu0 %v850
    %1111 = vmatprep.subr.bf16.mxu0 %v843
    %1112 = vmatpush1.bf16.msra.mxu0 %v842
    %1113 = vmatprep.subr.bf16.mxu0 %v835
    %1114 = vmatpush1.bf16.msra.mxu0 %v834
    %1115 = vmatprep.subr.bf16.mxu0 %v827
    %1116 = vmatpush1.bf16.msra.mxu0 %v826
    %1117 = vmatprep.subr.bf16.mxu0 %v819
    %1118 = vmatpush1.bf16.msra.mxu0 %v818
    %1119 = vmatprep.subr.bf16.mxu0 %v811
    %1120 = vmatpush1.bf16.msra.mxu0 %v810
    %1121 = vmatprep.subr.bf16.mxu0 %v931
    %1122 = vmatpush2.bf16.msra.mxu0 %v930
    %1123 = vmatprep.subr.bf16.mxu0 %v923
    %1124 = vmatpush2.bf16.msra.mxu0 %v922
    %1125 = vmatprep.subr.bf16.mxu0 %v915
    %1126 = vmatpush2.bf16.msra.mxu0 %v914
    %1127 = vmatprep.subr.bf16.mxu0 %v907
    %1128 = vmatpush2.bf16.msra.mxu0 %v906
    %1129 = vmatprep.subr.bf16.mxu0 %v899
    %1130 = vmatpush2.bf16.msra.mxu0 %v898
    %1131 = vmatprep.subr.bf16.mxu0 %v891
    %1132 = vmatpush2.bf16.msra.mxu0 %v890
    %1133 = vmatprep.subr.bf16.mxu0 %v883
    %1134 = vmatpush2.bf16.msra.mxu0 %v882
    %1135 = vmatprep.subr.bf16.mxu0 %v875
    %1136 = vmatpush2.bf16.msra.mxu0 %v874
    %1137 = vmatprep.mubr.bf16.mxu0 %v253
    %1138 = vmatmul.mubr.bf16.gmra.mxu0 %v252
    %v1139 = vpop.f32.mrf.mxu0
    %v1140 = vadd.f32 %v395, %v1139
    %v1141 = vpop.f32.mrf.mxu0
    %v1142 = vadd.f32 %v399, %v1141
    %v1143 = vpop.f32.mrf.mxu0
    %v1144 = vpop.f32.mrf.mxu0
    %1145 = vdwg.mxu0
    %1146 = vmatprep.subr.bf16.mxu0 %v869
    %1147 = vmatpush1.bf16.msra.mxu0 %v868
    %1148 = vmatprep.subr.bf16.mxu0 %v861
    %1149 = vmatpush1.bf16.msra.mxu0 %v860
    %1150 = vmatprep.subr.bf16.mxu0 %v853
    %1151 = vmatpush1.bf16.msra.mxu0 %v852
    %1152 = vmatprep.subr.bf16.mxu0 %v845
    %1153 = vmatpush1.bf16.msra.mxu0 %v844
    %1154 = vmatprep.subr.bf16.mxu0 %v837
    %1155 = vmatpush1.bf16.msra.mxu0 %v836
    %1156 = vmatprep.subr.bf16.mxu0 %v829
    %1157 = vmatpush1.bf16.msra.mxu0 %v828
    %1158 = vmatprep.subr.bf16.mxu0 %v821
    %1159 = vmatpush1.bf16.msra.mxu0 %v820
    %1160 = vmatprep.subr.bf16.mxu0 %v813
    %1161 = vmatpush1.bf16.msra.mxu0 %v812
    %1162 = vmatprep.subr.bf16.mxu0 %v933
    %1163 = vmatpush2.bf16.msra.mxu0 %v932
    %1164 = vmatprep.subr.bf16.mxu0 %v925
    %1165 = vmatpush2.bf16.msra.mxu0 %v924
    %1166 = vmatprep.subr.bf16.mxu0 %v917
    %1167 = vmatpush2.bf16.msra.mxu0 %v916
    %1168 = vmatprep.subr.bf16.mxu0 %v909
    %1169 = vmatpush2.bf16.msra.mxu0 %v908
    %1170 = vmatprep.subr.bf16.mxu0 %v901
    %1171 = vmatpush2.bf16.msra.mxu0 %v900
    %1172 = vmatprep.subr.bf16.mxu0 %v893
    %1173 = vmatpush2.bf16.msra.mxu0 %v892
    %1174 = vmatprep.subr.bf16.mxu0 %v885
    %1175 = vmatpush2.bf16.msra.mxu0 %v884
    %1176 = vmatprep.subr.bf16.mxu0 %v877
    %1177 = vmatpush2.bf16.msra.mxu0 %v876
    %1178 = vmatprep.mubr.bf16.mxu0 %v253
    %1179 = vmatmul.mubr.bf16.gmra.mxu0 %v252
    %v1180 = vpop.f32.mrf.mxu0
    %v1181 = vadd.f32 %v403, %v1180
    %v1182 = vpop.f32.mrf.mxu0
    %v1183 = vadd.f32 %v407, %v1182
    %v1184 = vpop.f32.mrf.mxu0
    %v1185 = vpop.f32.mrf.mxu0
    %1186 = vdwg.mxu0
    %1187 = vmatprep.subr.bf16.mxu0 %v871
    %1188 = vmatpush1.bf16.msra.mxu0 %v870
    %1189 = vmatprep.subr.bf16.mxu0 %v863
    %1190 = vmatpush1.bf16.msra.mxu0 %v862
    %1191 = vmatprep.subr.bf16.mxu0 %v855
    %1192 = vmatpush1.bf16.msra.mxu0 %v854
    %1193 = vmatprep.subr.bf16.mxu0 %v847
    %1194 = vmatpush1.bf16.msra.mxu0 %v846
    %1195 = vmatprep.subr.bf16.mxu0 %v839
    %1196 = vmatpush1.bf16.msra.mxu0 %v838
    %1197 = vmatprep.subr.bf16.mxu0 %v831
    %1198 = vmatpush1.bf16.msra.mxu0 %v830
    %1199 = vmatprep.subr.bf16.mxu0 %v823
    %1200 = vmatpush1.bf16.msra.mxu0 %v822
    %1201 = vmatprep.subr.bf16.mxu0 %v815
    %1202 = vmatpush1.bf16.msra.mxu0 %v814
    %1203 = vmatprep.subr.bf16.mxu0 %v935
    %1204 = vmatpush2.bf16.msra.mxu0 %v934
    %1205 = vmatprep.subr.bf16.mxu0 %v927
    %1206 = vmatpush2.bf16.msra.mxu0 %v926
    %1207 = vmatprep.subr.bf16.mxu0 %v919
    %1208 = vmatpush2.bf16.msra.mxu0 %v918
    %1209 = vmatprep.subr.bf16.mxu0 %v911
    %1210 = vmatpush2.bf16.msra.mxu0 %v910
    %1211 = vmatprep.subr.bf16.mxu0 %v903
    %1212 = vmatpush2.bf16.msra.mxu0 %v902
    %1213 = vmatprep.subr.bf16.mxu0 %v895
    %1214 = vmatpush2.bf16.msra.mxu0 %v894
    %1215 = vmatprep.subr.bf16.mxu0 %v887
    %1216 = vmatpush2.bf16.msra.mxu0 %v886
    %1217 = vmatprep.subr.bf16.mxu0 %v879
    %1218 = vmatpush2.bf16.msra.mxu0 %v878
    %1219 = vmatprep.mubr.bf16.mxu0 %v253
    %1220 = vmatmul.mubr.bf16.gmra.mxu0 %v252
    %v1221 = vpop.f32.mrf.mxu0
    %v1222 = vadd.f32 %v411, %v1221
    %v1223 = vpop.f32.mrf.mxu0
    %v1224 = vadd.f32 %v415, %v1223
    %v1225 = vpop.f32.mrf.mxu0
    %v1226 = vpop.f32.mrf.mxu0
    %1227 = vdwg.mxu0
    %v1228 = vmax.f32 %v1099, 0.0
    %v1229 = vmax.f32 %v1101, 0.0
    %v1230 = vmax.f32 %v1140, 0.0
    %v1231 = vmax.f32 %v1142, 0.0
    %v1232 = vmax.f32 %v1181, 0.0
    %v1233 = vmax.f32 %v1183, 0.0
    %v1234 = vmax.f32 %v1222, 0.0
    %v1235 = vmax.f32 %v1224, 0.0
    %v1236 = vmin.f32 %v1228, 6.0
    %v1237 = vmin.f32 %v1229, 6.0
    %v1238 = vmin.f32 %v1230, 6.0
    %v1239 = vmin.f32 %v1231, 6.0
    %v1240 = vmin.f32 %v1232, 6.0
    %v1241 = vmin.f32 %v1233, 6.0
    %v1242 = vmin.f32 %v1234, 6.0
    %v1243 = vmin.f32 %v1235, 6.0
    %v1244 = vpack.c.bf16 %v1236, %v1236
    %v1245 = vpack.c.bf16 %v1237, %v1237
    %v1246 = vpack.c.bf16 %v1238, %v1238
    %v1247 = vpack.c.bf16 %v1239, %v1239
    %v1248 = vpack.c.bf16 %v1240, %v1240
    %v1249 = vpack.c.bf16 %v1241, %v1241
    %v1250 = vpack.c.bf16 %v1242, %v1242
    %v1251 = vpack.c.bf16 %v1243, %v1243
    %v1252 = vld [vmem:[#allocation4] sm:$0xff]
    %v1253 = vld [vmem:[#allocation4 + $0x8] sm:$0xff]
    %v1254 = vld [vmem:[#allocation4 + $0x10] sm:$0xff]
    %v1255 = vld [vmem:[#allocation4 + $0x18] sm:$0xff]
    %v1256 = vld [vmem:[#allocation4 + $0x20] sm:$0xff]
    %v1257 = vld [vmem:[#allocation4 + $0x28] sm:$0xff]
    %v1258 = vld [vmem:[#allocation4 + $0x30] sm:$0xff]
    %v1259 = vld [vmem:[#allocation4 + $0x38] sm:$0xff]
    %v1260 = vld [vmem:[#allocation4 + $0x40] sm:$0xff]
    %v1261 = vld [vmem:[#allocation4 + $0x48] sm:$0xff]
    %v1262 = vld [vmem:[#allocation4 + $0x50] sm:$0xff]
    %v1263 = vld [vmem:[#allocation4 + $0x58] sm:$0xff]
    %v1264 = vld [vmem:[#allocation4 + $0x60] sm:$0xff]
    %v1265 = vld [vmem:[#allocation4 + $0x68] sm:$0xff]
    %v1266 = vld [vmem:[#allocation4 + $0x70] sm:$0xff]
    %v1267 = vld [vmem:[#allocation4 + $0x78] sm:$0xff]
    %v1268 = vld [vmem:[#allocation4 + $0x80] sm:$0xff]
    %v1269 = vld [vmem:[#allocation4 + $0x88] sm:$0xff]
    %v1270 = vld [vmem:[#allocation4 + $0x90] sm:$0xff]
    %v1271 = vld [vmem:[#allocation4 + $0x98] sm:$0xff]
    %v1272 = vld [vmem:[#allocation4 + $0xa0] sm:$0xff]
    %v1273 = vld [vmem:[#allocation4 + $0xa8] sm:$0xff]
    %v1274 = vld [vmem:[#allocation4 + $0xb0] sm:$0xff]
    %v1275 = vld [vmem:[#allocation4 + $0xb8] sm:$0xff]
    %v1276 = vld [vmem:[#allocation4 + $0xc0] sm:$0xff]
    %v1277 = vld [vmem:[#allocation4 + $0xc8] sm:$0xff]
    %v1278 = vld [vmem:[#allocation4 + $0xd0] sm:$0xff]
    %v1279 = vld [vmem:[#allocation4 + $0xd8] sm:$0xff]
    %v1280 = vld [vmem:[#allocation4 + $0xe0] sm:$0xff]
    %v1281 = vld [vmem:[#allocation4 + $0xe8] sm:$0xff]
    %v1282 = vld [vmem:[#allocation4 + $0xf0] sm:$0xff]
    %v1283 = vld [vmem:[#allocation4 + $0xf8] sm:$0xff]
    %v1284 = vld [vmem:[#allocation4 + $0x100] sm:$0xff]
    %v1285 = vld [vmem:[#allocation4 + $0x108] sm:$0xff]
    %v1286 = vld [vmem:[#allocation4 + $0x110] sm:$0xff]
    %v1287 = vld [vmem:[#allocation4 + $0x118] sm:$0xff]
    %v1288 = vld [vmem:[#allocation4 + $0x120] sm:$0xff]
    %v1289 = vld [vmem:[#allocation4 + $0x128] sm:$0xff]
    %v1290 = vld [vmem:[#allocation4 + $0x130] sm:$0xff]
    %v1291 = vld [vmem:[#allocation4 + $0x138] sm:$0xff]
    %v1292 = vld [vmem:[#allocation4 + $0x140] sm:$0xff]
    %v1293 = vld [vmem:[#allocation4 + $0x148] sm:$0xff]
    %v1294 = vld [vmem:[#allocation4 + $0x150] sm:$0xff]
    %v1295 = vld [vmem:[#allocation4 + $0x158] sm:$0xff]
    %v1296 = vld [vmem:[#allocation4 + $0x160] sm:$0xff]
    %v1297 = vld [vmem:[#allocation4 + $0x168] sm:$0xff]
    %v1298 = vld [vmem:[#allocation4 + $0x170] sm:$0xff]
    %v1299 = vld [vmem:[#allocation4 + $0x178] sm:$0xff]
    %v1300 = vld [vmem:[#allocation4 + $0x180] sm:$0xff]
    %v1301 = vld [vmem:[#allocation4 + $0x188] sm:$0xff]
    %v1302 = vld [vmem:[#allocation4 + $0x190] sm:$0xff]
    %v1303 = vld [vmem:[#allocation4 + $0x198] sm:$0xff]
    %v1304 = vld [vmem:[#allocation4 + $0x1a0] sm:$0xff]
    %v1305 = vld [vmem:[#allocation4 + $0x1a8] sm:$0xff]
    %v1306 = vld [vmem:[#allocation4 + $0x1b0] sm:$0xff]
    %v1307 = vld [vmem:[#allocation4 + $0x1b8] sm:$0xff]
    %v1308 = vld [vmem:[#allocation4 + $0x1c0] sm:$0xff]
    %v1309 = vld [vmem:[#allocation4 + $0x1c8] sm:$0xff]
    %v1310 = vld [vmem:[#allocation4 + $0x1d0] sm:$0xff]
    %v1311 = vld [vmem:[#allocation4 + $0x1d8] sm:$0xff]
    %v1312 = vld [vmem:[#allocation4 + $0x1e0] sm:$0xff]
    %v1313 = vld [vmem:[#allocation4 + $0x1e8] sm:$0xff]
    %v1314 = vld [vmem:[#allocation4 + $0x1f0] sm:$0xff]
    %v1315 = vld [vmem:[#allocation4 + $0x1f8] sm:$0xff]
    %v1316 = vld [vmem:[#allocation4 + $0x200] sm:$0xff]
    %v1317 = vld [vmem:[#allocation4 + $0x208] sm:$0xff]
    %v1318 = vld [vmem:[#allocation4 + $0x210] sm:$0xff]
    %v1319 = vld [vmem:[#allocation4 + $0x218] sm:$0xff]
    %v1320 = vld [vmem:[#allocation4 + $0x220] sm:$0xff]
    %v1321 = vld [vmem:[#allocation4 + $0x228] sm:$0xff]
    %v1322 = vld [vmem:[#allocation4 + $0x230] sm:$0xff]
    %v1323 = vld [vmem:[#allocation4 + $0x238] sm:$0xff]
    %v1324 = vld [vmem:[#allocation4 + $0x240] sm:$0xff]
    %v1325 = vld [vmem:[#allocation4 + $0x248] sm:$0xff]
    %v1326 = vld [vmem:[#allocation4 + $0x250] sm:$0xff]
    %v1327 = vld [vmem:[#allocation4 + $0x258] sm:$0xff]
    %v1328 = vld [vmem:[#allocation4 + $0x260] sm:$0xff]
    %v1329 = vld [vmem:[#allocation4 + $0x268] sm:$0xff]
    %v1330 = vld [vmem:[#allocation4 + $0x270] sm:$0xff]
    %v1331 = vld [vmem:[#allocation4 + $0x278] sm:$0xff]
    %v1332 = vld [vmem:[#allocation4 + $0x280] sm:$0xff]
    %v1333 = vld [vmem:[#allocation4 + $0x288] sm:$0xff]
    %v1334 = vld [vmem:[#allocation4 + $0x290] sm:$0xff]
    %v1335 = vld [vmem:[#allocation4 + $0x298] sm:$0xff]
    %v1336 = vld [vmem:[#allocation4 + $0x2a0] sm:$0xff]
    %v1337 = vld [vmem:[#allocation4 + $0x2a8] sm:$0xff]
    %v1338 = vld [vmem:[#allocation4 + $0x2b0] sm:$0xff]
    %v1339 = vld [vmem:[#allocation4 + $0x2b8] sm:$0xff]
    %v1340 = vld [vmem:[#allocation4 + $0x2c0] sm:$0xff]
    %v1341 = vld [vmem:[#allocation4 + $0x2c8] sm:$0xff]
    %v1342 = vld [vmem:[#allocation4 + $0x2d0] sm:$0xff]
    %v1343 = vld [vmem:[#allocation4 + $0x2d8] sm:$0xff]
    %v1344 = vld [vmem:[#allocation4 + $0x2e0] sm:$0xff]
    %v1345 = vld [vmem:[#allocation4 + $0x2e8] sm:$0xff]
    %v1346 = vld [vmem:[#allocation4 + $0x2f0] sm:$0xff]
    %v1347 = vld [vmem:[#allocation4 + $0x2f8] sm:$0xff]
    %v1348 = vld [vmem:[#allocation4 + $0x300] sm:$0xff]
    %v1349 = vld [vmem:[#allocation4 + $0x308] sm:$0xff]
    %v1350 = vld [vmem:[#allocation4 + $0x310] sm:$0xff]
    %v1351 = vld [vmem:[#allocation4 + $0x318] sm:$0xff]
    %v1352 = vld [vmem:[#allocation4 + $0x320] sm:$0xff]
    %v1353 = vld [vmem:[#allocation4 + $0x328] sm:$0xff]
    %v1354 = vld [vmem:[#allocation4 + $0x330] sm:$0xff]
    %v1355 = vld [vmem:[#allocation4 + $0x338] sm:$0xff]
    %v1356 = vld [vmem:[#allocation4 + $0x340] sm:$0xff]
    %v1357 = vld [vmem:[#allocation4 + $0x348] sm:$0xff]
    %v1358 = vld [vmem:[#allocation4 + $0x350] sm:$0xff]
    %v1359 = vld [vmem:[#allocation4 + $0x358] sm:$0xff]
    %v1360 = vld [vmem:[#allocation4 + $0x360] sm:$0xff]
    %v1361 = vld [vmem:[#allocation4 + $0x368] sm:$0xff]
    %v1362 = vld [vmem:[#allocation4 + $0x370] sm:$0xff]
    %v1363 = vld [vmem:[#allocation4 + $0x378] sm:$0xff]
    %v1364 = vld [vmem:[#allocation4 + $0x380] sm:$0xff]
    %v1365 = vld [vmem:[#allocation4 + $0x388] sm:$0xff]
    %v1366 = vld [vmem:[#allocation4 + $0x390] sm:$0xff]
    %v1367 = vld [vmem:[#allocation4 + $0x398] sm:$0xff]
    %v1368 = vld [vmem:[#allocation4 + $0x3a0] sm:$0xff]
    %v1369 = vld [vmem:[#allocation4 + $0x3a8] sm:$0xff]
    %v1370 = vld [vmem:[#allocation4 + $0x3b0] sm:$0xff]
    %v1371 = vld [vmem:[#allocation4 + $0x3b8] sm:$0xff]
    %v1372 = vld [vmem:[#allocation4 + $0x3c0] sm:$0xff]
    %v1373 = vld [vmem:[#allocation4 + $0x3c8] sm:$0xff]
    %v1374 = vld [vmem:[#allocation4 + $0x3d0] sm:$0xff]
    %v1375 = vld [vmem:[#allocation4 + $0x3d8] sm:$0xff]
    %v1376 = vld [vmem:[#allocation4 + $0x3e0] sm:$0xff]
    %v1377 = vld [vmem:[#allocation4 + $0x3e8] sm:$0xff]
    %v1378 = vld [vmem:[#allocation4 + $0x3f0] sm:$0xff]
    %v1379 = vld [vmem:[#allocation4 + $0x3f8] sm:$0xff]
    %v1380 = vld [vmem:[#allocation4 + $0x400] sm:$0xff]
    %v1381 = vld [vmem:[#allocation4 + $0x408] sm:$0xff]
    %v1382 = vld [vmem:[#allocation4 + $0x410] sm:$0xff]
    %v1383 = vld [vmem:[#allocation4 + $0x418] sm:$0xff]
    %v1384 = vld [vmem:[#allocation4 + $0x420] sm:$0xff]
    %v1385 = vld [vmem:[#allocation4 + $0x428] sm:$0xff]
    %v1386 = vld [vmem:[#allocation4 + $0x430] sm:$0xff]
    %v1387 = vld [vmem:[#allocation4 + $0x438] sm:$0xff]
    %v1388 = vld [vmem:[#allocation4 + $0x440] sm:$0xff]
    %v1389 = vld [vmem:[#allocation4 + $0x448] sm:$0xff]
    %v1390 = vld [vmem:[#allocation4 + $0x450] sm:$0xff]
    %v1391 = vld [vmem:[#allocation4 + $0x458] sm:$0xff]
    %v1392 = vld [vmem:[#allocation4 + $0x460] sm:$0xff]
    %v1393 = vld [vmem:[#allocation4 + $0x468] sm:$0xff]
    %v1394 = vld [vmem:[#allocation4 + $0x470] sm:$0xff]
    %v1395 = vld [vmem:[#allocation4 + $0x478] sm:$0xff]
    %v1396 = vld [vmem:[#allocation4 + $0x480] sm:$0xff]
    %v1397 = vld [vmem:[#allocation4 + $0x488] sm:$0xff]
    %v1398 = vld [vmem:[#allocation4 + $0x490] sm:$0xff]
    %v1399 = vld [vmem:[#allocation4 + $0x498] sm:$0xff]
    %v1400 = vld [vmem:[#allocation4 + $0x4a0] sm:$0xff]
    %v1401 = vld [vmem:[#allocation4 + $0x4a8] sm:$0xff]
    %v1402 = vld [vmem:[#allocation4 + $0x4b0] sm:$0xff]
    %v1403 = vld [vmem:[#allocation4 + $0x4b8] sm:$0xff]
    %v1404 = vld [vmem:[#allocation4 + $0x4c0] sm:$0xff]
    %v1405 = vld [vmem:[#allocation4 + $0x4c8] sm:$0xff]
    %v1406 = vld [vmem:[#allocation4 + $0x4d0] sm:$0xff]
    %v1407 = vld [vmem:[#allocation4 + $0x4d8] sm:$0xff]
    %v1408 = vld [vmem:[#allocation4 + $0x4e0] sm:$0xff]
    %v1409 = vld [vmem:[#allocation4 + $0x4e8] sm:$0xff]
    %v1410 = vld [vmem:[#allocation4 + $0x4f0] sm:$0xff]
    %v1411 = vld [vmem:[#allocation4 + $0x4f8] sm:$0xff]
    %v1412 = vld [vmem:[#allocation4 + $0x500] sm:$0xff]
    %v1413 = vld [vmem:[#allocation4 + $0x508] sm:$0xff]
    %v1414 = vld [vmem:[#allocation4 + $0x510] sm:$0xff]
    %v1415 = vld [vmem:[#allocation4 + $0x518] sm:$0xff]
    %v1416 = vld [vmem:[#allocation4 + $0x520] sm:$0xff]
    %v1417 = vld [vmem:[#allocation4 + $0x528] sm:$0xff]
    %v1418 = vld [vmem:[#allocation4 + $0x530] sm:$0xff]
    %v1419 = vld [vmem:[#allocation4 + $0x538] sm:$0xff]
    %v1420 = vld [vmem:[#allocation4 + $0x540] sm:$0xff]
    %v1421 = vld [vmem:[#allocation4 + $0x548] sm:$0xff]
    %v1422 = vld [vmem:[#allocation4 + $0x550] sm:$0xff]
    %v1423 = vld [vmem:[#allocation4 + $0x558] sm:$0xff]
    %v1424 = vld [vmem:[#allocation4 + $0x560] sm:$0xff]
    %v1425 = vld [vmem:[#allocation4 + $0x568] sm:$0xff]
    %v1426 = vld [vmem:[#allocation4 + $0x570] sm:$0xff]
    %v1427 = vld [vmem:[#allocation4 + $0x578] sm:$0xff]
    %v1428 = vld [vmem:[#allocation4 + $0x580] sm:$0xff]
    %v1429 = vld [vmem:[#allocation4 + $0x588] sm:$0xff]
    %v1430 = vld [vmem:[#allocation4 + $0x590] sm:$0xff]
    %v1431 = vld [vmem:[#allocation4 + $0x598] sm:$0xff]
    %v1432 = vld [vmem:[#allocation4 + $0x5a0] sm:$0xff]
    %v1433 = vld [vmem:[#allocation4 + $0x5a8] sm:$0xff]
    %v1434 = vld [vmem:[#allocation4 + $0x5b0] sm:$0xff]
    %v1435 = vld [vmem:[#allocation4 + $0x5b8] sm:$0xff]
    %v1436 = vld [vmem:[#allocation4 + $0x5c0] sm:$0xff]
    %v1437 = vld [vmem:[#allocation4 + $0x5c8] sm:$0xff]
    %v1438 = vld [vmem:[#allocation4 + $0x5d0] sm:$0xff]
    %v1439 = vld [vmem:[#allocation4 + $0x5d8] sm:$0xff]
    %v1440 = vld [vmem:[#allocation4 + $0x5e0] sm:$0xff]
    %v1441 = vld [vmem:[#allocation4 + $0x5e8] sm:$0xff]
    %v1442 = vld [vmem:[#allocation4 + $0x5f0] sm:$0xff]
    %v1443 = vld [vmem:[#allocation4 + $0x5f8] sm:$0xff]
    %v1444 = vld [vmem:[#allocation4 + $0x600] sm:$0xff]
    %v1445 = vld [vmem:[#allocation4 + $0x608] sm:$0xff]
    %v1446 = vld [vmem:[#allocation4 + $0x610] sm:$0xff]
    %v1447 = vld [vmem:[#allocation4 + $0x618] sm:$0xff]
    %v1448 = vld [vmem:[#allocation4 + $0x620] sm:$0xff]
    %v1449 = vld [vmem:[#allocation4 + $0x628] sm:$0xff]
    %v1450 = vld [vmem:[#allocation4 + $0x630] sm:$0xff]
    %v1451 = vld [vmem:[#allocation4 + $0x638] sm:$0xff]
    %v1452 = vld [vmem:[#allocation4 + $0x640] sm:$0xff]
    %v1453 = vld [vmem:[#allocation4 + $0x648] sm:$0xff]
    %v1454 = vld [vmem:[#allocation4 + $0x650] sm:$0xff]
    %v1455 = vld [vmem:[#allocation4 + $0x658] sm:$0xff]
    %v1456 = vld [vmem:[#allocation4 + $0x660] sm:$0xff]
    %v1457 = vld [vmem:[#allocation4 + $0x668] sm:$0xff]
    %v1458 = vld [vmem:[#allocation4 + $0x670] sm:$0xff]
    %v1459 = vld [vmem:[#allocation4 + $0x678] sm:$0xff]
    %v1460 = vld [vmem:[#allocation4 + $0x680] sm:$0xff]
    %v1461 = vld [vmem:[#allocation4 + $0x688] sm:$0xff]
    %v1462 = vld [vmem:[#allocation4 + $0x690] sm:$0xff]
    %v1463 = vld [vmem:[#allocation4 + $0x698] sm:$0xff]
    %v1464 = vld [vmem:[#allocation4 + $0x6a0] sm:$0xff]
    %v1465 = vld [vmem:[#allocation4 + $0x6a8] sm:$0xff]
    %v1466 = vld [vmem:[#allocation4 + $0x6b0] sm:$0xff]
    %v1467 = vld [vmem:[#allocation4 + $0x6b8] sm:$0xff]
    %v1468 = vld [vmem:[#allocation4 + $0x6c0] sm:$0xff]
    %v1469 = vld [vmem:[#allocation4 + $0x6c8] sm:$0xff]
    %v1470 = vld [vmem:[#allocation4 + $0x6d0] sm:$0xff]
    %v1471 = vld [vmem:[#allocation4 + $0x6d8] sm:$0xff]
    %v1472 = vld [vmem:[#allocation4 + $0x6e0] sm:$0xff]
    %v1473 = vld [vmem:[#allocation4 + $0x6e8] sm:$0xff]
    %v1474 = vld [vmem:[#allocation4 + $0x6f0] sm:$0xff]
    %v1475 = vld [vmem:[#allocation4 + $0x6f8] sm:$0xff]
    %v1476 = vld [vmem:[#allocation4 + $0x700] sm:$0xff]
    %v1477 = vld [vmem:[#allocation4 + $0x708] sm:$0xff]
    %v1478 = vld [vmem:[#allocation4 + $0x710] sm:$0xff]
    %v1479 = vld [vmem:[#allocation4 + $0x718] sm:$0xff]
    %v1480 = vld [vmem:[#allocation4 + $0x720] sm:$0xff]
    %v1481 = vld [vmem:[#allocation4 + $0x728] sm:$0xff]
    %v1482 = vld [vmem:[#allocation4 + $0x730] sm:$0xff]
    %v1483 = vld [vmem:[#allocation4 + $0x738] sm:$0xff]
    %v1484 = vld [vmem:[#allocation4 + $0x740] sm:$0xff]
    %v1485 = vld [vmem:[#allocation4 + $0x748] sm:$0xff]
    %v1486 = vld [vmem:[#allocation4 + $0x750] sm:$0xff]
    %v1487 = vld [vmem:[#allocation4 + $0x758] sm:$0xff]
    %v1488 = vld [vmem:[#allocation4 + $0x760] sm:$0xff]
    %v1489 = vld [vmem:[#allocation4 + $0x768] sm:$0xff]
    %v1490 = vld [vmem:[#allocation4 + $0x770] sm:$0xff]
    %v1491 = vld [vmem:[#allocation4 + $0x778] sm:$0xff]
    %v1492 = vld [vmem:[#allocation4 + $0x780] sm:$0xff]
    %v1493 = vld [vmem:[#allocation4 + $0x788] sm:$0xff]
    %v1494 = vld [vmem:[#allocation4 + $0x790] sm:$0xff]
    %v1495 = vld [vmem:[#allocation4 + $0x798] sm:$0xff]
    %v1496 = vld [vmem:[#allocation4 + $0x7a0] sm:$0xff]
    %v1497 = vld [vmem:[#allocation4 + $0x7a8] sm:$0xff]
    %v1498 = vld [vmem:[#allocation4 + $0x7b0] sm:$0xff]
    %v1499 = vld [vmem:[#allocation4 + $0x7b8] sm:$0xff]
    %v1500 = vld [vmem:[#allocation4 + $0x7c0] sm:$0xff]
    %v1501 = vld [vmem:[#allocation4 + $0x7c8] sm:$0xff]
    %v1502 = vld [vmem:[#allocation4 + $0x7d0] sm:$0xff]
    %v1503 = vld [vmem:[#allocation4 + $0x7d8] sm:$0xff]
    %v1504 = vld [vmem:[#allocation4 + $0x7e0] sm:$0xff]
    %v1505 = vld [vmem:[#allocation4 + $0x7e8] sm:$0xff]
    %v1506 = vld [vmem:[#allocation4 + $0x7f0] sm:$0xff]
    %v1507 = vld [vmem:[#allocation4 + $0x7f8] sm:$0xff]
    %v1508 = vld [vmem:[#allocation6] sm:$0xf]
    %v1510 = vlaneseq
    %v1511 = vshrl.u32 %v1510, 7
    %v1512 = vsub.s32 0, %v1511
    %v1513 = vrot.slane %v1508, %v1512
    %v1514 = vlaneseq
    %v1515 = vshrl.u32 %v1514, 7
    %v1516 = vsub.s32 1, %v1515
    %v1517 = vrot.slane %v1508, %v1516
    %v1518 = vlaneseq
    %v1519 = vshrl.u32 %v1518, 7
    %v1520 = vsub.s32 2, %v1519
    %v1521 = vrot.slane %v1508, %v1520
    %v1522 = vlaneseq
    %v1523 = vshrl.u32 %v1522, 7
    %v1524 = vsub.s32 3, %v1523
    %v1525 = vrot.slane %v1508, %v1524
    %v1786 = vunpack.c.l.b16 %v1252
    %v1787 = vunpack.c.h.b16 %v1252
    %v1788 = vunpack.c.l.b16 %v1253
    %v1789 = vunpack.c.h.b16 %v1253
    %v1790 = vunpack.c.l.b16 %v1254
    %v1791 = vunpack.c.h.b16 %v1254
    %v1792 = vunpack.c.l.b16 %v1255
    %v1793 = vunpack.c.h.b16 %v1255
    %v1794 = vunpack.c.l.b16 %v1256
    %v1795 = vunpack.c.h.b16 %v1256
    %v1796 = vunpack.c.l.b16 %v1257
    %v1797 = vunpack.c.h.b16 %v1257
    %v1798 = vunpack.c.l.b16 %v1258
    %v1799 = vunpack.c.h.b16 %v1258
    %v1800 = vunpack.c.l.b16 %v1259
    %v1801 = vunpack.c.h.b16 %v1259
    %v1802 = vunpack.c.l.b16 %v1260
    %v1803 = vunpack.c.h.b16 %v1260
    %v1804 = vunpack.c.l.b16 %v1261
    %v1805 = vunpack.c.h.b16 %v1261
    %v1806 = vunpack.c.l.b16 %v1262
    %v1807 = vunpack.c.h.b16 %v1262
    %v1808 = vunpack.c.l.b16 %v1263
    %v1809 = vunpack.c.h.b16 %v1263
    %v1810 = vunpack.c.l.b16 %v1264
    %v1811 = vunpack.c.h.b16 %v1264
    %v1812 = vunpack.c.l.b16 %v1265
    %v1813 = vunpack.c.h.b16 %v1265
    %v1814 = vunpack.c.l.b16 %v1266
    %v1815 = vunpack.c.h.b16 %v1266
    %v1816 = vunpack.c.l.b16 %v1267
    %v1817 = vunpack.c.h.b16 %v1267
    %v1818 = vunpack.c.l.b16 %v1268
    %v1819 = vunpack.c.h.b16 %v1268
    %v1820 = vunpack.c.l.b16 %v1269
    %v1821 = vunpack.c.h.b16 %v1269
    %v1822 = vunpack.c.l.b16 %v1270
    %v1823 = vunpack.c.h.b16 %v1270
    %v1824 = vunpack.c.l.b16 %v1271
    %v1825 = vunpack.c.h.b16 %v1271
    %v1826 = vunpack.c.l.b16 %v1272
    %v1827 = vunpack.c.h.b16 %v1272
    %v1828 = vunpack.c.l.b16 %v1273
    %v1829 = vunpack.c.h.b16 %v1273
    %v1830 = vunpack.c.l.b16 %v1274
    %v1831 = vunpack.c.h.b16 %v1274
    %v1832 = vunpack.c.l.b16 %v1275
    %v1833 = vunpack.c.h.b16 %v1275
    %v1834 = vunpack.c.l.b16 %v1276
    %v1835 = vunpack.c.h.b16 %v1276
    %v1836 = vunpack.c.l.b16 %v1277
    %v1837 = vunpack.c.h.b16 %v1277
    %v1838 = vunpack.c.l.b16 %v1278
    %v1839 = vunpack.c.h.b16 %v1278
    %v1840 = vunpack.c.l.b16 %v1279
    %v1841 = vunpack.c.h.b16 %v1279
    %v1842 = vunpack.c.l.b16 %v1280
    %v1843 = vunpack.c.h.b16 %v1280
    %v1844 = vunpack.c.l.b16 %v1281
    %v1845 = vunpack.c.h.b16 %v1281
    %v1846 = vunpack.c.l.b16 %v1282
    %v1847 = vunpack.c.h.b16 %v1282
    %v1848 = vunpack.c.l.b16 %v1283
    %v1849 = vunpack.c.h.b16 %v1283
    %v1850 = vunpack.c.l.b16 %v1284
    %v1851 = vunpack.c.h.b16 %v1284
    %v1852 = vunpack.c.l.b16 %v1285
    %v1853 = vunpack.c.h.b16 %v1285
    %v1854 = vunpack.c.l.b16 %v1286
    %v1855 = vunpack.c.h.b16 %v1286
    %v1856 = vunpack.c.l.b16 %v1287
    %v1857 = vunpack.c.h.b16 %v1287
    %v1858 = vunpack.c.l.b16 %v1288
    %v1859 = vunpack.c.h.b16 %v1288
    %v1860 = vunpack.c.l.b16 %v1289
    %v1861 = vunpack.c.h.b16 %v1289
    %v1862 = vunpack.c.l.b16 %v1290
    %v1863 = vunpack.c.h.b16 %v1290
    %v1864 = vunpack.c.l.b16 %v1291
    %v1865 = vunpack.c.h.b16 %v1291
    %v1866 = vunpack.c.l.b16 %v1292
    %v1867 = vunpack.c.h.b16 %v1292
    %v1868 = vunpack.c.l.b16 %v1293
    %v1869 = vunpack.c.h.b16 %v1293
    %v1870 = vunpack.c.l.b16 %v1294
    %v1871 = vunpack.c.h.b16 %v1294
    %v1872 = vunpack.c.l.b16 %v1295
    %v1873 = vunpack.c.h.b16 %v1295
    %v1874 = vunpack.c.l.b16 %v1296
    %v1875 = vunpack.c.h.b16 %v1296
    %v1876 = vunpack.c.l.b16 %v1297
    %v1877 = vunpack.c.h.b16 %v1297
    %v1878 = vunpack.c.l.b16 %v1298
    %v1879 = vunpack.c.h.b16 %v1298
    %v1880 = vunpack.c.l.b16 %v1299
    %v1881 = vunpack.c.h.b16 %v1299
    %v1882 = vunpack.c.l.b16 %v1300
    %v1883 = vunpack.c.h.b16 %v1300
    %v1884 = vunpack.c.l.b16 %v1301
    %v1885 = vunpack.c.h.b16 %v1301
    %v1886 = vunpack.c.l.b16 %v1302
    %v1887 = vunpack.c.h.b16 %v1302
    %v1888 = vunpack.c.l.b16 %v1303
    %v1889 = vunpack.c.h.b16 %v1303
    %v1890 = vunpack.c.l.b16 %v1304
    %v1891 = vunpack.c.h.b16 %v1304
    %v1892 = vunpack.c.l.b16 %v1305
    %v1893 = vunpack.c.h.b16 %v1305
    %v1894 = vunpack.c.l.b16 %v1306
    %v1895 = vunpack.c.h.b16 %v1306
    %v1896 = vunpack.c.l.b16 %v1307
    %v1897 = vunpack.c.h.b16 %v1307
    %v1898 = vunpack.c.l.b16 %v1308
    %v1899 = vunpack.c.h.b16 %v1308
    %v1900 = vunpack.c.l.b16 %v1309
    %v1901 = vunpack.c.h.b16 %v1309
    %v1902 = vunpack.c.l.b16 %v1310
    %v1903 = vunpack.c.h.b16 %v1310
    %v1904 = vunpack.c.l.b16 %v1311
    %v1905 = vunpack.c.h.b16 %v1311
    %v1906 = vunpack.c.l.b16 %v1312
    %v1907 = vunpack.c.h.b16 %v1312
    %v1908 = vunpack.c.l.b16 %v1313
    %v1909 = vunpack.c.h.b16 %v1313
    %v1910 = vunpack.c.l.b16 %v1314
    %v1911 = vunpack.c.h.b16 %v1314
    %v1912 = vunpack.c.l.b16 %v1315
    %v1913 = vunpack.c.h.b16 %v1315
    %v1914 = vunpack.c.l.b16 %v1316
    %v1915 = vunpack.c.h.b16 %v1316
    %v1916 = vunpack.c.l.b16 %v1317
    %v1917 = vunpack.c.h.b16 %v1317
    %v1918 = vunpack.c.l.b16 %v1318
    %v1919 = vunpack.c.h.b16 %v1318
    %v1920 = vunpack.c.l.b16 %v1319
    %v1921 = vunpack.c.h.b16 %v1319
    %v1922 = vunpack.c.l.b16 %v1320
    %v1923 = vunpack.c.h.b16 %v1320
    %v1924 = vunpack.c.l.b16 %v1321
    %v1925 = vunpack.c.h.b16 %v1321
    %v1926 = vunpack.c.l.b16 %v1322
    %v1927 = vunpack.c.h.b16 %v1322
    %v1928 = vunpack.c.l.b16 %v1323
    %v1929 = vunpack.c.h.b16 %v1323
    %v1930 = vunpack.c.l.b16 %v1324
    %v1931 = vunpack.c.h.b16 %v1324
    %v1932 = vunpack.c.l.b16 %v1325
    %v1933 = vunpack.c.h.b16 %v1325
    %v1934 = vunpack.c.l.b16 %v1326
    %v1935 = vunpack.c.h.b16 %v1326
    %v1936 = vunpack.c.l.b16 %v1327
    %v1937 = vunpack.c.h.b16 %v1327
    %v1938 = vunpack.c.l.b16 %v1328
    %v1939 = vunpack.c.h.b16 %v1328
    %v1940 = vunpack.c.l.b16 %v1329
    %v1941 = vunpack.c.h.b16 %v1329
    %v1942 = vunpack.c.l.b16 %v1330
    %v1943 = vunpack.c.h.b16 %v1330
    %v1944 = vunpack.c.l.b16 %v1331
    %v1945 = vunpack.c.h.b16 %v1331
    %v1946 = vunpack.c.l.b16 %v1332
    %v1947 = vunpack.c.h.b16 %v1332
    %v1948 = vunpack.c.l.b16 %v1333
    %v1949 = vunpack.c.h.b16 %v1333
    %v1950 = vunpack.c.l.b16 %v1334
    %v1951 = vunpack.c.h.b16 %v1334
    %v1952 = vunpack.c.l.b16 %v1335
    %v1953 = vunpack.c.h.b16 %v1335
    %v1954 = vunpack.c.l.b16 %v1336
    %v1955 = vunpack.c.h.b16 %v1336
    %v1956 = vunpack.c.l.b16 %v1337
    %v1957 = vunpack.c.h.b16 %v1337
    %v1958 = vunpack.c.l.b16 %v1338
    %v1959 = vunpack.c.h.b16 %v1338
    %v1960 = vunpack.c.l.b16 %v1339
    %v1961 = vunpack.c.h.b16 %v1339
    %v1962 = vunpack.c.l.b16 %v1340
    %v1963 = vunpack.c.h.b16 %v1340
    %v1964 = vunpack.c.l.b16 %v1341
    %v1965 = vunpack.c.h.b16 %v1341
    %v1966 = vunpack.c.l.b16 %v1342
    %v1967 = vunpack.c.h.b16 %v1342
    %v1968 = vunpack.c.l.b16 %v1343
    %v1969 = vunpack.c.h.b16 %v1343
    %v1970 = vunpack.c.l.b16 %v1344
    %v1971 = vunpack.c.h.b16 %v1344
    %v1972 = vunpack.c.l.b16 %v1345
    %v1973 = vunpack.c.h.b16 %v1345
    %v1974 = vunpack.c.l.b16 %v1346
    %v1975 = vunpack.c.h.b16 %v1346
    %v1976 = vunpack.c.l.b16 %v1347
    %v1977 = vunpack.c.h.b16 %v1347
    %v1978 = vunpack.c.l.b16 %v1348
    %v1979 = vunpack.c.h.b16 %v1348
    %v1980 = vunpack.c.l.b16 %v1349
    %v1981 = vunpack.c.h.b16 %v1349
    %v1982 = vunpack.c.l.b16 %v1350
    %v1983 = vunpack.c.h.b16 %v1350
    %v1984 = vunpack.c.l.b16 %v1351
    %v1985 = vunpack.c.h.b16 %v1351
    %v1986 = vunpack.c.l.b16 %v1352
    %v1987 = vunpack.c.h.b16 %v1352
    %v1988 = vunpack.c.l.b16 %v1353
    %v1989 = vunpack.c.h.b16 %v1353
    %v1990 = vunpack.c.l.b16 %v1354
    %v1991 = vunpack.c.h.b16 %v1354
    %v1992 = vunpack.c.l.b16 %v1355
    %v1993 = vunpack.c.h.b16 %v1355
    %v1994 = vunpack.c.l.b16 %v1356
    %v1995 = vunpack.c.h.b16 %v1356
    %v1996 = vunpack.c.l.b16 %v1357
    %v1997 = vunpack.c.h.b16 %v1357
    %v1998 = vunpack.c.l.b16 %v1358
    %v1999 = vunpack.c.h.b16 %v1358
    %v2000 = vunpack.c.l.b16 %v1359
    %v2001 = vunpack.c.h.b16 %v1359
    %v2002 = vunpack.c.l.b16 %v1360
    %v2003 = vunpack.c.h.b16 %v1360
    %v2004 = vunpack.c.l.b16 %v1361
    %v2005 = vunpack.c.h.b16 %v1361
    %v2006 = vunpack.c.l.b16 %v1362
    %v2007 = vunpack.c.h.b16 %v1362
    %v2008 = vunpack.c.l.b16 %v1363
    %v2009 = vunpack.c.h.b16 %v1363
    %v2010 = vunpack.c.l.b16 %v1364
    %v2011 = vunpack.c.h.b16 %v1364
    %v2012 = vunpack.c.l.b16 %v1365
    %v2013 = vunpack.c.h.b16 %v1365
    %v2014 = vunpack.c.l.b16 %v1366
    %v2015 = vunpack.c.h.b16 %v1366
    %v2016 = vunpack.c.l.b16 %v1367
    %v2017 = vunpack.c.h.b16 %v1367
    %v2018 = vunpack.c.l.b16 %v1368
    %v2019 = vunpack.c.h.b16 %v1368
    %v2020 = vunpack.c.l.b16 %v1369
    %v2021 = vunpack.c.h.b16 %v1369
    %v2022 = vunpack.c.l.b16 %v1370
    %v2023 = vunpack.c.h.b16 %v1370
    %v2024 = vunpack.c.l.b16 %v1371
    %v2025 = vunpack.c.h.b16 %v1371
    %v2026 = vunpack.c.l.b16 %v1372
    %v2027 = vunpack.c.h.b16 %v1372
    %v2028 = vunpack.c.l.b16 %v1373
    %v2029 = vunpack.c.h.b16 %v1373
    %v2030 = vunpack.c.l.b16 %v1374
    %v2031 = vunpack.c.h.b16 %v1374
    %v2032 = vunpack.c.l.b16 %v1375
    %v2033 = vunpack.c.h.b16 %v1375
    %v2034 = vunpack.c.l.b16 %v1376
    %v2035 = vunpack.c.h.b16 %v1376
    %v2036 = vunpack.c.l.b16 %v1377
    %v2037 = vunpack.c.h.b16 %v1377
    %v2038 = vunpack.c.l.b16 %v1378
    %v2039 = vunpack.c.h.b16 %v1378
    %v2040 = vunpack.c.l.b16 %v1379
    %v2041 = vunpack.c.h.b16 %v1379
    %v2042 = vunpack.c.l.b16 %v1380
    %v2043 = vunpack.c.h.b16 %v1380
    %v2044 = vunpack.c.l.b16 %v1381
    %v2045 = vunpack.c.h.b16 %v1381
    %v2046 = vunpack.c.l.b16 %v1382
    %v2047 = vunpack.c.h.b16 %v1382
    %v2048 = vunpack.c.l.b16 %v1383
    %v2049 = vunpack.c.h.b16 %v1383
    %v2050 = vunpack.c.l.b16 %v1384
    %v2051 = vunpack.c.h.b16 %v1384
    %v2052 = vunpack.c.l.b16 %v1385
    %v2053 = vunpack.c.h.b16 %v1385
    %v2054 = vunpack.c.l.b16 %v1386
    %v2055 = vunpack.c.h.b16 %v1386
    %v2056 = vunpack.c.l.b16 %v1387
    %v2057 = vunpack.c.h.b16 %v1387
    %v2058 = vunpack.c.l.b16 %v1388
    %v2059 = vunpack.c.h.b16 %v1388
    %v2060 = vunpack.c.l.b16 %v1389
    %v2061 = vunpack.c.h.b16 %v1389
    %v2062 = vunpack.c.l.b16 %v1390
    %v2063 = vunpack.c.h.b16 %v1390
    %v2064 = vunpack.c.l.b16 %v1391
    %v2065 = vunpack.c.h.b16 %v1391
    %v2066 = vunpack.c.l.b16 %v1392
    %v2067 = vunpack.c.h.b16 %v1392
    %v2068 = vunpack.c.l.b16 %v1393
    %v2069 = vunpack.c.h.b16 %v1393
    %v2070 = vunpack.c.l.b16 %v1394
    %v2071 = vunpack.c.h.b16 %v1394
    %v2072 = vunpack.c.l.b16 %v1395
    %v2073 = vunpack.c.h.b16 %v1395
    %v2074 = vunpack.c.l.b16 %v1396
    %v2075 = vunpack.c.h.b16 %v1396
    %v2076 = vunpack.c.l.b16 %v1397
    %v2077 = vunpack.c.h.b16 %v1397
    %v2078 = vunpack.c.l.b16 %v1398
    %v2079 = vunpack.c.h.b16 %v1398
    %v2080 = vunpack.c.l.b16 %v1399
    %v2081 = vunpack.c.h.b16 %v1399
    %v2082 = vunpack.c.l.b16 %v1400
    %v2083 = vunpack.c.h.b16 %v1400
    %v2084 = vunpack.c.l.b16 %v1401
    %v2085 = vunpack.c.h.b16 %v1401
    %v2086 = vunpack.c.l.b16 %v1402
    %v2087 = vunpack.c.h.b16 %v1402
    %v2088 = vunpack.c.l.b16 %v1403
    %v2089 = vunpack.c.h.b16 %v1403
    %v2090 = vunpack.c.l.b16 %v1404
    %v2091 = vunpack.c.h.b16 %v1404
    %v2092 = vunpack.c.l.b16 %v1405
    %v2093 = vunpack.c.h.b16 %v1405
    %v2094 = vunpack.c.l.b16 %v1406
    %v2095 = vunpack.c.h.b16 %v1406
    %v2096 = vunpack.c.l.b16 %v1407
    %v2097 = vunpack.c.h.b16 %v1407
    %v2098 = vunpack.c.l.b16 %v1408
    %v2099 = vunpack.c.h.b16 %v1408
    %v2100 = vunpack.c.l.b16 %v1409
    %v2101 = vunpack.c.h.b16 %v1409
    %v2102 = vunpack.c.l.b16 %v1410
    %v2103 = vunpack.c.h.b16 %v1410
    %v2104 = vunpack.c.l.b16 %v1411
    %v2105 = vunpack.c.h.b16 %v1411
    %v2106 = vunpack.c.l.b16 %v1412
    %v2107 = vunpack.c.h.b16 %v1412
    %v2108 = vunpack.c.l.b16 %v1413
    %v2109 = vunpack.c.h.b16 %v1413
    %v2110 = vunpack.c.l.b16 %v1414
    %v2111 = vunpack.c.h.b16 %v1414
    %v2112 = vunpack.c.l.b16 %v1415
    %v2113 = vunpack.c.h.b16 %v1415
    %v2114 = vunpack.c.l.b16 %v1416
    %v2115 = vunpack.c.h.b16 %v1416
    %v2116 = vunpack.c.l.b16 %v1417
    %v2117 = vunpack.c.h.b16 %v1417
    %v2118 = vunpack.c.l.b16 %v1418
    %v2119 = vunpack.c.h.b16 %v1418
    %v2120 = vunpack.c.l.b16 %v1419
    %v2121 = vunpack.c.h.b16 %v1419
    %v2122 = vunpack.c.l.b16 %v1420
    %v2123 = vunpack.c.h.b16 %v1420
    %v2124 = vunpack.c.l.b16 %v1421
    %v2125 = vunpack.c.h.b16 %v1421
    %v2126 = vunpack.c.l.b16 %v1422
    %v2127 = vunpack.c.h.b16 %v1422
    %v2128 = vunpack.c.l.b16 %v1423
    %v2129 = vunpack.c.h.b16 %v1423
    %v2130 = vunpack.c.l.b16 %v1424
    %v2131 = vunpack.c.h.b16 %v1424
    %v2132 = vunpack.c.l.b16 %v1425
    %v2133 = vunpack.c.h.b16 %v1425
    %v2134 = vunpack.c.l.b16 %v1426
    %v2135 = vunpack.c.h.b16 %v1426
    %v2136 = vunpack.c.l.b16 %v1427
    %v2137 = vunpack.c.h.b16 %v1427
    %v2138 = vunpack.c.l.b16 %v1428
    %v2139 = vunpack.c.h.b16 %v1428
    %v2140 = vunpack.c.l.b16 %v1429
    %v2141 = vunpack.c.h.b16 %v1429
    %v2142 = vunpack.c.l.b16 %v1430
    %v2143 = vunpack.c.h.b16 %v1430
    %v2144 = vunpack.c.l.b16 %v1431
    %v2145 = vunpack.c.h.b16 %v1431
    %v2146 = vunpack.c.l.b16 %v1432
    %v2147 = vunpack.c.h.b16 %v1432
    %v2148 = vunpack.c.l.b16 %v1433
    %v2149 = vunpack.c.h.b16 %v1433
    %v2150 = vunpack.c.l.b16 %v1434
    %v2151 = vunpack.c.h.b16 %v1434
    %v2152 = vunpack.c.l.b16 %v1435
    %v2153 = vunpack.c.h.b16 %v1435
    %v2154 = vunpack.c.l.b16 %v1436
    %v2155 = vunpack.c.h.b16 %v1436
    %v2156 = vunpack.c.l.b16 %v1437
    %v2157 = vunpack.c.h.b16 %v1437
    %v2158 = vunpack.c.l.b16 %v1438
    %v2159 = vunpack.c.h.b16 %v1438
    %v2160 = vunpack.c.l.b16 %v1439
    %v2161 = vunpack.c.h.b16 %v1439
    %v2162 = vunpack.c.l.b16 %v1440
    %v2163 = vunpack.c.h.b16 %v1440
    %v2164 = vunpack.c.l.b16 %v1441
    %v2165 = vunpack.c.h.b16 %v1441
    %v2166 = vunpack.c.l.b16 %v1442
    %v2167 = vunpack.c.h.b16 %v1442
    %v2168 = vunpack.c.l.b16 %v1443
    %v2169 = vunpack.c.h.b16 %v1443
    %v2170 = vunpack.c.l.b16 %v1444
    %v2171 = vunpack.c.h.b16 %v1444
    %v2172 = vunpack.c.l.b16 %v1445
    %v2173 = vunpack.c.h.b16 %v1445
    %v2174 = vunpack.c.l.b16 %v1446
    %v2175 = vunpack.c.h.b16 %v1446
    %v2176 = vunpack.c.l.b16 %v1447
    %v2177 = vunpack.c.h.b16 %v1447
    %v2178 = vunpack.c.l.b16 %v1448
    %v2179 = vunpack.c.h.b16 %v1448
    %v2180 = vunpack.c.l.b16 %v1449
    %v2181 = vunpack.c.h.b16 %v1449
    %v2182 = vunpack.c.l.b16 %v1450
    %v2183 = vunpack.c.h.b16 %v1450
    %v2184 = vunpack.c.l.b16 %v1451
    %v2185 = vunpack.c.h.b16 %v1451
    %v2186 = vunpack.c.l.b16 %v1452
    %v2187 = vunpack.c.h.b16 %v1452
    %v2188 = vunpack.c.l.b16 %v1453
    %v2189 = vunpack.c.h.b16 %v1453
    %v2190 = vunpack.c.l.b16 %v1454
    %v2191 = vunpack.c.h.b16 %v1454
    %v2192 = vunpack.c.l.b16 %v1455
    %v2193 = vunpack.c.h.b16 %v1455
    %v2194 = vunpack.c.l.b16 %v1456
    %v2195 = vunpack.c.h.b16 %v1456
    %v2196 = vunpack.c.l.b16 %v1457
    %v2197 = vunpack.c.h.b16 %v1457
    %v2198 = vunpack.c.l.b16 %v1458
    %v2199 = vunpack.c.h.b16 %v1458
    %v2200 = vunpack.c.l.b16 %v1459
    %v2201 = vunpack.c.h.b16 %v1459
    %v2202 = vunpack.c.l.b16 %v1460
    %v2203 = vunpack.c.h.b16 %v1460
    %v2204 = vunpack.c.l.b16 %v1461
    %v2205 = vunpack.c.h.b16 %v1461
    %v2206 = vunpack.c.l.b16 %v1462
    %v2207 = vunpack.c.h.b16 %v1462
    %v2208 = vunpack.c.l.b16 %v1463
    %v2209 = vunpack.c.h.b16 %v1463
    %v2210 = vunpack.c.l.b16 %v1464
    %v2211 = vunpack.c.h.b16 %v1464
    %v2212 = vunpack.c.l.b16 %v1465
    %v2213 = vunpack.c.h.b16 %v1465
    %v2214 = vunpack.c.l.b16 %v1466
    %v2215 = vunpack.c.h.b16 %v1466
    %v2216 = vunpack.c.l.b16 %v1467
    %v2217 = vunpack.c.h.b16 %v1467
    %v2218 = vunpack.c.l.b16 %v1468
    %v2219 = vunpack.c.h.b16 %v1468
    %v2220 = vunpack.c.l.b16 %v1469
    %v2221 = vunpack.c.h.b16 %v1469
    %v2222 = vunpack.c.l.b16 %v1470
    %v2223 = vunpack.c.h.b16 %v1470
    %v2224 = vunpack.c.l.b16 %v1471
    %v2225 = vunpack.c.h.b16 %v1471
    %v2226 = vunpack.c.l.b16 %v1472
    %v2227 = vunpack.c.h.b16 %v1472
    %v2228 = vunpack.c.l.b16 %v1473
    %v2229 = vunpack.c.h.b16 %v1473
    %v2230 = vunpack.c.l.b16 %v1474
    %v2231 = vunpack.c.h.b16 %v1474
    %v2232 = vunpack.c.l.b16 %v1475
    %v2233 = vunpack.c.h.b16 %v1475
    %v2234 = vunpack.c.l.b16 %v1476
    %v2235 = vunpack.c.h.b16 %v1476
    %v2236 = vunpack.c.l.b16 %v1477
    %v2237 = vunpack.c.h.b16 %v1477
    %v2238 = vunpack.c.l.b16 %v1478
    %v2239 = vunpack.c.h.b16 %v1478
    %v2240 = vunpack.c.l.b16 %v1479
    %v2241 = vunpack.c.h.b16 %v1479
    %v2242 = vunpack.c.l.b16 %v1480
    %v2243 = vunpack.c.h.b16 %v1480
    %v2244 = vunpack.c.l.b16 %v1481
    %v2245 = vunpack.c.h.b16 %v1481
    %v2246 = vunpack.c.l.b16 %v1482
    %v2247 = vunpack.c.h.b16 %v1482
    %v2248 = vunpack.c.l.b16 %v1483
    %v2249 = vunpack.c.h.b16 %v1483
    %v2250 = vunpack.c.l.b16 %v1484
    %v2251 = vunpack.c.h.b16 %v1484
    %v2252 = vunpack.c.l.b16 %v1485
    %v2253 = vunpack.c.h.b16 %v1485
    %v2254 = vunpack.c.l.b16 %v1486
    %v2255 = vunpack.c.h.b16 %v1486
    %v2256 = vunpack.c.l.b16 %v1487
    %v2257 = vunpack.c.h.b16 %v1487
    %v2258 = vunpack.c.l.b16 %v1488
    %v2259 = vunpack.c.h.b16 %v1488
    %v2260 = vunpack.c.l.b16 %v1489
    %v2261 = vunpack.c.h.b16 %v1489
    %v2262 = vunpack.c.l.b16 %v1490
    %v2263 = vunpack.c.h.b16 %v1490
    %v2264 = vunpack.c.l.b16 %v1491
    %v2265 = vunpack.c.h.b16 %v1491
    %v2266 = vunpack.c.l.b16 %v1492
    %v2267 = vunpack.c.h.b16 %v1492
    %v2268 = vunpack.c.l.b16 %v1493
    %v2269 = vunpack.c.h.b16 %v1493
    %v2270 = vunpack.c.l.b16 %v1494
    %v2271 = vunpack.c.h.b16 %v1494
    %v2272 = vunpack.c.l.b16 %v1495
    %v2273 = vunpack.c.h.b16 %v1495
    %v2274 = vunpack.c.l.b16 %v1496
    %v2275 = vunpack.c.h.b16 %v1496
    %v2276 = vunpack.c.l.b16 %v1497
    %v2277 = vunpack.c.h.b16 %v1497
    %v2278 = vunpack.c.l.b16 %v1498
    %v2279 = vunpack.c.h.b16 %v1498
    %v2280 = vunpack.c.l.b16 %v1499
    %v2281 = vunpack.c.h.b16 %v1499
    %v2282 = vunpack.c.l.b16 %v1500
    %v2283 = vunpack.c.h.b16 %v1500
    %v2284 = vunpack.c.l.b16 %v1501
    %v2285 = vunpack.c.h.b16 %v1501
    %v2286 = vunpack.c.l.b16 %v1502
    %v2287 = vunpack.c.h.b16 %v1502
    %v2288 = vunpack.c.l.b16 %v1503
    %v2289 = vunpack.c.h.b16 %v1503
    %v2290 = vunpack.c.l.b16 %v1504
    %v2291 = vunpack.c.h.b16 %v1504
    %v2292 = vunpack.c.l.b16 %v1505
    %v2293 = vunpack.c.h.b16 %v1505
    %v2294 = vunpack.c.l.b16 %v1506
    %v2295 = vunpack.c.h.b16 %v1506
    %v2296 = vunpack.c.l.b16 %v1507
    %v2297 = vunpack.c.h.b16 %v1507
    %v2298 = vpack.c.b16 %v1790, %v1786
    %v2299 = vpack.c.b16 %v1791, %v1787
    %v2300 = vpack.c.b16 %v1792, %v1788
    %v2301 = vpack.c.b16 %v1793, %v1789
    %v2302 = vpack.c.b16 %v1798, %v1794
    %v2303 = vpack.c.b16 %v1799, %v1795
    %v2304 = vpack.c.b16 %v1800, %v1796
    %v2305 = vpack.c.b16 %v1801, %v1797
    %v2306 = vpack.c.b16 %v1806, %v1802
    %v2307 = vpack.c.b16 %v1807, %v1803
    %v2308 = vpack.c.b16 %v1808, %v1804
    %v2309 = vpack.c.b16 %v1809, %v1805
    %v2310 = vpack.c.b16 %v1814, %v1810
    %v2311 = vpack.c.b16 %v1815, %v1811
    %v2312 = vpack.c.b16 %v1816, %v1812
    %v2313 = vpack.c.b16 %v1817, %v1813
    %v2314 = vpack.c.b16 %v1822, %v1818
    %v2315 = vpack.c.b16 %v1823, %v1819
    %v2316 = vpack.c.b16 %v1824, %v1820
    %v2317 = vpack.c.b16 %v1825, %v1821
    %v2318 = vpack.c.b16 %v1830, %v1826
    %v2319 = vpack.c.b16 %v1831, %v1827
    %v2320 = vpack.c.b16 %v1832, %v1828
    %v2321 = vpack.c.b16 %v1833, %v1829
    %v2322 = vpack.c.b16 %v1838, %v1834
    %v2323 = vpack.c.b16 %v1839, %v1835
    %v2324 = vpack.c.b16 %v1840, %v1836
    %v2325 = vpack.c.b16 %v1841, %v1837
    %v2326 = vpack.c.b16 %v1846, %v1842
    %v2327 = vpack.c.b16 %v1847, %v1843
    %v2328 = vpack.c.b16 %v1848, %v1844
    %v2329 = vpack.c.b16 %v1849, %v1845
    %v2330 = vpack.c.b16 %v1854, %v1850
    %v2331 = vpack.c.b16 %v1855, %v1851
    %v2332 = vpack.c.b16 %v1856, %v1852
    %v2333 = vpack.c.b16 %v1857, %v1853
    %v2334 = vpack.c.b16 %v1862, %v1858
    %v2335 = vpack.c.b16 %v1863, %v1859
    %v2336 = vpack.c.b16 %v1864, %v1860
    %v2337 = vpack.c.b16 %v1865, %v1861
    %v2338 = vpack.c.b16 %v1870, %v1866
    %v2339 = vpack.c.b16 %v1871, %v1867
    %v2340 = vpack.c.b16 %v1872, %v1868
    %v2341 = vpack.c.b16 %v1873, %v1869
    %v2342 = vpack.c.b16 %v1878, %v1874
    %v2343 = vpack.c.b16 %v1879, %v1875
    %v2344 = vpack.c.b16 %v1880, %v1876
    %v2345 = vpack.c.b16 %v1881, %v1877
    %v2346 = vpack.c.b16 %v1886, %v1882
    %v2347 = vpack.c.b16 %v1887, %v1883
    %v2348 = vpack.c.b16 %v1888, %v1884
    %v2349 = vpack.c.b16 %v1889, %v1885
    %v2350 = vpack.c.b16 %v1894, %v1890
    %v2351 = vpack.c.b16 %v1895, %v1891
    %v2352 = vpack.c.b16 %v1896, %v1892
    %v2353 = vpack.c.b16 %v1897, %v1893
    %v2354 = vpack.c.b16 %v1902, %v1898
    %v2355 = vpack.c.b16 %v1903, %v1899
    %v2356 = vpack.c.b16 %v1904, %v1900
    %v2357 = vpack.c.b16 %v1905, %v1901
    %v2358 = vpack.c.b16 %v1910, %v1906
    %v2359 = vpack.c.b16 %v1911, %v1907
    %v2360 = vpack.c.b16 %v1912, %v1908
    %v2361 = vpack.c.b16 %v1913, %v1909
    %v2362 = vpack.c.b16 %v1918, %v1914
    %v2363 = vpack.c.b16 %v1919, %v1915
    %v2364 = vpack.c.b16 %v1920, %v1916
    %v2365 = vpack.c.b16 %v1921, %v1917
    %v2366 = vpack.c.b16 %v1926, %v1922
    %v2367 = vpack.c.b16 %v1927, %v1923
    %v2368 = vpack.c.b16 %v1928, %v1924
    %v2369 = vpack.c.b16 %v1929, %v1925
    %v2370 = vpack.c.b16 %v1934, %v1930
    %v2371 = vpack.c.b16 %v1935, %v1931
    %v2372 = vpack.c.b16 %v1936, %v1932
    %v2373 = vpack.c.b16 %v1937, %v1933
    %v2374 = vpack.c.b16 %v1942, %v1938
    %v2375 = vpack.c.b16 %v1943, %v1939
    %v2376 = vpack.c.b16 %v1944, %v1940
    %v2377 = vpack.c.b16 %v1945, %v1941
    %v2378 = vpack.c.b16 %v1950, %v1946
    %v2379 = vpack.c.b16 %v1951, %v1947
    %v2380 = vpack.c.b16 %v1952, %v1948
    %v2381 = vpack.c.b16 %v1953, %v1949
    %v2382 = vpack.c.b16 %v1958, %v1954
    %v2383 = vpack.c.b16 %v1959, %v1955
    %v2384 = vpack.c.b16 %v1960, %v1956
    %v2385 = vpack.c.b16 %v1961, %v1957
    %v2386 = vpack.c.b16 %v1966, %v1962
    %v2387 = vpack.c.b16 %v1967, %v1963
    %v2388 = vpack.c.b16 %v1968, %v1964
    %v2389 = vpack.c.b16 %v1969, %v1965
    %v2390 = vpack.c.b16 %v1974, %v1970
    %v2391 = vpack.c.b16 %v1975, %v1971
    %v2392 = vpack.c.b16 %v1976, %v1972
    %v2393 = vpack.c.b16 %v1977, %v1973
    %v2394 = vpack.c.b16 %v1982, %v1978
    %v2395 = vpack.c.b16 %v1983, %v1979
    %v2396 = vpack.c.b16 %v1984, %v1980
    %v2397 = vpack.c.b16 %v1985, %v1981
    %v2398 = vpack.c.b16 %v1990, %v1986
    %v2399 = vpack.c.b16 %v1991, %v1987
    %v2400 = vpack.c.b16 %v1992, %v1988
    %v2401 = vpack.c.b16 %v1993, %v1989
    %v2402 = vpack.c.b16 %v1998, %v1994
    %v2403 = vpack.c.b16 %v1999, %v1995
    %v2404 = vpack.c.b16 %v2000, %v1996
    %v2405 = vpack.c.b16 %v2001, %v1997
    %v2406 = vpack.c.b16 %v2006, %v2002
    %v2407 = vpack.c.b16 %v2007, %v2003
    %v2408 = vpack.c.b16 %v2008, %v2004
    %v2409 = vpack.c.b16 %v2009, %v2005
    %v2410 = vpack.c.b16 %v2014, %v2010
    %v2411 = vpack.c.b16 %v2015, %v2011
    %v2412 = vpack.c.b16 %v2016, %v2012
    %v2413 = vpack.c.b16 %v2017, %v2013
    %v2414 = vpack.c.b16 %v2022, %v2018
    %v2415 = vpack.c.b16 %v2023, %v2019
    %v2416 = vpack.c.b16 %v2024, %v2020
    %v2417 = vpack.c.b16 %v2025, %v2021
    %v2418 = vpack.c.b16 %v2030, %v2026
    %v2419 = vpack.c.b16 %v2031, %v2027
    %v2420 = vpack.c.b16 %v2032, %v2028
    %v2421 = vpack.c.b16 %v2033, %v2029
    %v2422 = vpack.c.b16 %v2038, %v2034
    %v2423 = vpack.c.b16 %v2039, %v2035
    %v2424 = vpack.c.b16 %v2040, %v2036
    %v2425 = vpack.c.b16 %v2041, %v2037
    %v2426 = vpack.c.b16 %v2046, %v2042
    %v2427 = vpack.c.b16 %v2047, %v2043
    %v2428 = vpack.c.b16 %v2048, %v2044
    %v2429 = vpack.c.b16 %v2049, %v2045
    %v2430 = vpack.c.b16 %v2054, %v2050
    %v2431 = vpack.c.b16 %v2055, %v2051
    %v2432 = vpack.c.b16 %v2056, %v2052
    %v2433 = vpack.c.b16 %v2057, %v2053
    %v2434 = vpack.c.b16 %v2062, %v2058
    %v2435 = vpack.c.b16 %v2063, %v2059
    %v2436 = vpack.c.b16 %v2064, %v2060
    %v2437 = vpack.c.b16 %v2065, %v2061
    %v2438 = vpack.c.b16 %v2070, %v2066
    %v2439 = vpack.c.b16 %v2071, %v2067
    %v2440 = vpack.c.b16 %v2072, %v2068
    %v2441 = vpack.c.b16 %v2073, %v2069
    %v2442 = vpack.c.b16 %v2078, %v2074
    %v2443 = vpack.c.b16 %v2079, %v2075
    %v2444 = vpack.c.b16 %v2080, %v2076
    %v2445 = vpack.c.b16 %v2081, %v2077
    %v2446 = vpack.c.b16 %v2086, %v2082
    %v2447 = vpack.c.b16 %v2087, %v2083
    %v2448 = vpack.c.b16 %v2088, %v2084
    %v2449 = vpack.c.b16 %v2089, %v2085
    %v2450 = vpack.c.b16 %v2094, %v2090
    %v2451 = vpack.c.b16 %v2095, %v2091
    %v2452 = vpack.c.b16 %v2096, %v2092
    %v2453 = vpack.c.b16 %v2097, %v2093
    %v2454 = vpack.c.b16 %v2102, %v2098
    %v2455 = vpack.c.b16 %v2103, %v2099
    %v2456 = vpack.c.b16 %v2104, %v2100
    %v2457 = vpack.c.b16 %v2105, %v2101
    %v2458 = vpack.c.b16 %v2110, %v2106
    %v2459 = vpack.c.b16 %v2111, %v2107
    %v2460 = vpack.c.b16 %v2112, %v2108
    %v2461 = vpack.c.b16 %v2113, %v2109
    %v2462 = vpack.c.b16 %v2118, %v2114
    %v2463 = vpack.c.b16 %v2119, %v2115
    %v2464 = vpack.c.b16 %v2120, %v2116
    %v2465 = vpack.c.b16 %v2121, %v2117
    %v2466 = vpack.c.b16 %v2126, %v2122
    %v2467 = vpack.c.b16 %v2127, %v2123
    %v2468 = vpack.c.b16 %v2128, %v2124
    %v2469 = vpack.c.b16 %v2129, %v2125
    %v2470 = vpack.c.b16 %v2134, %v2130
    %v2471 = vpack.c.b16 %v2135, %v2131
    %v2472 = vpack.c.b16 %v2136, %v2132
    %v2473 = vpack.c.b16 %v2137, %v2133
    %v2474 = vpack.c.b16 %v2142, %v2138
    %v2475 = vpack.c.b16 %v2143, %v2139
    %v2476 = vpack.c.b16 %v2144, %v2140
    %v2477 = vpack.c.b16 %v2145, %v2141
    %v2478 = vpack.c.b16 %v2150, %v2146
    %v2479 = vpack.c.b16 %v2151, %v2147
    %v2480 = vpack.c.b16 %v2152, %v2148
    %v2481 = vpack.c.b16 %v2153, %v2149
    %v2482 = vpack.c.b16 %v2158, %v2154
    %v2483 = vpack.c.b16 %v2159, %v2155
    %v2484 = vpack.c.b16 %v2160, %v2156
    %v2485 = vpack.c.b16 %v2161, %v2157
    %v2486 = vpack.c.b16 %v2166, %v2162
    %v2487 = vpack.c.b16 %v2167, %v2163
    %v2488 = vpack.c.b16 %v2168, %v2164
    %v2489 = vpack.c.b16 %v2169, %v2165
    %v2490 = vpack.c.b16 %v2174, %v2170
    %v2491 = vpack.c.b16 %v2175, %v2171
    %v2492 = vpack.c.b16 %v2176, %v2172
    %v2493 = vpack.c.b16 %v2177, %v2173
    %v2494 = vpack.c.b16 %v2182, %v2178
    %v2495 = vpack.c.b16 %v2183, %v2179
    %v2496 = vpack.c.b16 %v2184, %v2180
    %v2497 = vpack.c.b16 %v2185, %v2181
    %v2498 = vpack.c.b16 %v2190, %v2186
    %v2499 = vpack.c.b16 %v2191, %v2187
    %v2500 = vpack.c.b16 %v2192, %v2188
    %v2501 = vpack.c.b16 %v2193, %v2189
    %v2502 = vpack.c.b16 %v2198, %v2194
    %v2503 = vpack.c.b16 %v2199, %v2195
    %v2504 = vpack.c.b16 %v2200, %v2196
    %v2505 = vpack.c.b16 %v2201, %v2197
    %v2506 = vpack.c.b16 %v2206, %v2202
    %v2507 = vpack.c.b16 %v2207, %v2203
    %v2508 = vpack.c.b16 %v2208, %v2204
    %v2509 = vpack.c.b16 %v2209, %v2205
    %v2510 = vpack.c.b16 %v2214, %v2210
    %v2511 = vpack.c.b16 %v2215, %v2211
    %v2512 = vpack.c.b16 %v2216, %v2212
    %v2513 = vpack.c.b16 %v2217, %v2213
    %v2514 = vpack.c.b16 %v2222, %v2218
    %v2515 = vpack.c.b16 %v2223, %v2219
    %v2516 = vpack.c.b16 %v2224, %v2220
    %v2517 = vpack.c.b16 %v2225, %v2221
    %v2518 = vpack.c.b16 %v2230, %v2226
    %v2519 = vpack.c.b16 %v2231, %v2227
    %v2520 = vpack.c.b16 %v2232, %v2228
    %v2521 = vpack.c.b16 %v2233, %v2229
    %v2522 = vpack.c.b16 %v2238, %v2234
    %v2523 = vpack.c.b16 %v2239, %v2235
    %v2524 = vpack.c.b16 %v2240, %v2236
    %v2525 = vpack.c.b16 %v2241, %v2237
    %v2526 = vpack.c.b16 %v2246, %v2242
    %v2527 = vpack.c.b16 %v2247, %v2243
    %v2528 = vpack.c.b16 %v2248, %v2244
    %v2529 = vpack.c.b16 %v2249, %v2245
    %v2530 = vpack.c.b16 %v2254, %v2250
    %v2531 = vpack.c.b16 %v2255, %v2251
    %v2532 = vpack.c.b16 %v2256, %v2252
    %v2533 = vpack.c.b16 %v2257, %v2253
    %v2534 = vpack.c.b16 %v2262, %v2258
    %v2535 = vpack.c.b16 %v2263, %v2259
    %v2536 = vpack.c.b16 %v2264, %v2260
    %v2537 = vpack.c.b16 %v2265, %v2261
    %v2538 = vpack.c.b16 %v2270, %v2266
    %v2539 = vpack.c.b16 %v2271, %v2267
    %v2540 = vpack.c.b16 %v2272, %v2268
    %v2541 = vpack.c.b16 %v2273, %v2269
    %v2542 = vpack.c.b16 %v2278, %v2274
    %v2543 = vpack.c.b16 %v2279, %v2275
    %v2544 = vpack.c.b16 %v2280, %v2276
    %v2545 = vpack.c.b16 %v2281, %v2277
    %v2546 = vpack.c.b16 %v2286, %v2282
    %v2547 = vpack.c.b16 %v2287, %v2283
    %v2548 = vpack.c.b16 %v2288, %v2284
    %v2549 = vpack.c.b16 %v2289, %v2285
    %v2550 = vpack.c.b16 %v2294, %v2290
    %v2551 = vpack.c.b16 %v2295, %v2291
    %v2552 = vpack.c.b16 %v2296, %v2292
    %v2553 = vpack.c.b16 %v2297, %v2293
    %2810 = vmatprep.subr.bf16.mxu0 %v2327
    %2811 = vmatpush1.bf16.msra.mxu0 %v2326
    %2812 = vmatprep.subr.bf16.mxu0 %v2323
    %2813 = vmatpush1.bf16.msra.mxu0 %v2322
    %2814 = vmatprep.subr.bf16.mxu0 %v2319
    %2815 = vmatpush1.bf16.msra.mxu0 %v2318
    %2816 = vmatprep.subr.bf16.mxu0 %v2315
    %2817 = vmatpush1.bf16.msra.mxu0 %v2314
    %2818 = vmatprep.subr.bf16.mxu0 %v2311
    %2819 = vmatpush1.bf16.msra.mxu0 %v2310
    %2820 = vmatprep.subr.bf16.mxu0 %v2307
    %2821 = vmatpush1.bf16.msra.mxu0 %v2306
    %2822 = vmatprep.subr.bf16.mxu0 %v2303
    %2823 = vmatpush1.bf16.msra.mxu0 %v2302
    %2824 = vmatprep.subr.bf16.mxu0 %v2299
    %2825 = vmatpush1.bf16.msra.mxu0 %v2298
    %2826 = vmatprep.subr.bf16.mxu0 %v2359
    %2827 = vmatpush2.bf16.msra.mxu0 %v2358
    %2828 = vmatprep.subr.bf16.mxu0 %v2355
    %2829 = vmatpush2.bf16.msra.mxu0 %v2354
    %2830 = vmatprep.subr.bf16.mxu0 %v2351
    %2831 = vmatpush2.bf16.msra.mxu0 %v2350
    %2832 = vmatprep.subr.bf16.mxu0 %v2347
    %2833 = vmatpush2.bf16.msra.mxu0 %v2346
    %2834 = vmatprep.subr.bf16.mxu0 %v2343
    %2835 = vmatpush2.bf16.msra.mxu0 %v2342
    %2836 = vmatprep.subr.bf16.mxu0 %v2339
    %2837 = vmatpush2.bf16.msra.mxu0 %v2338
    %2838 = vmatprep.subr.bf16.mxu0 %v2335
    %2839 = vmatpush2.bf16.msra.mxu0 %v2334
    %2840 = vmatprep.subr.bf16.mxu0 %v2331
    %2841 = vmatpush2.bf16.msra.mxu0 %v2330
    %2842 = vmatprep.mubr.bf16.mxu0 %v1245
    %2843 = vmatmul.mubr.bf16.gmra.mxu0 %v1244
    %v2844 = vpop.f32.mrf.mxu0
    %v2845 = vadd.f32 %v1513, %v2844
    %v2846 = vpop.f32.mrf.mxu0
    %v2847 = vadd.f32 %v1517, %v2846
    %v2848 = vpop.f32.mrf.mxu0
    %v2849 = vpop.f32.mrf.mxu0
    %2850 = vdwg.mxu0
    %2851 = vmatprep.subr.bf16.mxu0 %v2391
    %2852 = vmatpush1.bf16.msra.mxu0 %v2390
    %2853 = vmatprep.subr.bf16.mxu0 %v2387
    %2854 = vmatpush1.bf16.msra.mxu0 %v2386
    %2855 = vmatprep.subr.bf16.mxu0 %v2383
    %2856 = vmatpush1.bf16.msra.mxu0 %v2382
    %2857 = vmatprep.subr.bf16.mxu0 %v2379
    %2858 = vmatpush1.bf16.msra.mxu0 %v2378
    %2859 = vmatprep.subr.bf16.mxu0 %v2375
    %2860 = vmatpush1.bf16.msra.mxu0 %v2374
    %2861 = vmatprep.subr.bf16.mxu0 %v2371
    %2862 = vmatpush1.bf16.msra.mxu0 %v2370
    %2863 = vmatprep.subr.bf16.mxu0 %v2367
    %2864 = vmatpush1.bf16.msra.mxu0 %v2366
    %2865 = vmatprep.subr.bf16.mxu0 %v2363
    %2866 = vmatpush1.bf16.msra.mxu0 %v2362
    %2867 = vmatprep.subr.bf16.mxu0 %v2423
    %2868 = vmatpush2.bf16.msra.mxu0 %v2422
    %2869 = vmatprep.subr.bf16.mxu0 %v2419
    %2870 = vmatpush2.bf16.msra.mxu0 %v2418
    %2871 = vmatprep.subr.bf16.mxu0 %v2415
    %2872 = vmatpush2.bf16.msra.mxu0 %v2414
    %2873 = vmatprep.subr.bf16.mxu0 %v2411
    %2874 = vmatpush2.bf16.msra.mxu0 %v2410
    %2875 = vmatprep.subr.bf16.mxu0 %v2407
    %2876 = vmatpush2.bf16.msra.mxu0 %v2406
    %2877 = vmatprep.subr.bf16.mxu0 %v2403
    %2878 = vmatpush2.bf16.msra.mxu0 %v2402
    %2879 = vmatprep.subr.bf16.mxu0 %v2399
    %2880 = vmatpush2.bf16.msra.mxu0 %v2398
    %2881 = vmatprep.subr.bf16.mxu0 %v2395
    %2882 = vmatpush2.bf16.msra.mxu0 %v2394
    %2883 = vmatprep.mubr.bf16.mxu0 %v1247
    %2884 = vmatmul.mubr.bf16.gmra.mxu0 %v1246
    %v2885 = vpop.f32.mrf.mxu0
    %v2886 = vadd.f32 %v2845, %v2885
    %v2887 = vpop.f32.mrf.mxu0
    %v2888 = vadd.f32 %v2847, %v2887
    %v2889 = vpop.f32.mrf.mxu0
    %v2890 = vpop.f32.mrf.mxu0
    %2891 = vdwg.mxu0
    %2892 = vmatprep.subr.bf16.mxu0 %v2455
    %2893 = vmatpush1.bf16.msra.mxu0 %v2454
    %2894 = vmatprep.subr.bf16.mxu0 %v2451
    %2895 = vmatpush1.bf16.msra.mxu0 %v2450
    %2896 = vmatprep.subr.bf16.mxu0 %v2447
    %2897 = vmatpush1.bf16.msra.mxu0 %v2446
    %2898 = vmatprep.subr.bf16.mxu0 %v2443
    %2899 = vmatpush1.bf16.msra.mxu0 %v2442
    %2900 = vmatprep.subr.bf16.mxu0 %v2439
    %2901 = vmatpush1.bf16.msra.mxu0 %v2438
    %2902 = vmatprep.subr.bf16.mxu0 %v2435
    %2903 = vmatpush1.bf16.msra.mxu0 %v2434
    %2904 = vmatprep.subr.bf16.mxu0 %v2431
    %2905 = vmatpush1.bf16.msra.mxu0 %v2430
    %2906 = vmatprep.subr.bf16.mxu0 %v2427
    %2907 = vmatpush1.bf16.msra.mxu0 %v2426
    %2908 = vmatprep.subr.bf16.mxu0 %v2487
    %2909 = vmatpush2.bf16.msra.mxu0 %v2486
    %2910 = vmatprep.subr.bf16.mxu0 %v2483
    %2911 = vmatpush2.bf16.msra.mxu0 %v2482
    %2912 = vmatprep.subr.bf16.mxu0 %v2479
    %2913 = vmatpush2.bf16.msra.mxu0 %v2478
    %2914 = vmatprep.subr.bf16.mxu0 %v2475
    %2915 = vmatpush2.bf16.msra.mxu0 %v2474
    %2916 = vmatprep.subr.bf16.mxu0 %v2471
    %2917 = vmatpush2.bf16.msra.mxu0 %v2470
    %2918 = vmatprep.subr.bf16.mxu0 %v2467
    %2919 = vmatpush2.bf16.msra.mxu0 %v2466
    %2920 = vmatprep.subr.bf16.mxu0 %v2463
    %2921 = vmatpush2.bf16.msra.mxu0 %v2462
    %2922 = vmatprep.subr.bf16.mxu0 %v2459
    %2923 = vmatpush2.bf16.msra.mxu0 %v2458
    %2924 = vmatprep.mubr.bf16.mxu0 %v1249
    %2925 = vmatmul.mubr.bf16.gmra.mxu0 %v1248
    %v2926 = vpop.f32.mrf.mxu0
    %v2927 = vadd.f32 %v2886, %v2926
    %v2928 = vpop.f32.mrf.mxu0
    %v2929 = vadd.f32 %v2888, %v2928
    %v2930 = vpop.f32.mrf.mxu0
    %v2931 = vpop.f32.mrf.mxu0
    %2932 = vdwg.mxu0
    %2933 = vmatprep.subr.bf16.mxu0 %v2519
    %2934 = vmatpush1.bf16.msra.mxu0 %v2518
    %2935 = vmatprep.subr.bf16.mxu0 %v2515
    %2936 = vmatpush1.bf16.msra.mxu0 %v2514
    %2937 = vmatprep.subr.bf16.mxu0 %v2511
    %2938 = vmatpush1.bf16.msra.mxu0 %v2510
    %2939 = vmatprep.subr.bf16.mxu0 %v2507
    %2940 = vmatpush1.bf16.msra.mxu0 %v2506
    %2941 = vmatprep.subr.bf16.mxu0 %v2503
    %2942 = vmatpush1.bf16.msra.mxu0 %v2502
    %2943 = vmatprep.subr.bf16.mxu0 %v2499
    %2944 = vmatpush1.bf16.msra.mxu0 %v2498
    %2945 = vmatprep.subr.bf16.mxu0 %v2495
    %2946 = vmatpush1.bf16.msra.mxu0 %v2494
    %2947 = vmatprep.subr.bf16.mxu0 %v2491
    %2948 = vmatpush1.bf16.msra.mxu0 %v2490
    %2949 = vmatprep.subr.bf16.mxu0 %v2551
    %2950 = vmatpush2.bf16.msra.mxu0 %v2550
    %2951 = vmatprep.subr.bf16.mxu0 %v2547
    %2952 = vmatpush2.bf16.msra.mxu0 %v2546
    %2953 = vmatprep.subr.bf16.mxu0 %v2543
    %2954 = vmatpush2.bf16.msra.mxu0 %v2542
    %2955 = vmatprep.subr.bf16.mxu0 %v2539
    %2956 = vmatpush2.bf16.msra.mxu0 %v2538
    %2957 = vmatprep.subr.bf16.mxu0 %v2535
    %2958 = vmatpush2.bf16.msra.mxu0 %v2534
    %2959 = vmatprep.subr.bf16.mxu0 %v2531
    %2960 = vmatpush2.bf16.msra.mxu0 %v2530
    %2961 = vmatprep.subr.bf16.mxu0 %v2527
    %2962 = vmatpush2.bf16.msra.mxu0 %v2526
    %2963 = vmatprep.subr.bf16.mxu0 %v2523
    %2964 = vmatpush2.bf16.msra.mxu0 %v2522
    %2965 = vmatprep.mubr.bf16.mxu0 %v1251
    %2966 = vmatmul.mubr.bf16.gmra.mxu0 %v1250
    %v2967 = vpop.f32.mrf.mxu0
    %v2968 = vadd.f32 %v2927, %v2967
    %v2969 = vpop.f32.mrf.mxu0
    %v2970 = vadd.f32 %v2929, %v2969
    %v2971 = vpop.f32.mrf.mxu0
    %v2972 = vpop.f32.mrf.mxu0
    %2973 = vdwg.mxu0
    %2974 = vmatprep.subr.bf16.mxu0 %v2329
    %2975 = vmatpush1.bf16.msra.mxu0 %v2328
    %2976 = vmatprep.subr.bf16.mxu0 %v2325
    %2977 = vmatpush1.bf16.msra.mxu0 %v2324
    %2978 = vmatprep.subr.bf16.mxu0 %v2321
    %2979 = vmatpush1.bf16.msra.mxu0 %v2320
    %2980 = vmatprep.subr.bf16.mxu0 %v2317
    %2981 = vmatpush1.bf16.msra.mxu0 %v2316
    %2982 = vmatprep.subr.bf16.mxu0 %v2313
    %2983 = vmatpush1.bf16.msra.mxu0 %v2312
    %2984 = vmatprep.subr.bf16.mxu0 %v2309
    %2985 = vmatpush1.bf16.msra.mxu0 %v2308
    %2986 = vmatprep.subr.bf16.mxu0 %v2305
    %2987 = vmatpush1.bf16.msra.mxu0 %v2304
    %2988 = vmatprep.subr.bf16.mxu0 %v2301
    %2989 = vmatpush1.bf16.msra.mxu0 %v2300
    %2990 = vmatprep.subr.bf16.mxu0 %v2361
    %2991 = vmatpush2.bf16.msra.mxu0 %v2360
    %2992 = vmatprep.subr.bf16.mxu0 %v2357
    %2993 = vmatpush2.bf16.msra.mxu0 %v2356
    %2994 = vmatprep.subr.bf16.mxu0 %v2353
    %2995 = vmatpush2.bf16.msra.mxu0 %v2352
    %2996 = vmatprep.subr.bf16.mxu0 %v2349
    %2997 = vmatpush2.bf16.msra.mxu0 %v2348
    %2998 = vmatprep.subr.bf16.mxu0 %v2345
    %2999 = vmatpush2.bf16.msra.mxu0 %v2344
    %3000 = vmatprep.subr.bf16.mxu0 %v2341
    %3001 = vmatpush2.bf16.msra.mxu0 %v2340
    %3002 = vmatprep.subr.bf16.mxu0 %v2337
    %3003 = vmatpush2.bf16.msra.mxu0 %v2336
    %3004 = vmatprep.subr.bf16.mxu0 %v2333
    %3005 = vmatpush2.bf16.msra.mxu0 %v2332
    %3006 = vmatprep.mubr.bf16.mxu0 %v1245
    %3007 = vmatmul.mubr.bf16.gmra.mxu0 %v1244
    %v3008 = vpop.f32.mrf.mxu0
    %v3009 = vadd.f32 %v1521, %v3008
    %v3010 = vpop.f32.mrf.mxu0
    %v3011 = vadd.f32 %v1525, %v3010
    %v3012 = vpop.f32.mrf.mxu0
    %v3013 = vpop.f32.mrf.mxu0
    %3014 = vdwg.mxu0
    %3015 = vmatprep.subr.bf16.mxu0 %v2393
    %3016 = vmatpush1.bf16.msra.mxu0 %v2392
    %3017 = vmatprep.subr.bf16.mxu0 %v2389
    %3018 = vmatpush1.bf16.msra.mxu0 %v2388
    %3019 = vmatprep.subr.bf16.mxu0 %v2385
    %3020 = vmatpush1.bf16.msra.mxu0 %v2384
    %3021 = vmatprep.subr.bf16.mxu0 %v2381
    %3022 = vmatpush1.bf16.msra.mxu0 %v2380
    %3023 = vmatprep.subr.bf16.mxu0 %v2377
    %3024 = vmatpush1.bf16.msra.mxu0 %v2376
    %3025 = vmatprep.subr.bf16.mxu0 %v2373
    %3026 = vmatpush1.bf16.msra.mxu0 %v2372
    %3027 = vmatprep.subr.bf16.mxu0 %v2369
    %3028 = vmatpush1.bf16.msra.mxu0 %v2368
    %3029 = vmatprep.subr.bf16.mxu0 %v2365
    %3030 = vmatpush1.bf16.msra.mxu0 %v2364
    %3031 = vmatprep.subr.bf16.mxu0 %v2425
    %3032 = vmatpush2.bf16.msra.mxu0 %v2424
    %3033 = vmatprep.subr.bf16.mxu0 %v2421
    %3034 = vmatpush2.bf16.msra.mxu0 %v2420
    %3035 = vmatprep.subr.bf16.mxu0 %v2417
    %3036 = vmatpush2.bf16.msra.mxu0 %v2416
    %3037 = vmatprep.subr.bf16.mxu0 %v2413
    %3038 = vmatpush2.bf16.msra.mxu0 %v2412
    %3039 = vmatprep.subr.bf16.mxu0 %v2409
    %3040 = vmatpush2.bf16.msra.mxu0 %v2408
    %3041 = vmatprep.subr.bf16.mxu0 %v2405
    %3042 = vmatpush2.bf16.msra.mxu0 %v2404
    %3043 = vmatprep.subr.bf16.mxu0 %v2401
    %3044 = vmatpush2.bf16.msra.mxu0 %v2400
    %3045 = vmatprep.subr.bf16.mxu0 %v2397
    %3046 = vmatpush2.bf16.msra.mxu0 %v2396
    %3047 = vmatprep.mubr.bf16.mxu0 %v1247
    %3048 = vmatmul.mubr.bf16.gmra.mxu0 %v1246
    %v3049 = vpop.f32.mrf.mxu0
    %v3050 = vadd.f32 %v3009, %v3049
    %v3051 = vpop.f32.mrf.mxu0
    %v3052 = vadd.f32 %v3011, %v3051
    %v3053 = vpop.f32.mrf.mxu0
    %v3054 = vpop.f32.mrf.mxu0
    %3055 = vdwg.mxu0
    %3056 = vmatprep.subr.bf16.mxu0 %v2457
    %3057 = vmatpush1.bf16.msra.mxu0 %v2456
    %3058 = vmatprep.subr.bf16.mxu0 %v2453
    %3059 = vmatpush1.bf16.msra.mxu0 %v2452
    %3060 = vmatprep.subr.bf16.mxu0 %v2449
    %3061 = vmatpush1.bf16.msra.mxu0 %v2448
    %3062 = vmatprep.subr.bf16.mxu0 %v2445
    %3063 = vmatpush1.bf16.msra.mxu0 %v2444
    %3064 = vmatprep.subr.bf16.mxu0 %v2441
    %3065 = vmatpush1.bf16.msra.mxu0 %v2440
    %3066 = vmatprep.subr.bf16.mxu0 %v2437
    %3067 = vmatpush1.bf16.msra.mxu0 %v2436
    %3068 = vmatprep.subr.bf16.mxu0 %v2433
    %3069 = vmatpush1.bf16.msra.mxu0 %v2432
    %3070 = vmatprep.subr.bf16.mxu0 %v2429
    %3071 = vmatpush1.bf16.msra.mxu0 %v2428
    %3072 = vmatprep.subr.bf16.mxu0 %v2489
    %3073 = vmatpush2.bf16.msra.mxu0 %v2488
    %3074 = vmatprep.subr.bf16.mxu0 %v2485
    %3075 = vmatpush2.bf16.msra.mxu0 %v2484
    %3076 = vmatprep.subr.bf16.mxu0 %v2481
    %3077 = vmatpush2.bf16.msra.mxu0 %v2480
    %3078 = vmatprep.subr.bf16.mxu0 %v2477
    %3079 = vmatpush2.bf16.msra.mxu0 %v2476
    %3080 = vmatprep.subr.bf16.mxu0 %v2473
    %3081 = vmatpush2.bf16.msra.mxu0 %v2472
    %3082 = vmatprep.subr.bf16.mxu0 %v2469
    %3083 = vmatpush2.bf16.msra.mxu0 %v2468
    %3084 = vmatprep.subr.bf16.mxu0 %v2465
    %3085 = vmatpush2.bf16.msra.mxu0 %v2464
    %3086 = vmatprep.subr.bf16.mxu0 %v2461
    %3087 = vmatpush2.bf16.msra.mxu0 %v2460
    %3088 = vmatprep.mubr.bf16.mxu0 %v1249
    %3089 = vmatmul.mubr.bf16.gmra.mxu0 %v1248
    %v3090 = vpop.f32.mrf.mxu0
    %v3091 = vadd.f32 %v3050, %v3090
    %v3092 = vpop.f32.mrf.mxu0
    %v3093 = vadd.f32 %v3052, %v3092
    %v3094 = vpop.f32.mrf.mxu0
    %v3095 = vpop.f32.mrf.mxu0
    %3096 = vdwg.mxu0
    %3097 = vmatprep.subr.bf16.mxu0 %v2521
    %3098 = vmatpush1.bf16.msra.mxu0 %v2520
    %3099 = vmatprep.subr.bf16.mxu0 %v2517
    %3100 = vmatpush1.bf16.msra.mxu0 %v2516
    %3101 = vmatprep.subr.bf16.mxu0 %v2513
    %3102 = vmatpush1.bf16.msra.mxu0 %v2512
    %3103 = vmatprep.subr.bf16.mxu0 %v2509
    %3104 = vmatpush1.bf16.msra.mxu0 %v2508
    %3105 = vmatprep.subr.bf16.mxu0 %v2505
    %3106 = vmatpush1.bf16.msra.mxu0 %v2504
    %3107 = vmatprep.subr.bf16.mxu0 %v2501
    %3108 = vmatpush1.bf16.msra.mxu0 %v2500
    %3109 = vmatprep.subr.bf16.mxu0 %v2497
    %3110 = vmatpush1.bf16.msra.mxu0 %v2496
    %3111 = vmatprep.subr.bf16.mxu0 %v2493
    %3112 = vmatpush1.bf16.msra.mxu0 %v2492
    %3113 = vmatprep.subr.bf16.mxu0 %v2553
    %3114 = vmatpush2.bf16.msra.mxu0 %v2552
    %3115 = vmatprep.subr.bf16.mxu0 %v2549
    %3116 = vmatpush2.bf16.msra.mxu0 %v2548
    %3117 = vmatprep.subr.bf16.mxu0 %v2545
    %3118 = vmatpush2.bf16.msra.mxu0 %v2544
    %3119 = vmatprep.subr.bf16.mxu0 %v2541
    %3120 = vmatpush2.bf16.msra.mxu0 %v2540
    %3121 = vmatprep.subr.bf16.mxu0 %v2537
    %3122 = vmatpush2.bf16.msra.mxu0 %v2536
    %3123 = vmatprep.subr.bf16.mxu0 %v2533
    %3124 = vmatpush2.bf16.msra.mxu0 %v2532
    %3125 = vmatprep.subr.bf16.mxu0 %v2529
    %3126 = vmatpush2.bf16.msra.mxu0 %v2528
    %3127 = vmatprep.subr.bf16.mxu0 %v2525
    %3128 = vmatpush2.bf16.msra.mxu0 %v2524
    %3129 = vmatprep.mubr.bf16.mxu0 %v1251
    %3130 = vmatmul.mubr.bf16.gmra.mxu0 %v1250
    %v3131 = vpop.f32.mrf.mxu0
    %v3132 = vadd.f32 %v3091, %v3131
    %v3133 = vpop.f32.mrf.mxu0
    %v3134 = vadd.f32 %v3093, %v3133
    %v3135 = vpop.f32.mrf.mxu0
    %v3136 = vpop.f32.mrf.mxu0
    %3137 = vdwg.mxu0
    %v3138 = vmax.f32 %v2968, 0.0
    %v3139 = vmax.f32 %v2970, 0.0
    %v3140 = vmax.f32 %v3132, 0.0
    %v3141 = vmax.f32 %v3134, 0.0
    %v3142 = vmin.f32 %v3138, 6.0
    %v3143 = vmin.f32 %v3139, 6.0
    %v3144 = vmin.f32 %v3140, 6.0
    %v3145 = vmin.f32 %v3141, 6.0
    %v3146 = vpack.c.bf16 %v3142, %v3142
    %v3147 = vpack.c.bf16 %v3143, %v3143
    %v3148 = vpack.c.bf16 %v3144, %v3144
    %v3149 = vpack.c.bf16 %v3145, %v3145
    %v3150 = vld [vmem:[#allocation7] sm:$0xff]
    %v3151 = vld [vmem:[#allocation7 + $0x8] sm:$0xff]
    %v3152 = vld [vmem:[#allocation7 + $0x10] sm:$0xff]
    %v3153 = vld [vmem:[#allocation7 + $0x18] sm:$0xff]
    %v3154 = vld [vmem:[#allocation7 + $0x20] sm:$0xff]
    %v3155 = vld [vmem:[#allocation7 + $0x28] sm:$0xff]
    %v3156 = vld [vmem:[#allocation7 + $0x30] sm:$0xff]
    %v3157 = vld [vmem:[#allocation7 + $0x38] sm:$0xff]
    %v3158 = vld [vmem:[#allocation7 + $0x40] sm:$0xff]
    %v3159 = vld [vmem:[#allocation7 + $0x48] sm:$0xff]
    %v3160 = vld [vmem:[#allocation7 + $0x50] sm:$0xff]
    %v3161 = vld [vmem:[#allocation7 + $0x58] sm:$0xff]
    %v3162 = vld [vmem:[#allocation7 + $0x60] sm:$0xff]
    %v3163 = vld [vmem:[#allocation7 + $0x68] sm:$0xff]
    %v3164 = vld [vmem:[#allocation7 + $0x70] sm:$0xff]
    %v3165 = vld [vmem:[#allocation7 + $0x78] sm:$0xff]
    %v3166 = vld [vmem:[#allocation7 + $0x80] sm:$0xff]
    %v3167 = vld [vmem:[#allocation7 + $0x88] sm:$0xff]
    %v3168 = vld [vmem:[#allocation7 + $0x90] sm:$0xff]
    %v3169 = vld [vmem:[#allocation7 + $0x98] sm:$0xff]
    %v3170 = vld [vmem:[#allocation7 + $0xa0] sm:$0xff]
    %v3171 = vld [vmem:[#allocation7 + $0xa8] sm:$0xff]
    %v3172 = vld [vmem:[#allocation7 + $0xb0] sm:$0xff]
    %v3173 = vld [vmem:[#allocation7 + $0xb8] sm:$0xff]
    %v3174 = vld [vmem:[#allocation7 + $0xc0] sm:$0xff]
    %v3175 = vld [vmem:[#allocation7 + $0xc8] sm:$0xff]
    %v3176 = vld [vmem:[#allocation7 + $0xd0] sm:$0xff]
    %v3177 = vld [vmem:[#allocation7 + $0xd8] sm:$0xff]
    %v3178 = vld [vmem:[#allocation7 + $0xe0] sm:$0xff]
    %v3179 = vld [vmem:[#allocation7 + $0xe8] sm:$0xff]
    %v3180 = vld [vmem:[#allocation7 + $0xf0] sm:$0xff]
    %v3181 = vld [vmem:[#allocation7 + $0xf8] sm:$0xff]
    %v3182 = vld [vmem:[#allocation7 + $0x100] sm:$0xff]
    %v3183 = vld [vmem:[#allocation7 + $0x108] sm:$0xff]
    %v3184 = vld [vmem:[#allocation7 + $0x110] sm:$0xff]
    %v3185 = vld [vmem:[#allocation7 + $0x118] sm:$0xff]
    %v3186 = vld [vmem:[#allocation7 + $0x120] sm:$0xff]
    %v3187 = vld [vmem:[#allocation7 + $0x128] sm:$0xff]
    %v3188 = vld [vmem:[#allocation7 + $0x130] sm:$0xff]
    %v3189 = vld [vmem:[#allocation7 + $0x138] sm:$0xff]
    %v3190 = vld [vmem:[#allocation7 + $0x140] sm:$0xff]
    %v3191 = vld [vmem:[#allocation7 + $0x148] sm:$0xff]
    %v3192 = vld [vmem:[#allocation7 + $0x150] sm:$0xff]
    %v3193 = vld [vmem:[#allocation7 + $0x158] sm:$0xff]
    %v3194 = vld [vmem:[#allocation7 + $0x160] sm:$0xff]
    %v3195 = vld [vmem:[#allocation7 + $0x168] sm:$0xff]
    %v3196 = vld [vmem:[#allocation7 + $0x170] sm:$0xff]
    %v3197 = vld [vmem:[#allocation7 + $0x178] sm:$0xff]
    %v3198 = vld [vmem:[#allocation7 + $0x180] sm:$0xff]
    %v3199 = vld [vmem:[#allocation7 + $0x188] sm:$0xff]
    %v3200 = vld [vmem:[#allocation7 + $0x190] sm:$0xff]
    %v3201 = vld [vmem:[#allocation7 + $0x198] sm:$0xff]
    %v3202 = vld [vmem:[#allocation7 + $0x1a0] sm:$0xff]
    %v3203 = vld [vmem:[#allocation7 + $0x1a8] sm:$0xff]
    %v3204 = vld [vmem:[#allocation7 + $0x1b0] sm:$0xff]
    %v3205 = vld [vmem:[#allocation7 + $0x1b8] sm:$0xff]
    %v3206 = vld [vmem:[#allocation7 + $0x1c0] sm:$0xff]
    %v3207 = vld [vmem:[#allocation7 + $0x1c8] sm:$0xff]
    %v3208 = vld [vmem:[#allocation7 + $0x1d0] sm:$0xff]
    %v3209 = vld [vmem:[#allocation7 + $0x1d8] sm:$0xff]
    %v3210 = vld [vmem:[#allocation7 + $0x1e0] sm:$0xff]
    %v3211 = vld [vmem:[#allocation7 + $0x1e8] sm:$0xff]
    %v3212 = vld [vmem:[#allocation7 + $0x1f0] sm:$0xff]
    %v3213 = vld [vmem:[#allocation7 + $0x1f8] sm:$0xff]
    %v3214 = vld [vmem:[%s8] sm:$0x3]
    %v3216 = vlaneseq
    %v3217 = vshrl.u32 %v3216, 7
    %v3218 = vsub.s32 0, %v3217
    %v3219 = vrot.slane %v3214, %v3218
    %v3220 = vlaneseq
    %v3221 = vshrl.u32 %v3220, 7
    %v3222 = vsub.s32 1, %v3221
    %v3223 = vrot.slane %v3214, %v3222
    %v3290 = vunpack.c.l.b16 %v3150
    %v3291 = vunpack.c.h.b16 %v3150
    %v3292 = vunpack.c.l.b16 %v3151
    %v3293 = vunpack.c.h.b16 %v3151
    %v3294 = vunpack.c.l.b16 %v3152
    %v3295 = vunpack.c.h.b16 %v3152
    %v3296 = vunpack.c.l.b16 %v3153
    %v3297 = vunpack.c.h.b16 %v3153
    %v3298 = vunpack.c.l.b16 %v3154
    %v3299 = vunpack.c.h.b16 %v3154
    %v3300 = vunpack.c.l.b16 %v3155
    %v3301 = vunpack.c.h.b16 %v3155
    %v3302 = vunpack.c.l.b16 %v3156
    %v3303 = vunpack.c.h.b16 %v3156
    %v3304 = vunpack.c.l.b16 %v3157
    %v3305 = vunpack.c.h.b16 %v3157
    %v3306 = vunpack.c.l.b16 %v3158
    %v3307 = vunpack.c.h.b16 %v3158
    %v3308 = vunpack.c.l.b16 %v3159
    %v3309 = vunpack.c.h.b16 %v3159
    %v3310 = vunpack.c.l.b16 %v3160
    %v3311 = vunpack.c.h.b16 %v3160
    %v3312 = vunpack.c.l.b16 %v3161
    %v3313 = vunpack.c.h.b16 %v3161
    %v3314 = vunpack.c.l.b16 %v3162
    %v3315 = vunpack.c.h.b16 %v3162
    %v3316 = vunpack.c.l.b16 %v3163
    %v3317 = vunpack.c.h.b16 %v3163
    %v3318 = vunpack.c.l.b16 %v3164
    %v3319 = vunpack.c.h.b16 %v3164
    %v3320 = vunpack.c.l.b16 %v3165
    %v3321 = vunpack.c.h.b16 %v3165
    %v3322 = vunpack.c.l.b16 %v3166
    %v3323 = vunpack.c.h.b16 %v3166
    %v3324 = vunpack.c.l.b16 %v3167
    %v3325 = vunpack.c.h.b16 %v3167
    %v3326 = vunpack.c.l.b16 %v3168
    %v3327 = vunpack.c.h.b16 %v3168
    %v3328 = vunpack.c.l.b16 %v3169
    %v3329 = vunpack.c.h.b16 %v3169
    %v3330 = vunpack.c.l.b16 %v3170
    %v3331 = vunpack.c.h.b16 %v3170
    %v3332 = vunpack.c.l.b16 %v3171
    %v3333 = vunpack.c.h.b16 %v3171
    %v3334 = vunpack.c.l.b16 %v3172
    %v3335 = vunpack.c.h.b16 %v3172
    %v3336 = vunpack.c.l.b16 %v3173
    %v3337 = vunpack.c.h.b16 %v3173
    %v3338 = vunpack.c.l.b16 %v3174
    %v3339 = vunpack.c.h.b16 %v3174
    %v3340 = vunpack.c.l.b16 %v3175
    %v3341 = vunpack.c.h.b16 %v3175
    %v3342 = vunpack.c.l.b16 %v3176
    %v3343 = vunpack.c.h.b16 %v3176
    %v3344 = vunpack.c.l.b16 %v3177
    %v3345 = vunpack.c.h.b16 %v3177
    %v3346 = vunpack.c.l.b16 %v3178
    %v3347 = vunpack.c.h.b16 %v3178
    %v3348 = vunpack.c.l.b16 %v3179
    %v3349 = vunpack.c.h.b16 %v3179
    %v3350 = vunpack.c.l.b16 %v3180
    %v3351 = vunpack.c.h.b16 %v3180
    %v3352 = vunpack.c.l.b16 %v3181
    %v3353 = vunpack.c.h.b16 %v3181
    %v3354 = vunpack.c.l.b16 %v3182
    %v3355 = vunpack.c.h.b16 %v3182
    %v3356 = vunpack.c.l.b16 %v3183
    %v3357 = vunpack.c.h.b16 %v3183
    %v3358 = vunpack.c.l.b16 %v3184
    %v3359 = vunpack.c.h.b16 %v3184
    %v3360 = vunpack.c.l.b16 %v3185
    %v3361 = vunpack.c.h.b16 %v3185
    %v3362 = vunpack.c.l.b16 %v3186
    %v3363 = vunpack.c.h.b16 %v3186
    %v3364 = vunpack.c.l.b16 %v3187
    %v3365 = vunpack.c.h.b16 %v3187
    %v3366 = vunpack.c.l.b16 %v3188
    %v3367 = vunpack.c.h.b16 %v3188
    %v3368 = vunpack.c.l.b16 %v3189
    %v3369 = vunpack.c.h.b16 %v3189
    %v3370 = vunpack.c.l.b16 %v3190
    %v3371 = vunpack.c.h.b16 %v3190
    %v3372 = vunpack.c.l.b16 %v3191
    %v3373 = vunpack.c.h.b16 %v3191
    %v3374 = vunpack.c.l.b16 %v3192
    %v3375 = vunpack.c.h.b16 %v3192
    %v3376 = vunpack.c.l.b16 %v3193
    %v3377 = vunpack.c.h.b16 %v3193
    %v3378 = vunpack.c.l.b16 %v3194
    %v3379 = vunpack.c.h.b16 %v3194
    %v3380 = vunpack.c.l.b16 %v3195
    %v3381 = vunpack.c.h.b16 %v3195
    %v3382 = vunpack.c.l.b16 %v3196
    %v3383 = vunpack.c.h.b16 %v3196
    %v3384 = vunpack.c.l.b16 %v3197
    %v3385 = vunpack.c.h.b16 %v3197
    %v3386 = vunpack.c.l.b16 %v3198
    %v3387 = vunpack.c.h.b16 %v3198
    %v3388 = vunpack.c.l.b16 %v3199
    %v3389 = vunpack.c.h.b16 %v3199
    %v3390 = vunpack.c.l.b16 %v3200
    %v3391 = vunpack.c.h.b16 %v3200
    %v3392 = vunpack.c.l.b16 %v3201
    %v3393 = vunpack.c.h.b16 %v3201
    %v3394 = vunpack.c.l.b16 %v3202
    %v3395 = vunpack.c.h.b16 %v3202
    %v3396 = vunpack.c.l.b16 %v3203
    %v3397 = vunpack.c.h.b16 %v3203
    %v3398 = vunpack.c.l.b16 %v3204
    %v3399 = vunpack.c.h.b16 %v3204
    %v3400 = vunpack.c.l.b16 %v3205
    %v3401 = vunpack.c.h.b16 %v3205
    %v3402 = vunpack.c.l.b16 %v3206
    %v3403 = vunpack.c.h.b16 %v3206
    %v3404 = vunpack.c.l.b16 %v3207
    %v3405 = vunpack.c.h.b16 %v3207
    %v3406 = vunpack.c.l.b16 %v3208
    %v3407 = vunpack.c.h.b16 %v3208
    %v3408 = vunpack.c.l.b16 %v3209
    %v3409 = vunpack.c.h.b16 %v3209
    %v3410 = vunpack.c.l.b16 %v3210
    %v3411 = vunpack.c.h.b16 %v3210
    %v3412 = vunpack.c.l.b16 %v3211
    %v3413 = vunpack.c.h.b16 %v3211
    %v3414 = vunpack.c.l.b16 %v3212
    %v3415 = vunpack.c.h.b16 %v3212
    %v3416 = vunpack.c.l.b16 %v3213
    %v3417 = vunpack.c.h.b16 %v3213
    %v3418 = vpack.c.b16 %v3292, %v3290
    %v3419 = vpack.c.b16 %v3293, %v3291
    %v3420 = vpack.c.b16 %v3296, %v3294
    %v3421 = vpack.c.b16 %v3297, %v3295
    %v3422 = vpack.c.b16 %v3300, %v3298
    %v3423 = vpack.c.b16 %v3301, %v3299
    %v3424 = vpack.c.b16 %v3304, %v3302
    %v3425 = vpack.c.b16 %v3305, %v3303
    %v3426 = vpack.c.b16 %v3308, %v3306
    %v3427 = vpack.c.b16 %v3309, %v3307
    %v3428 = vpack.c.b16 %v3312, %v3310
    %v3429 = vpack.c.b16 %v3313, %v3311
    %v3430 = vpack.c.b16 %v3316, %v3314
    %v3431 = vpack.c.b16 %v3317, %v3315
    %v3432 = vpack.c.b16 %v3320, %v3318
    %v3433 = vpack.c.b16 %v3321, %v3319
    %v3434 = vpack.c.b16 %v3324, %v3322
    %v3435 = vpack.c.b16 %v3325, %v3323
    %v3436 = vpack.c.b16 %v3328, %v3326
    %v3437 = vpack.c.b16 %v3329, %v3327
    %v3438 = vpack.c.b16 %v3332, %v3330
    %v3439 = vpack.c.b16 %v3333, %v3331
    %v3440 = vpack.c.b16 %v3336, %v3334
    %v3441 = vpack.c.b16 %v3337, %v3335
    %v3442 = vpack.c.b16 %v3340, %v3338
    %v3443 = vpack.c.b16 %v3341, %v3339
    %v3444 = vpack.c.b16 %v3344, %v3342
    %v3445 = vpack.c.b16 %v3345, %v3343
    %v3446 = vpack.c.b16 %v3348, %v3346
    %v3447 = vpack.c.b16 %v3349, %v3347
    %v3448 = vpack.c.b16 %v3352, %v3350
    %v3449 = vpack.c.b16 %v3353, %v3351
    %v3450 = vpack.c.b16 %v3356, %v3354
    %v3451 = vpack.c.b16 %v3357, %v3355
    %v3452 = vpack.c.b16 %v3360, %v3358
    %v3453 = vpack.c.b16 %v3361, %v3359
    %v3454 = vpack.c.b16 %v3364, %v3362
    %v3455 = vpack.c.b16 %v3365, %v3363
    %v3456 = vpack.c.b16 %v3368, %v3366
    %v3457 = vpack.c.b16 %v3369, %v3367
    %v3458 = vpack.c.b16 %v3372, %v3370
    %v3459 = vpack.c.b16 %v3373, %v3371
    %v3460 = vpack.c.b16 %v3376, %v3374
    %v3461 = vpack.c.b16 %v3377, %v3375
    %v3462 = vpack.c.b16 %v3380, %v3378
    %v3463 = vpack.c.b16 %v3381, %v3379
    %v3464 = vpack.c.b16 %v3384, %v3382
    %v3465 = vpack.c.b16 %v3385, %v3383
    %v3466 = vpack.c.b16 %v3388, %v3386
    %v3467 = vpack.c.b16 %v3389, %v3387
    %v3468 = vpack.c.b16 %v3392, %v3390
    %v3469 = vpack.c.b16 %v3393, %v3391
    %v3470 = vpack.c.b16 %v3396, %v3394
    %v3471 = vpack.c.b16 %v3397, %v3395
    %v3472 = vpack.c.b16 %v3400, %v3398
    %v3473 = vpack.c.b16 %v3401, %v3399
    %v3474 = vpack.c.b16 %v3404, %v3402
    %v3475 = vpack.c.b16 %v3405, %v3403
    %v3476 = vpack.c.b16 %v3408, %v3406
    %v3477 = vpack.c.b16 %v3409, %v3407
    %v3478 = vpack.c.b16 %v3412, %v3410
    %v3479 = vpack.c.b16 %v3413, %v3411
    %v3480 = vpack.c.b16 %v3416, %v3414
    %v3481 = vpack.c.b16 %v3417, %v3415
    %3546 = vmatprep.subr.bf16.mxu0 %v3433
    %3547 = vmatpush1.bf16.msra.mxu0 %v3432
    %3548 = vmatprep.subr.bf16.mxu0 %v3431
    %3549 = vmatpush1.bf16.msra.mxu0 %v3430
    %3550 = vmatprep.subr.bf16.mxu0 %v3429
    %3551 = vmatpush1.bf16.msra.mxu0 %v3428
    %3552 = vmatprep.subr.bf16.mxu0 %v3427
    %3553 = vmatpush1.bf16.msra.mxu0 %v3426
    %3554 = vmatprep.subr.bf16.mxu0 %v3425
    %3555 = vmatpush1.bf16.msra.mxu0 %v3424
    %3556 = vmatprep.subr.bf16.mxu0 %v3423
    %3557 = vmatpush1.bf16.msra.mxu0 %v3422
    %3558 = vmatprep.subr.bf16.mxu0 %v3421
    %3559 = vmatpush1.bf16.msra.mxu0 %v3420
    %3560 = vmatprep.subr.bf16.mxu0 %v3419
    %3561 = vmatpush1.bf16.msra.mxu0 %v3418
    %3562 = vmatprep.subr.bf16.mxu0 %v3449
    %3563 = vmatpush2.bf16.msra.mxu0 %v3448
    %3564 = vmatprep.subr.bf16.mxu0 %v3447
    %3565 = vmatpush2.bf16.msra.mxu0 %v3446
    %3566 = vmatprep.subr.bf16.mxu0 %v3445
    %3567 = vmatpush2.bf16.msra.mxu0 %v3444
    %3568 = vmatprep.subr.bf16.mxu0 %v3443
    %3569 = vmatpush2.bf16.msra.mxu0 %v3442
    %3570 = vmatprep.subr.bf16.mxu0 %v3441
    %3571 = vmatpush2.bf16.msra.mxu0 %v3440
    %3572 = vmatprep.subr.bf16.mxu0 %v3439
    %3573 = vmatpush2.bf16.msra.mxu0 %v3438
    %3574 = vmatprep.subr.bf16.mxu0 %v3437
    %3575 = vmatpush2.bf16.msra.mxu0 %v3436
    %3576 = vmatprep.subr.bf16.mxu0 %v3435
    %3577 = vmatpush2.bf16.msra.mxu0 %v3434
    %3578 = vmatprep.mubr.bf16.mxu0 %v3147
    %3579 = vmatmul.mubr.bf16.gmra.mxu0 %v3146
    %v3580 = vpop.f32.mrf.mxu0
    %v3581 = vadd.f32 %v3219, %v3580
    %v3582 = vpop.f32.mrf.mxu0
    %v3583 = vadd.f32 %v3223, %v3582
    %v3584 = vpop.f32.mrf.mxu0
    %v3585 = vpop.f32.mrf.mxu0
    %3586 = vdwg.mxu0
    %3587 = vmatprep.subr.bf16.mxu0 %v3465
    %3588 = vmatpush1.bf16.msra.mxu0 %v3464
    %3589 = vmatprep.subr.bf16.mxu0 %v3463
    %3590 = vmatpush1.bf16.msra.mxu0 %v3462
    %3591 = vmatprep.subr.bf16.mxu0 %v3461
    %3592 = vmatpush1.bf16.msra.mxu0 %v3460
    %3593 = vmatprep.subr.bf16.mxu0 %v3459
    %3594 = vmatpush1.bf16.msra.mxu0 %v3458
    %3595 = vmatprep.subr.bf16.mxu0 %v3457
    %3596 = vmatpush1.bf16.msra.mxu0 %v3456
    %3597 = vmatprep.subr.bf16.mxu0 %v3455
    %3598 = vmatpush1.bf16.msra.mxu0 %v3454
    %3599 = vmatprep.subr.bf16.mxu0 %v3453
    %3600 = vmatpush1.bf16.msra.mxu0 %v3452
    %3601 = vmatprep.subr.bf16.mxu0 %v3451
    %3602 = vmatpush1.bf16.msra.mxu0 %v3450
    %3603 = vmatprep.subr.bf16.mxu0 %v3481
    %3604 = vmatpush2.bf16.msra.mxu0 %v3480
    %3605 = vmatprep.subr.bf16.mxu0 %v3479
    %3606 = vmatpush2.bf16.msra.mxu0 %v3478
    %3607 = vmatprep.subr.bf16.mxu0 %v3477
    %3608 = vmatpush2.bf16.msra.mxu0 %v3476
    %3609 = vmatprep.subr.bf16.mxu0 %v3475
    %3610 = vmatpush2.bf16.msra.mxu0 %v3474
    %3611 = vmatprep.subr.bf16.mxu0 %v3473
    %3612 = vmatpush2.bf16.msra.mxu0 %v3472
    %3613 = vmatprep.subr.bf16.mxu0 %v3471
    %3614 = vmatpush2.bf16.msra.mxu0 %v3470
    %3615 = vmatprep.subr.bf16.mxu0 %v3469
    %3616 = vmatpush2.bf16.msra.mxu0 %v3468
    %3617 = vmatprep.subr.bf16.mxu0 %v3467
    %3618 = vmatpush2.bf16.msra.mxu0 %v3466
    %3619 = vmatprep.mubr.bf16.mxu0 %v3149
    %3620 = vmatmul.mubr.bf16.gmra.mxu0 %v3148
    %v3621 = vpop.f32.mrf.mxu0
    %v3622 = vadd.f32 %v3581, %v3621
    %v3623 = vpop.f32.mrf.mxu0
    %v3624 = vadd.f32 %v3583, %v3623
    %v3625 = vpop.f32.mrf.mxu0
    %v3626 = vpop.f32.mrf.mxu0
    %3627 = vdwg.mxu0
    %v3628 = vmax.f32 %v3622, 0.0
    %v3629 = vmax.f32 %v3624, 0.0
    %v3630 = vmin.f32 %v3628, 6.0
    %v3631 = vmin.f32 %v3629, 6.0
    %v3632 = vpack.c.bf16 %v3630, %v3630
    %v3633 = vpack.c.bf16 %v3631, %v3631
    %v3634 = vld [vmem:[%s9] sm:$0xf]
    %v3635 = vld [vmem:[%s9 + $0x4] sm:$0xf]
    %v3636 = vld [vmem:[%s9 + $0x8] sm:$0xf]
    %v3637 = vld [vmem:[%s9 + $0xc] sm:$0xf]
    %v3638 = vld [vmem:[%s9 + $0x10] sm:$0xf]
    %v3639 = vld [vmem:[%s9 + $0x14] sm:$0xf]
    %v3640 = vld [vmem:[%s9 + $0x18] sm:$0xf]
    %v3641 = vld [vmem:[%s9 + $0x1c] sm:$0xf]
    %v3642 = vld [vmem:[%s9 + $0x20] sm:$0xf]
    %v3643 = vld [vmem:[%s9 + $0x24] sm:$0xf]
    %v3644 = vld [vmem:[%s9 + $0x28] sm:$0xf]
    %v3645 = vld [vmem:[%s9 + $0x2c] sm:$0xf]
    %v3646 = vld [vmem:[%s9 + $0x30] sm:$0xf]
    %v3647 = vld [vmem:[%s9 + $0x34] sm:$0xf]
    %v3648 = vld [vmem:[%s9 + $0x38] sm:$0xf]
    %v3649 = vld [vmem:[%s9 + $0x3c] sm:$0xf]
    %v3650 = vld [vmem:[%s9 + $0x40] sm:$0xf]
    %v3651 = vld [vmem:[%s9 + $0x44] sm:$0xf]
    %v3652 = vld [vmem:[%s9 + $0x48] sm:$0xf]
    %v3653 = vld [vmem:[%s9 + $0x4c] sm:$0xf]
    %v3654 = vld [vmem:[%s9 + $0x50] sm:$0xf]
    %v3655 = vld [vmem:[%s9 + $0x54] sm:$0xf]
    %v3656 = vld [vmem:[%s9 + $0x58] sm:$0xf]
    %v3657 = vld [vmem:[%s9 + $0x5c] sm:$0xf]
    %v3658 = vld [vmem:[%s9 + $0x60] sm:$0xf]
    %v3659 = vld [vmem:[%s9 + $0x64] sm:$0xf]
    %v3660 = vld [vmem:[%s9 + $0x68] sm:$0xf]
    %v3661 = vld [vmem:[%s9 + $0x6c] sm:$0xf]
    %v3662 = vld [vmem:[%s9 + $0x70] sm:$0xf]
    %v3663 = vld [vmem:[%s9 + $0x74] sm:$0xf]
    %v3664 = vld [vmem:[%s9 + $0x78] sm:$0xf]
    %v3665 = vld [vmem:[%s9 + $0x7c] sm:$0xf]
    %v3666 = vld [vmem:[%s10] sm:$0x1]
    %v3668 = vlaneseq
    %v3669 = vshrl.u32 %v3668, 7
    %v3670 = vsub.s32 0, %v3669
    %v3671 = vrot.slane %v3666, %v3670
    %v3705 = vunpack.c.l.b16 %v3634
    %v3706 = vunpack.c.l.b16 %v3635
    %v3707 = vunpack.c.l.b16 %v3636
    %v3708 = vunpack.c.l.b16 %v3637
    %v3709 = vunpack.c.l.b16 %v3638
    %v3710 = vunpack.c.l.b16 %v3639
    %v3711 = vunpack.c.l.b16 %v3640
    %v3712 = vunpack.c.l.b16 %v3641
    %v3713 = vunpack.c.l.b16 %v3642
    %v3714 = vunpack.c.l.b16 %v3643
    %v3715 = vunpack.c.l.b16 %v3644
    %v3716 = vunpack.c.l.b16 %v3645
    %v3717 = vunpack.c.l.b16 %v3646
    %v3718 = vunpack.c.l.b16 %v3647
    %v3719 = vunpack.c.l.b16 %v3648
    %v3720 = vunpack.c.l.b16 %v3649
    %v3721 = vunpack.c.l.b16 %v3650
    %v3722 = vunpack.c.l.b16 %v3651
    %v3723 = vunpack.c.l.b16 %v3652
    %v3724 = vunpack.c.l.b16 %v3653
    %v3725 = vunpack.c.l.b16 %v3654
    %v3726 = vunpack.c.l.b16 %v3655
    %v3727 = vunpack.c.l.b16 %v3656
    %v3728 = vunpack.c.l.b16 %v3657
    %v3729 = vunpack.c.l.b16 %v3658
    %v3730 = vunpack.c.l.b16 %v3659
    %v3731 = vunpack.c.l.b16 %v3660
    %v3732 = vunpack.c.l.b16 %v3661
    %v3733 = vunpack.c.l.b16 %v3662
    %v3734 = vunpack.c.l.b16 %v3663
    %v3735 = vunpack.c.l.b16 %v3664
    %v3736 = vunpack.c.l.b16 %v3665
    %v3737 = vpack.c.b16 %v3706, %v3705
    %v3738 = vpack.c.b16 %v3708, %v3707
    %v3739 = vpack.c.b16 %v3710, %v3709
    %v3740 = vpack.c.b16 %v3712, %v3711
    %v3741 = vpack.c.b16 %v3714, %v3713
    %v3742 = vpack.c.b16 %v3716, %v3715
    %v3743 = vpack.c.b16 %v3718, %v3717
    %v3744 = vpack.c.b16 %v3720, %v3719
    %v3745 = vpack.c.b16 %v3722, %v3721
    %v3746 = vpack.c.b16 %v3724, %v3723
    %v3747 = vpack.c.b16 %v3726, %v3725
    %v3748 = vpack.c.b16 %v3728, %v3727
    %v3749 = vpack.c.b16 %v3730, %v3729
    %v3750 = vpack.c.b16 %v3732, %v3731
    %v3751 = vpack.c.b16 %v3734, %v3733
    %v3752 = vpack.c.b16 %v3736, %v3735
    %3769 = vmatprep.subr.bf16.mxu0 0
    %3770 = vmatpush1.bf16.msra.mxu0 %v3744
    %3771 = vmatprep.subr.bf16.mxu0 0
    %3772 = vmatpush1.bf16.msra.mxu0 %v3743
    %3773 = vmatprep.subr.bf16.mxu0 0
    %3774 = vmatpush1.bf16.msra.mxu0 %v3742
    %3775 = vmatprep.subr.bf16.mxu0 0
    %3776 = vmatpush1.bf16.msra.mxu0 %v3741
    %3777 = vmatprep.subr.bf16.mxu0 0
    %3778 = vmatpush1.bf16.msra.mxu0 %v3740
    %3779 = vmatprep.subr.bf16.mxu0 0
    %3780 = vmatpush1.bf16.msra.mxu0 %v3739
    %3781 = vmatprep.subr.bf16.mxu0 0
    %3782 = vmatpush1.bf16.msra.mxu0 %v3738
    %3783 = vmatprep.subr.bf16.mxu0 0
    %3784 = vmatpush1.bf16.msra.mxu0 %v3737
    %3785 = vmatprep.subr.bf16.mxu0 0
    %3786 = vmatpush2.bf16.msra.mxu0 %v3752
    %3787 = vmatprep.subr.bf16.mxu0 0
    %3788 = vmatpush2.bf16.msra.mxu0 %v3751
    %3789 = vmatprep.subr.bf16.mxu0 0
    %3790 = vmatpush2.bf16.msra.mxu0 %v3750
    %3791 = vmatprep.subr.bf16.mxu0 0
    %3792 = vmatpush2.bf16.msra.mxu0 %v3749
    %3793 = vmatprep.subr.bf16.mxu0 0
    %3794 = vmatpush2.bf16.msra.mxu0 %v3748
    %3795 = vmatprep.subr.bf16.mxu0 0
    %3796 = vmatpush2.bf16.msra.mxu0 %v3747
    %3797 = vmatprep.subr.bf16.mxu0 0
    %3798 = vmatpush2.bf16.msra.mxu0 %v3746
    %3799 = vmatprep.subr.bf16.mxu0 0
    %3800 = vmatpush2.bf16.msra.mxu0 %v3745
    %3801 = vmatprep.mubr.bf16.mxu0 %v3633
    %3802 = vmatmul.mubr.bf16.gmra.mxu0 %v3632
    %v3803 = vpop.f32.mrf.mxu0
    %v3804 = vadd.f32 %v3671, %v3803
    %v3805 = vpop.f32.mrf.mxu0
    %v3806 = vpop.f32.mrf.mxu0
    %v3807 = vpop.f32.mrf.mxu0
    %3808 = vdwg.mxu0
    %v3809 = vmax.f32 %v3804, 0.0
    %v3810 = vmin.f32 %v3809, 6.0
    %v3811 = vpack.c.bf16 %v3810, %v3810
    %v3812 = vld [vmem:[%s11] sm:$0xf]
    %v3813 = vld [vmem:[%s11 + $0x4] sm:$0xf]
    %v3814 = vld [vmem:[%s11 + $0x8] sm:$0xf]
    %v3815 = vld [vmem:[%s11 + $0xc] sm:$0xf]
    %v3816 = vld [vmem:[%s11 + $0x10] sm:$0xf]
    %v3817 = vld [vmem:[%s11 + $0x14] sm:$0xf]
    %v3818 = vld [vmem:[%s11 + $0x18] sm:$0xf]
    %v3819 = vld [vmem:[%s11 + $0x1c] sm:$0xf]
    %v3820 = vld [vmem:[%s11 + $0x20] sm:$0xf]
    %v3821 = vld [vmem:[%s11 + $0x24] sm:$0xf]
    %v3822 = vld [vmem:[%s11 + $0x28] sm:$0xf]
    %v3823 = vld [vmem:[%s11 + $0x2c] sm:$0xf]
    %v3824 = vld [vmem:[%s11 + $0x30] sm:$0xf]
    %v3825 = vld [vmem:[%s11 + $0x34] sm:$0xf]
    %v3826 = vld [vmem:[%s11 + $0x38] sm:$0xf]
    %v3827 = vld [vmem:[%s11 + $0x3c] sm:$0xf]
    %v3828 = vld [vmem:[%s12] sm:$0x1]
    %v3830 = vlaneseq
    %v3831 = vshrl.u32 %v3830, 7
    %v3832 = vsub.s32 0, %v3831
    %v3833 = vrot.slane %v3828, %v3832
    %v3851 = vunpack.c.l.b16 %v3812
    %v3852 = vunpack.c.l.b16 %v3813
    %v3853 = vunpack.c.l.b16 %v3814
    %v3854 = vunpack.c.l.b16 %v3815
    %v3855 = vunpack.c.l.b16 %v3816
    %v3856 = vunpack.c.l.b16 %v3817
    %v3857 = vunpack.c.l.b16 %v3818
    %v3858 = vunpack.c.l.b16 %v3819
    %v3859 = vunpack.c.l.b16 %v3820
    %v3860 = vunpack.c.l.b16 %v3821
    %v3861 = vunpack.c.l.b16 %v3822
    %v3862 = vunpack.c.l.b16 %v3823
    %v3863 = vunpack.c.l.b16 %v3824
    %v3864 = vunpack.c.l.b16 %v3825
    %v3865 = vunpack.c.l.b16 %v3826
    %v3866 = vunpack.c.l.b16 %v3827
    %v3867 = vpack.c.b16 %v3852, %v3851
    %v3868 = vpack.c.b16 %v3854, %v3853
    %v3869 = vpack.c.b16 %v3856, %v3855
    %v3870 = vpack.c.b16 %v3858, %v3857
    %v3871 = vpack.c.b16 %v3860, %v3859
    %v3872 = vpack.c.b16 %v3862, %v3861
    %v3873 = vpack.c.b16 %v3864, %v3863
    %v3874 = vpack.c.b16 %v3866, %v3865
    %3883 = vmatprep.subr.bf16.mxu0 0
    %3884 = vmatpush1.bf16.msra.mxu0 %v3874
    %3885 = vmatprep.subr.bf16.mxu0 0
    %3886 = vmatpush1.bf16.msra.mxu0 %v3873
    %3887 = vmatprep.subr.bf16.mxu0 0
    %3888 = vmatpush1.bf16.msra.mxu0 %v3872
    %3889 = vmatprep.subr.bf16.mxu0 0
    %3890 = vmatpush1.bf16.msra.mxu0 %v3871
    %3891 = vmatprep.subr.bf16.mxu0 0
    %3892 = vmatpush1.bf16.msra.mxu0 %v3870
    %3893 = vmatprep.subr.bf16.mxu0 0
    %3894 = vmatpush1.bf16.msra.mxu0 %v3869
    %3895 = vmatprep.subr.bf16.mxu0 0
    %3896 = vmatpush1.bf16.msra.mxu0 %v3868
    %3897 = vmatprep.subr.bf16.mxu0 0
    %3898 = vmatpush1.bf16.msra.mxu0 %v3867
    %3899 = vmatprep.subr.bf16.mxu0 0
    %3900 = vmatpush2.bf16.msra.mxu0 0
    %3901 = vmatprep.subr.bf16.mxu0 0
    %3902 = vmatpush2.bf16.msra.mxu0 0
    %3903 = vmatprep.subr.bf16.mxu0 0
    %3904 = vmatpush2.bf16.msra.mxu0 0
    %3905 = vmatprep.subr.bf16.mxu0 0
    %3906 = vmatpush2.bf16.msra.mxu0 0
    %3907 = vmatprep.subr.bf16.mxu0 0
    %3908 = vmatpush2.bf16.msra.mxu0 0
    %3909 = vmatprep.subr.bf16.mxu0 0
    %3910 = vmatpush2.bf16.msra.mxu0 0
    %3911 = vmatprep.subr.bf16.mxu0 0
    %3912 = vmatpush2.bf16.msra.mxu0 0
    %3913 = vmatprep.subr.bf16.mxu0 0
    %3914 = vmatpush2.bf16.msra.mxu0 0
    %3915 = vmatprep.mubr.bf16.mxu0 0
    %3916 = vmatmul.mubr.bf16.gmra.mxu0 %v3811
    %v3917 = vpop.f32.mrf.mxu0
    %v3918 = vadd.f32 %v3833, %v3917
    %v3919 = vpop.f32.mrf.mxu0
    %v3920 = vpop.f32.mrf.mxu0
    %v3921 = vpop.f32.mrf.mxu0
    %3922 = vdwg.mxu0
    %3923 = vst [vmem:[%s13] sm:$0xff] %v3918
    // Predicated region
    $region70: #{simple_cnn_forward.1} parent=1 // pred_check
      _
    $region71: #{simple_cnn_forward.1} parent=1 // pred_check_branch
      %3925 = sbr.rel (0) target = $region73
    $region72: #{simple_cnn_forward.1} parent=1 // pred_region
      _
    $region73: #{simple_cnn_forward.1} parent=1 // pred_fallthru
      _
    // Predicated region
    $region74: #{simple_cnn_forward.1} parent=1 // pred_check
      _
    $region75: #{simple_cnn_forward.1} parent=1 // pred_check_branch
      %3927 = sbr.rel (0) target = $region77
    $region76: #{simple_cnn_forward.1} parent=1 // pred_region
      _
    $region77: #{simple_cnn_forward.1} parent=1 // pred_fallthru
      _
    %3928 = vsyncpa [#allocation3], 1
    %3929 = vsyncpa [#allocation5], 1
    %3930 = vsyncpa [#allocation8], 1

</llo_original>
